<compile_context>
chip_gen: v7x
topology: tpu7x:2x2x1
jax: 0.10.0
libtpu: 0.0.40
codegen_flags: <defaults>
</compile_context>

<pallas_src>
import functools

import jax
import jax.numpy as jnp
from jax import lax
from jax.experimental import pallas as pl
from jax.experimental.pallas import tpu as pltpu


def _nnlm_kernel(idx_ref,        # VMEM (TB, W)  int32  -- context indices tile
                 emb_ref,        # VMEM (V, E)   bf16   -- invariant (resident)
                 w1_ref,         # VMEM (E, H)   bf16   -- invariant
                 b1_ref,         # VMEM (1, H)   f32    -- invariant
                 w2_ref,         # VMEM (H, TV)  bf16   -- vocab tile j
                 b2_ref,         # VMEM (1, TV)  f32    -- vocab tile j
                 out_ref,        # VMEM (TB, V)  f32    -- resident across j
                 h_ref,          # VMEM (TB, H)  bf16 scratch (hidden acts)
                 m_ref,          # VMEM (TB, 1)  f32  scratch (running max)
                 l_ref,          # VMEM (TB, 1)  f32  scratch (running sum exp)
                 *, window, tb, tv, nj, vocab):
    j = pl.program_id(1)

    # ---- prologue (once per batch tile): embedding-sum + hidden layer ------
    @pl.when(j == 0)
    def _prologue():
        idx = idx_ref[...]                                        # (TB, W) i32
        vocab_iota = lax.broadcasted_iota(jnp.int32, (tb, vocab), 1)
        counts = jnp.zeros((tb, vocab), jnp.float32)
        for w in range(window):                                   # static unroll
            counts = counts + (vocab_iota == idx[:, w:w + 1]).astype(jnp.float32)
        # Multi-hot count matrix @ embedding table == gather + sum over the
        # window, executed on the MXU.  Exact: counts are small integers and
        # accumulation is f32.
        esum = jnp.dot(counts.astype(jnp.bfloat16), emb_ref[...],
                       preferred_element_type=jnp.float32)        # (TB, E) f32
        h = jnp.tanh(
            jnp.dot(esum.astype(jnp.bfloat16), w1_ref[...],
                    preferred_element_type=jnp.float32) + b1_ref[...])
        h_ref[...] = h.astype(jnp.bfloat16)   # cast once; reused every vocab step
        m_ref[...] = jnp.full(m_ref.shape, -jnp.inf, jnp.float32)
        l_ref[...] = jnp.zeros(l_ref.shape, jnp.float32)

    # ---- output layer for vocab columns [j*TV, (j+1)*TV) --------------------
    logits = (jnp.dot(h_ref[...], w2_ref[...],
                      preferred_element_type=jnp.float32) + b2_ref[...])

    # Write unnormalized logits straight into the resident output block using
    # static, lane-aligned slices (no logits scratch, stores spread over steps).
    for jj in range(nj):
        @pl.when(j == jj)
        def _store(jj=jj):
            out_ref[:, jj * tv:(jj + 1) * tv] = logits

    # ---- online logsumexp over vocab tiles ----------------------------------
    m_prev = m_ref[...]
    m_new = jnp.maximum(m_prev, jnp.max(logits, axis=-1, keepdims=True))
    l_ref[...] = (l_ref[...] * jnp.exp(m_prev - m_new)
                  + jnp.sum(jnp.exp(logits - m_new), axis=-1, keepdims=True))
    m_ref[...] = m_new

    # ---- finalize: subtract logsumexp in place (chunked, vreg-friendly) -----
    @pl.when(j == nj - 1)
    def _finalize():
        lse = m_ref[...] + jnp.log(l_ref[...])
        for jj in range(nj):
            out_ref[:, jj * tv:(jj + 1) * tv] = (
                out_ref[:, jj * tv:(jj + 1) * tv] - lse)


def nnlm_forward(indices, emb_table, w1, b1, w2, b2, *, tb=128, tv=256):
    """indices: (B, window) int32.  Returns (B, V) float32 log-probs.

    Weights are stored pre-transposed as (in, out) == PyTorch weight.T in
    bfloat16; biases are float32 with a leading singleton row.
    """
    B, window = indices.shape
    V, E = emb_table.shape
    H = w1.shape[1]

    tb = min(tb, B)
    tv = min(tv, V)
    # Keep at least two batch tiles so both v7x TensorCores get work on the
    # "parallel" batch axis (v5e/v6e are single-TC and unaffected).
    if B // tb < 2 and tb >= 16 and B % (tb // 2) == 0:
        tb //= 2

    assert B % tb == 0 and tb % 8 == 0
    assert V % tv == 0 and tv % 128 == 0
    assert E % 128 == 0 and H % 128 == 0
    # Whole embedding table is kept resident in VMEM (fetched once per call).
    # TODO(synk): for vocabularies whose table does not fit VMEM, add an
    # HBM-gather fallback (memory_space=pl.ANY + double-buffered async row copies).
    assert V * E * emb_table.dtype.itemsize <= 8 * 1024 * 1024

    ni, nj = B // tb, V // tv

    kernel = functools.partial(_nnlm_kernel, window=window, tb=tb, tv=tv,
                               nj=nj, vocab=V)

    # VMEM footprint from tile math (double-buffered pipeline buffers + scratch
    # + prologue one-hot temporaries); a few MiB for the demo shapes.
    est = (2 * tb * V * 4                     # resident (TB, V) f32 output block
           + 2 * V * E * 2                    # embedding table (invariant)
           + 2 * (E * H * 2 + H * 4)          # W1 / b1
           + 2 * (H * tv * 2 + tv * 4)        # W2 / b2 vocab tiles
           + 2 * tb * window * 4              # index tile
           + tb * H * 2 + 2 * tb * 4          # h / m / l scratch
           + 3 * tb * V * 4)                  # one-hot iota/counts headroom
    vmem_limit = int(min(48 * 1024 * 1024, max(32 * 1024 * 1024, 2 * est)))

    grid_spec = pltpu.PrefetchScalarGridSpec(
        num_scalar_prefetch=0,
        grid=(ni, nj),
        in_specs=[
            pl.BlockSpec((tb, window), lambda i, j: (i, 0)),   # context indices
            pl.BlockSpec((V, E), lambda i, j: (0, 0)),         # emb table (invariant)
            pl.BlockSpec((E, H), lambda i, j: (0, 0)),         # W1 (invariant)
            pl.BlockSpec((1, H), lambda i, j: (0, 0)),         # b1 (invariant)
            pl.BlockSpec((H, tv), lambda i, j: (0, j)),        # W2 vocab tile
            pl.BlockSpec((1, tv), lambda i, j: (0, j)),        # b2 vocab tile
        ],
        # Output block is resident across j (the inner "arbitrary" reduction
        # axis) and only fully normalized at j == nj-1.  Do NOT reorder the
        # grid or change j's dimension semantics.
        out_specs=pl.BlockSpec((tb, V), lambda i, j: (i, 0)),
        scratch_shapes=[
            pltpu.VMEM((tb, H), jnp.bfloat16),   # hidden activations (bf16 once)
            pltpu.VMEM((tb, 1), jnp.float32),    # running max
            pltpu.VMEM((tb, 1), jnp.float32),    # running sum(exp)
        ],
    )

    return pl.pallas_call(
        kernel,
        out_shape=jax.ShapeDtypeStruct((B, V), jnp.float32),
        grid_spec=grid_spec,
        compiler_params=pltpu.CompilerParams(
            dimension_semantics=("parallel", "arbitrary"),
            vmem_limit_bytes=vmem_limit),
    )(indices.astype(jnp.int32), emb_table, w1, b1, w2, b2)


def nnlm_reference(indices, emb_table, w1, b1, w2, b2):
    """Pure-JAX reference mirroring the kernel's mixed precision."""
    e = emb_table[indices].astype(jnp.float32)                 # (B, W, E)
    esum = jnp.sum(e, axis=1)                                  # (B, E)
    h = jnp.tanh(jnp.dot(esum.astype(jnp.bfloat16), w1,
                         preferred_element_type=jnp.float32) + b1)
    logits = jnp.dot(h.astype(jnp.bfloat16), w2,
                     preferred_element_type=jnp.float32) + b2
    return jax.nn.log_softmax(logits, axis=-1)


if __name__ == "__main__":
    # Small, lane-dense, module-consistent shapes.  The PyTorch module runs
    # batch_size=1; here B independent context windows are processed per call
    # (identical per-row semantics; amortizes weight traffic and fills the MXU).
    vocab_size = 1024
    embedding_size = 128
    hidden_size = 128
    window_size = 3
    batch = 256          # -> TB=128, ni=2 batch tiles, nj=4 vocab tiles

    key = jax.random.PRNGKey(0)
    k_emb, k_w1, k_b1, k_w2, k_b2, k_idx = jax.random.split(key, 6)

    emb_table = (jax.random.normal(k_emb, (vocab_size, embedding_size),
                                   jnp.float32) * 0.1).astype(jnp.bfloat16)
    # Stored as (in, out) == PyTorch weight.T
    w1 = (jax.random.normal(k_w1, (embedding_size, hidden_size),
                            jnp.float32) * 0.1).astype(jnp.bfloat16)
    b1 = jax.random.normal(k_b1, (1, hidden_size), jnp.float32) * 0.1
    w2 = (jax.random.normal(k_w2, (hidden_size, vocab_size),
                            jnp.float32) * 0.1).astype(jnp.bfloat16)
    b2 = jax.random.normal(k_b2, (1, vocab_size), jnp.float32) * 0.1

    indices = jax.random.randint(k_idx, (batch, window_size), 0, vocab_size,
                                 dtype=jnp.int32)

    out = nnlm_forward(indices, emb_table, w1, b1, w2, b2)
    out = jax.block_until_ready(out)

    ref = nnlm_reference(indices, emb_table, w1, b1, w2, b2)
    assert out.shape == (batch, vocab_size)
    max_err = float(jnp.max(jnp.abs(out - ref)))
    assert jnp.allclose(out, ref, atol=2e-3, rtol=2e-3), (
        f"max abs err = {max_err}")

    print("KERNEL_OK")
</pallas_src>

<mosaic_0001>
module attributes {stable_mosaic.version = 11 : i64} {
  func.func @_nnlm_kernel(%arg0: i32, %arg1: i32, %arg2: memref<128x3xi32, #tpu.memory_space<vmem>>, %arg3: memref<1024x128xbf16, #tpu.memory_space<vmem>>, %arg4: memref<128x128xbf16, #tpu.memory_space<vmem>>, %arg5: memref<1x128xf32, #tpu.memory_space<vmem>>, %arg6: memref<128x256xbf16, #tpu.memory_space<vmem>>, %arg7: memref<1x256xf32, #tpu.memory_space<vmem>>, %arg8: memref<128x1024xf32, #tpu.memory_space<vmem>>, %arg9: memref<128x128xbf16, #tpu.memory_space<vmem>>, %arg10: memref<128x1xf32, #tpu.memory_space<vmem>>, %arg11: memref<128x1xf32, #tpu.memory_space<vmem>>) attributes {dimension_semantics = [#tpu.dimension_semantics<parallel>, #tpu.dimension_semantics<arbitrary>], iteration_bounds = array<i64: 2, 4>, scalar_prefetch = 0 : i64, scratch_operands = 3 : i64, tpu.core_type = #tpu.core_type<tc>, window_params = [{transform_indices = @transform_0, window_bounds = array<i64: 128, 3>}, {pipeline_mode = #tpu.pipeline_mode<synchronous>, transform_indices = @transform_1, window_bounds = array<i64: 1024, 128>}, {pipeline_mode = #tpu.pipeline_mode<synchronous>, transform_indices = @transform_2, window_bounds = array<i64: 128, 128>}, {pipeline_mode = #tpu.pipeline_mode<synchronous>, transform_indices = @transform_3, window_bounds = array<i64: 1, 128>}, {transform_indices = @transform_4, window_bounds = array<i64: 128, 256>}, {transform_indices = @transform_5, window_bounds = array<i64: 1, 256>}, {transform_indices = @transform_6, window_bounds = array<i64: 128, 1024>}]} {
    %c0_i32 = arith.constant 0 : i32
    %0 = arith.cmpi eq, %arg1, %c0_i32 : i32
    %1 = arith.extui %0 : i1 to i32
    %c0_i32_0 = arith.constant 0 : i32
    %2 = arith.cmpi ne, %1, %c0_i32_0 : i32
    scf.if %2 {
      %c0_23 = arith.constant 0 : index
      %c0_24 = arith.constant 0 : index
      %40 = vector.load %arg2[%c0_23, %c0_24] : memref<128x3xi32, #tpu.memory_space<vmem>>, vector<128x3xi32>
      %41 = tpu.iota {dimensions = array<i32: 1>} : vector<128x1024xi32>
      %cst_25 = arith.constant 0.000000e+00 : f32
      %42 = vector.broadcast %cst_25 : f32 to vector<128x1024xf32>
      %43 = vector.extract_strided_slice %40 {offsets = [0, 0], sizes = [128, 1], strides = [1, 1]} : vector<128x3xi32> to vector<128x1xi32>
      %44 = vector.broadcast %43 : vector<128x1xi32> to vector<128x1024xi32>
      %45 = arith.cmpi eq, %41, %44 : vector<128x1024xi32>
      %46 = arith.extui %45 : vector<128x1024xi1> to vector<128x1024xi32>
      %47 = arith.sitofp %46 : vector<128x1024xi32> to vector<128x1024xf32>
      %48 = arith.addf %42, %47 : vector<128x1024xf32>
      %49 = vector.extract_strided_slice %40 {offsets = [0, 1], sizes = [128, 1], strides = [1, 1]} : vector<128x3xi32> to vector<128x1xi32>
      %50 = vector.broadcast %49 : vector<128x1xi32> to vector<128x1024xi32>
      %51 = arith.cmpi eq, %41, %50 : vector<128x1024xi32>
      %52 = arith.extui %51 : vector<128x1024xi1> to vector<128x1024xi32>
      %53 = arith.sitofp %52 : vector<128x1024xi32> to vector<128x1024xf32>
      %54 = arith.addf %48, %53 : vector<128x1024xf32>
      %55 = vector.extract_strided_slice %40 {offsets = [0, 2], sizes = [128, 1], strides = [1, 1]} : vector<128x3xi32> to vector<128x1xi32>
      %56 = vector.broadcast %55 : vector<128x1xi32> to vector<128x1024xi32>
      %57 = arith.cmpi eq, %41, %56 : vector<128x1024xi32>
      %58 = arith.extui %57 : vector<128x1024xi1> to vector<128x1024xi32>
      %59 = arith.sitofp %58 : vector<128x1024xi32> to vector<128x1024xf32>
      %60 = arith.addf %54, %59 : vector<128x1024xf32>
      %61 = arith.truncf %60 : vector<128x1024xf32> to vector<128x1024xbf16>
      %c0_26 = arith.constant 0 : index
      %c0_27 = arith.constant 0 : index
      %62 = vector.load %arg3[%c0_26, %c0_27] : memref<1024x128xbf16, #tpu.memory_space<vmem>>, vector<1024x128xbf16>
      %cst_28 = arith.constant dense<0.000000e+00> : vector<128x128xf32>
      %63 = tpu.matmul %61, %62, %cst_28 {dimension_numbers = #tpu.dot_dimension_numbers<[1], [0], [0], [1], [0, 0, 1, 1], [], []>} : vector<128x1024xbf16>, vector<1024x128xbf16>, vector<128x128xf32> -> vector<128x128xf32>
      %64 = arith.truncf %63 : vector<128x128xf32> to vector<128x128xbf16>
      %c0_29 = arith.constant 0 : index
      %c0_30 = arith.constant 0 : index
      %65 = vector.load %arg4[%c0_29, %c0_30] : memref<128x128xbf16, #tpu.memory_space<vmem>>, vector<128x128xbf16>
      %cst_31 = arith.constant dense<0.000000e+00> : vector<128x128xf32>
      %66 = tpu.matmul %64, %65, %cst_31 {dimension_numbers = #tpu.dot_dimension_numbers<[1], [0], [0], [1], [0, 0, 1, 1], [], []>} : vector<128x128xbf16>, vector<128x128xbf16>, vector<128x128xf32> -> vector<128x128xf32>
      %c0_32 = arith.constant 0 : index
      %c0_33 = arith.constant 0 : index
      %67 = vector.load %arg5[%c0_32, %c0_33] : memref<1x128xf32, #tpu.memory_space<vmem>>, vector<1x128xf32>
      %68 = vector.broadcast %67 : vector<1x128xf32> to vector<128x128xf32>
      %69 = arith.addf %66, %68 : vector<128x128xf32>
      %70 = math.tanh %69 : vector<128x128xf32>
      %71 = arith.truncf %70 : vector<128x128xf32> to vector<128x128xbf16>
      %c0_34 = arith.constant 0 : index
      %c0_35 = arith.constant 0 : index
      %72 = vector.load %arg9[%c0_34, %c0_35] : memref<128x128xbf16, #tpu.memory_space<vmem>>, vector<128x128xbf16>
      tpu.vector_store %arg9[%c0_34, %c0_35], %71 {strides = array<i32>} : memref<128x128xbf16, #tpu.memory_space<vmem>>, vector<128x128xbf16>,
      %cst_36 = arith.constant 0xFF800000 : f32
      %73 = vector.broadcast %cst_36 : f32 to vector<128x1xf32>
      %c0_37 = arith.constant 0 : index
      %c0_38 = arith.constant 0 : index
      %74 = vector.load %arg10[%c0_37, %c0_38] : memref<128x1xf32, #tpu.memory_space<vmem>>, vector<128x1xf32>
      tpu.vector_store %arg10[%c0_37, %c0_38], %73 {strides = array<i32>} : memref<128x1xf32, #tpu.memory_space<vmem>>, vector<128x1xf32>,
      %cst_39 = arith.constant 0.000000e+00 : f32
      %75 = vector.broadcast %cst_39 : f32 to vector<128x1xf32>
      %c0_40 = arith.constant 0 : index
      %c0_41 = arith.constant 0 : index
      %76 = vector.load %arg11[%c0_40, %c0_41] : memref<128x1xf32, #tpu.memory_space<vmem>>, vector<128x1xf32>
      tpu.vector_store %arg11[%c0_40, %c0_41], %75 {strides = array<i32>} : memref<128x1xf32, #tpu.memory_space<vmem>>, vector<128x1xf32>,
    } else {
    }
    %c0 = arith.constant 0 : index
    %c0_1 = arith.constant 0 : index
    %3 = vector.load %arg9[%c0, %c0_1] : memref<128x128xbf16, #tpu.memory_space<vmem>>, vector<128x128xbf16>
    %c0_2 = arith.constant 0 : index
    %c0_3 = arith.constant 0 : index
    %4 = vector.load %arg6[%c0_2, %c0_3] : memref<128x256xbf16, #tpu.memory_space<vmem>>, vector<128x256xbf16>
    %cst = arith.constant dense<0.000000e+00> : vector<128x256xf32>
    %5 = tpu.matmul %3, %4, %cst {dimension_numbers = #tpu.dot_dimension_numbers<[1], [0], [0], [1], [0, 0, 1, 1], [], []>} : vector<128x128xbf16>, vector<128x256xbf16>, vector<128x256xf32> -> vector<128x256xf32>
    %c0_4 = arith.constant 0 : index
    %c0_5 = arith.constant 0 : index
    %6 = vector.load %arg7[%c0_4, %c0_5] : memref<1x256xf32, #tpu.memory_space<vmem>>, vector<1x256xf32>
    %7 = vector.broadcast %6 : vector<1x256xf32> to vector<128x256xf32>
    %8 = arith.addf %5, %7 : vector<128x256xf32>
    %c0_i32_6 = arith.constant 0 : i32
    %9 = arith.cmpi eq, %arg1, %c0_i32_6 : i32
    %10 = arith.extui %9 : i1 to i32
    %c0_i32_7 = arith.constant 0 : i32
    %11 = arith.cmpi ne, %10, %c0_i32_7 : i32
    scf.if %11 {
      %c0_23 = arith.constant 0 : index
      %c0_24 = arith.constant 0 : index
      %40 = vector.load %arg8[%c0_23, %c0_24] : memref<128x1024xf32, #tpu.memory_space<vmem>>, vector<128x256xf32>
      tpu.vector_store %arg8[%c0_23, %c0_24], %8 {strides = array<i32>} : memref<128x1024xf32, #tpu.memory_space<vmem>>, vector<128x256xf32>,
    } else {
    }
    %c1_i32 = arith.constant 1 : i32
    %12 = arith.cmpi eq, %arg1, %c1_i32 : i32
    %13 = arith.extui %12 : i1 to i32
    %c0_i32_8 = arith.constant 0 : i32
    %14 = arith.cmpi ne, %13, %c0_i32_8 : i32
    scf.if %14 {
      %c0_23 = arith.constant 0 : index
      %c256 = arith.constant 256 : index
      %40 = vector.load %arg8[%c0_23, %c256] : memref<128x1024xf32, #tpu.memory_space<vmem>>, vector<128x256xf32>
      tpu.vector_store %arg8[%c0_23, %c256], %8 {strides = array<i32>} : memref<128x1024xf32, #tpu.memory_space<vmem>>, vector<128x256xf32>,
    } else {
    }
    %c2_i32 = arith.constant 2 : i32
    %15 = arith.cmpi eq, %arg1, %c2_i32 : i32
    %16 = arith.extui %15 : i1 to i32
    %c0_i32_9 = arith.constant 0 : i32
    %17 = arith.cmpi ne, %16, %c0_i32_9 : i32
    scf.if %17 {
      %c0_23 = arith.constant 0 : index
      %c512 = arith.constant 512 : index
      %40 = vector.load %arg8[%c0_23, %c512] : memref<128x1024xf32, #tpu.memory_space<vmem>>, vector<128x256xf32>
      tpu.vector_store %arg8[%c0_23, %c512], %8 {strides = array<i32>} : memref<128x1024xf32, #tpu.memory_space<vmem>>, vector<128x256xf32>,
    } else {
    }
    %c3_i32 = arith.constant 3 : i32
    %18 = arith.cmpi eq, %arg1, %c3_i32 : i32
    %19 = arith.extui %18 : i1 to i32
    %c0_i32_10 = arith.constant 0 : i32
    %20 = arith.cmpi ne, %19, %c0_i32_10 : i32
    scf.if %20 {
      %c0_23 = arith.constant 0 : index
      %c768 = arith.constant 768 : index
      %40 = vector.load %arg8[%c0_23, %c768] : memref<128x1024xf32, #tpu.memory_space<vmem>>, vector<128x256xf32>
      tpu.vector_store %arg8[%c0_23, %c768], %8 {strides = array<i32>} : memref<128x1024xf32, #tpu.memory_space<vmem>>, vector<128x256xf32>,
    } else {
    }
    %c0_11 = arith.constant 0 : index
    %c0_12 = arith.constant 0 : index
    %21 = vector.load %arg10[%c0_11, %c0_12] : memref<128x1xf32, #tpu.memory_space<vmem>>, vector<128x1xf32>
    %cst_13 = arith.constant dense<0xFF800000> : vector<128xf32>
    %22 = vector.multi_reduction <maximumf>, %8, %cst_13 [1] : vector<128x256xf32> to vector<128xf32>
    %23 = vector.shape_cast %22 : vector<128xf32> to vector<128x1xf32>
    %24 = arith.maximumf %21, %23 : vector<128x1xf32>
    %c0_14 = arith.constant 0 : index
    %c0_15 = arith.constant 0 : index
    %25 = vector.load %arg11[%c0_14, %c0_15] : memref<128x1xf32, #tpu.memory_space<vmem>>, vector<128x1xf32>
    %26 = arith.subf %21, %24 : vector<128x1xf32>
    %27 = math.exp %26 : vector<128x1xf32>
    %28 = arith.mulf %25, %27 : vector<128x1xf32>
    %29 = vector.broadcast %24 : vector<128x1xf32> to vector<128x256xf32>
    %30 = arith.subf %8, %29 : vector<128x256xf32>
    %31 = math.exp %30 : vector<128x256xf32>
    %cst_16 = arith.constant dense<0.000000e+00> : vector<128xf32>
    %32 = vector.multi_reduction <add>, %31, %cst_16 [1] : vector<128x256xf32> to vector<128xf32>
    %33 = vector.shape_cast %32 : vector<128xf32> to vector<128x1xf32>
    %34 = arith.addf %28, %33 : vector<128x1xf32>
    %c0_17 = arith.constant 0 : index
    %c0_18 = arith.constant 0 : index
    %35 = vector.load %arg11[%c0_17, %c0_18] : memref<128x1xf32, #tpu.memory_space<vmem>>, vector<128x1xf32>
    tpu.vector_store %arg11[%c0_17, %c0_18], %34 {strides = array<i32>} : memref<128x1xf32, #tpu.memory_space<vmem>>, vector<128x1xf32>,
    %c0_19 = arith.constant 0 : index
    %c0_20 = arith.constant 0 : index
    %36 = vector.load %arg10[%c0_19, %c0_20] : memref<128x1xf32, #tpu.memory_space<vmem>>, vector<128x1xf32>
    tpu.vector_store %arg10[%c0_19, %c0_20], %24 {strides = array<i32>} : memref<128x1xf32, #tpu.memory_space<vmem>>, vector<128x1xf32>,
    %c3_i32_21 = arith.constant 3 : i32
    %37 = arith.cmpi eq, %arg1, %c3_i32_21 : i32
    %38 = arith.extui %37 : i1 to i32
    %c0_i32_22 = arith.constant 0 : i32
    %39 = arith.cmpi ne, %38, %c0_i32_22 : i32
    scf.if %39 {
      %c0_23 = arith.constant 0 : index
      %c0_24 = arith.constant 0 : index
      %40 = vector.load %arg10[%c0_23, %c0_24] : memref<128x1xf32, #tpu.memory_space<vmem>>, vector<128x1xf32>
      %c0_25 = arith.constant 0 : index
      %c0_26 = arith.constant 0 : index
      %41 = vector.load %arg11[%c0_25, %c0_26] : memref<128x1xf32, #tpu.memory_space<vmem>>, vector<128x1xf32>
      %42 = math.log %41 : vector<128x1xf32>
      %43 = arith.addf %40, %42 : vector<128x1xf32>
      %c0_27 = arith.constant 0 : index
      %c0_28 = arith.constant 0 : index
      %44 = vector.load %arg8[%c0_27, %c0_28] : memref<128x1024xf32, #tpu.memory_space<vmem>>, vector<128x256xf32>
      %45 = vector.broadcast %43 : vector<128x1xf32> to vector<128x256xf32>
      %46 = arith.subf %44, %45 : vector<128x256xf32>
      %c0_29 = arith.constant 0 : index
      %c0_30 = arith.constant 0 : index
      %47 = vector.load %arg8[%c0_29, %c0_30] : memref<128x1024xf32, #tpu.memory_space<vmem>>, vector<128x256xf32>
      tpu.vector_store %arg8[%c0_29, %c0_30], %46 {strides = array<i32>} : memref<128x1024xf32, #tpu.memory_space<vmem>>, vector<128x256xf32>,
      %c0_31 = arith.constant 0 : index
      %c256 = arith.constant 256 : index
      %48 = vector.load %arg8[%c0_31, %c256] : memref<128x1024xf32, #tpu.memory_space<vmem>>, vector<128x256xf32>
      %49 = vector.broadcast %43 : vector<128x1xf32> to vector<128x256xf32>
      %50 = arith.subf %48, %49 : vector<128x256xf32>
      %c0_32 = arith.constant 0 : index
      %c256_33 = arith.constant 256 : index
      %51 = vector.load %arg8[%c0_32, %c256_33] : memref<128x1024xf32, #tpu.memory_space<vmem>>, vector<128x256xf32>
      tpu.vector_store %arg8[%c0_32, %c256_33], %50 {strides = array<i32>} : memref<128x1024xf32, #tpu.memory_space<vmem>>, vector<128x256xf32>,
      %c0_34 = arith.constant 0 : index
      %c512 = arith.constant 512 : index
      %52 = vector.load %arg8[%c0_34, %c512] : memref<128x1024xf32, #tpu.memory_space<vmem>>, vector<128x256xf32>
      %53 = vector.broadcast %43 : vector<128x1xf32> to vector<128x256xf32>
      %54 = arith.subf %52, %53 : vector<128x256xf32>
      %c0_35 = arith.constant 0 : index
      %c512_36 = arith.constant 512 : index
      %55 = vector.load %arg8[%c0_35, %c512_36] : memref<128x1024xf32, #tpu.memory_space<vmem>>, vector<128x256xf32>
      tpu.vector_store %arg8[%c0_35, %c512_36], %54 {strides = array<i32>} : memref<128x1024xf32, #tpu.memory_space<vmem>>, vector<128x256xf32>,
      %c0_37 = arith.constant 0 : index
      %c768 = arith.constant 768 : index
      %56 = vector.load %arg8[%c0_37, %c768] : memref<128x1024xf32, #tpu.memory_space<vmem>>, vector<128x256xf32>
      %57 = vector.broadcast %43 : vector<128x1xf32> to vector<128x256xf32>
      %58 = arith.subf %56, %57 : vector<128x256xf32>
      %c0_38 = arith.constant 0 : index
      %c768_39 = arith.constant 768 : index
      %59 = vector.load %arg8[%c0_38, %c768_39] : memref<128x1024xf32, #tpu.memory_space<vmem>>, vector<128x256xf32>
      tpu.vector_store %arg8[%c0_38, %c768_39], %58 {strides = array<i32>} : memref<128x1024xf32, #tpu.memory_space<vmem>>, vector<128x256xf32>,
    } else {
    }
    return
  }
  func.func @transform_0(%arg0: i32, %arg1: i32) -> (i32, i32) {
    %c0_i32 = arith.constant 0 : i32
    %c0_i32_0 = arith.constant 0 : i32
    return %arg0, %c0_i32 : i32, i32
  }
  func.func @transform_1(%arg0: i32, %arg1: i32) -> (i32, i32) {
    %c0_i32 = arith.constant 0 : i32
    %c0_i32_0 = arith.constant 0 : i32
    %c0_i32_1 = arith.constant 0 : i32
    return %c0_i32, %c0_i32_0 : i32, i32
  }
  func.func @transform_2(%arg0: i32, %arg1: i32) -> (i32, i32) {
    %c0_i32 = arith.constant 0 : i32
    %c0_i32_0 = arith.constant 0 : i32
    %c0_i32_1 = arith.constant 0 : i32
    return %c0_i32, %c0_i32_0 : i32, i32
  }
  func.func @transform_3(%arg0: i32, %arg1: i32) -> (i32, i32) {
    %c0_i32 = arith.constant 0 : i32
    %c0_i32_0 = arith.constant 0 : i32
    %c0_i32_1 = arith.constant 0 : i32
    return %c0_i32, %c0_i32_0 : i32, i32
  }
  func.func @transform_4(%arg0: i32, %arg1: i32) -> (i32, i32) {
    %c0_i32 = arith.constant 0 : i32
    %c0_i32_0 = arith.constant 0 : i32
    return %c0_i32, %arg1 : i32, i32
  }
  func.func @transform_5(%arg0: i32, %arg1: i32) -> (i32, i32) {
    %c0_i32 = arith.constant 0 : i32
    %c0_i32_0 = arith.constant 0 : i32
    return %c0_i32, %arg1 : i32, i32
  }
  func.func @transform_6(%arg0: i32, %arg1: i32) -> (i32, i32) {
    %c0_i32 = arith.constant 0 : i32
    %c0_i32_0 = arith.constant 0 : i32
    return %arg0, %c0_i32 : i32, i32
  }
}

</mosaic_0001>

<llo_original>
// kernel: tpu_custom_call.1
$region0: #{tpu_custom_call.1}
  #allocation0 [shape = 'u32[]', space=smem, size = 0x4, offset = 0x4, fixed_abs, tag = 'smem constant byte address 0x4 - core index']
  #allocation1 [shape = 'u32[144,128]{1,0:T(1,128)}', space=vmem, size = 0x12000, scoped, tag = 'internal scratch']
  #allocation2 [shape = 'bf16[128,128]{1,0:T(16,128)(2,1)}', space=vmem, size = 0x8000, scoped, tag = 'scratch operand']
  #allocation3 [shape = 'f32[128,1]{1,0:T(8,128)}', space=vmem, size = 0x10000, scoped, tag = 'scratch operand']
  #allocation4 [shape = 'f32[128,1]{1,0:T(8,128)}', space=vmem, size = 0x10000, scoped, tag = 'scratch operand']
  %s0 = inlined_call_operand.vmem [shape: s32[256,3], index: 0, kind: input, shape index: {}]
  %s1 = inlined_call_operand.hbm [shape: bf16[1024,128], index: 1, kind: input, shape index: {}]
  %s2 = inlined_call_operand.vmem [shape: bf16[128,128], index: 2, kind: input, shape index: {}]
  %s3 = inlined_call_operand.vmem [shape: f32[1,128], index: 3, kind: input, shape index: {}]
  %s4 = inlined_call_operand.hbm [shape: bf16[128,1024], index: 4, kind: input, shape index: {}]
  %s5 = inlined_call_operand.vmem [shape: f32[1,1024], index: 5, kind: input, shape index: {}]
  %s6 = inlined_call_operand.hbm [shape: f32[256,1024], index: 6, kind: output, shape index: {}]
  %s7 = sld [smem:[#allocation0]]
  $region89: #{tpu_custom_call.1} parent=0
    _
  %s9 = ssub.s32 1, %s7
  %s10 = scalar_select 0, %s9, %s7
  $region1: #{tpu_custom_call.1} parent=0
    #allocation5 [shape = 'u8[262144]{0}', space=vmem, size = 0x40000, scoped, tag = 'input window, operand 1, single buffered']
    #allocation6 [shape = 's32[2]{0}', space=sflag, size = 0x8, scoped, tag = 'scoped memory for tpu_custom_call.1']
    #allocation7 [shape = 's32[2]{0}', space=sflag, size = 0x8, scoped, tag = 'scoped memory for tpu_custom_call.1']
    #allocation8 [shape = 'u8[131072]{0}', space=vmem, size = 0x20000, scoped, tag = 'input window, operand 4']
    #allocation9 [shape = 's32[2]{0}', space=sflag, size = 0x8, scoped, tag = 'scoped memory for tpu_custom_call.1']
    #allocation10 [shape = 'u8[1048576]{0}', space=vmem, size = 0x100000, scoped, tag = 'output window, operand 0']
    %11 = vsyncpa [#allocation6], 0
    %12 = vsyncpa [#allocation9], 0
    %s13 = scalar_lea.sflag [#allocation9], 1
    %14 = vsyncpa %s13, 0
    %15 = vsyncpa [#allocation7], 0
    %s16 = scalar_lea.sflag [#allocation7], 1
    %17 = vsyncpa %s16, 0
    loop: start=0, step=1, limit=10
    $region2: #{tpu_custom_call.1} parent=1 // loop_pre_header
      _
    $region3: #{tpu_custom_call.1} parent=1 // loop_header
      %s19 = sphi 0, %s23
      %p20 = scmp.ge.s32.totalorder %s19, 10
      %s26 = sphi 0, %s38
      %s27 = sphi 0, %s34
      %s28 = sphi 0, %s26
      %s29 = sphi 0, %s27
      %s30 = sphi 0, %s28
      %s31 = sphi 0, %s29
      %s41 = sphi 0, %s43
      %s44 = sphi 0, %s41
      %s45 = sphi 0, %s44
      %s61 = sphi 0, %s45
      %s65 = sphi 0, %s65
      %s67 = sphi 0, %s65
      %s68 = sphi 0, %s67
      %s82 = sphi 0, %s68
      %s86 = sphi 0, %s86
      %s88 = sphi 0, %s86
      %s89 = sphi 0, %s88
      %s103 = sphi 0, %s89
      %s107 = sphi 0, %s107
      %s109 = sphi 0, %s107
      %s110 = sphi 0, %s109
      %s124 = sphi 0, %s110
      %s130 = sphi 0, %s132
      %s133 = sphi 0, %s130
      %s134 = sphi 0, %s133
      %s150 = sphi 0, %s134
      %s156 = sphi 0, %s158
      %s159 = sphi 0, %s156
      %s160 = sphi 0, %s159
      %s176 = sphi 0, %s160
      %s182 = sphi 0, %s184
      %s185 = sphi 0, %s182
      %s186 = sphi 0, %s185
      %s202 = sphi 0, %s186
    $region4: #{tpu_custom_call.1} parent=1 // loop_header_branch
      %22 = sbr.rel (%p20) target = $region8
    $region5: #{tpu_custom_call.1} parent=1 // loop_body
      %s24 = ssub.s32 %s19, 1
      %s25 = ssub.s32 %s19, 2
      %s32 = sadd.s32 1, %s27
      %p33 = scmp.ge.s32.totalorder %s32, 4
      %s34 = scalar_select %p33, 0, %s32
      %s35 = sadd.s32 1, %s26
      %s36 = scalar_select %p33, %s35, %s26
      %p37 = scmp.ge.s32.totalorder %s36, 2
      %s38 = scalar_select %p37, 0, %s36
      %s39 = ssub.s32 %s26, %s38
      %p40 = scmp.eq.s32.totalorder %s39, 0
      %s42 = sadd.s32 %s41, 1
      %s43 = scalar_select %p40, %s41, %s42
      %p46 = pneg %p40
      %p47 = scmp.eq.s32.totalorder %s19, 7
      %p48 = por %p46, %p47
      %p49 = scmp.ne.s32.totalorder %s41, %s44
      %p50 = scmp.eq.s32.totalorder %s19, 0
      %p51 = por %p49, %p50
      %p52 = scmp.ne.s32.totalorder %s41, %s44
      %p53 = scmp.eq.s32.totalorder %s24, 7
      %p54 = por %p52, %p53
      %p55 = scmp.ne.s32.totalorder %s44, %s45
      %p56 = scmp.eq.s32.totalorder %s24, 0
      %p57 = por %p55, %p56
      %p58 = scmp.ne.s32.totalorder %s44, %s45
      %p59 = scmp.eq.s32.totalorder %s25, 7
      %p60 = por %p58, %p59
      %p62 = scmp.ne.s32.totalorder %s45, %s61
      %p63 = scmp.eq.s32.totalorder %s25, 0
      %p64 = por %p62, %p63
      %s66 = sadd.s32 %s65, 1
      %p69 = scmp.eq.s32.totalorder %s19, 7
      %p70 = scmp.ne.s32.totalorder %s65, %s67
      %p71 = scmp.eq.s32.totalorder %s19, 0
      %p72 = por %p70, %p71
      %p73 = scmp.ne.s32.totalorder %s65, %s67
      %p74 = scmp.eq.s32.totalorder %s24, 7
      %p75 = por %p73, %p74
      %p76 = scmp.ne.s32.totalorder %s67, %s68
      %p77 = scmp.eq.s32.totalorder %s24, 0
      %p78 = por %p76, %p77
      %p79 = scmp.ne.s32.totalorder %s67, %s68
      %p80 = scmp.eq.s32.totalorder %s25, 7
      %p81 = por %p79, %p80
      %p83 = scmp.ne.s32.totalorder %s68, %s82
      %p84 = scmp.eq.s32.totalorder %s25, 0
      %p85 = por %p83, %p84
      %s87 = sadd.s32 %s86, 1
      %p90 = scmp.eq.s32.totalorder %s19, 7
      %p91 = scmp.ne.s32.totalorder %s86, %s88
      %p92 = scmp.eq.s32.totalorder %s19, 0
      %p93 = por %p91, %p92
      %p94 = scmp.ne.s32.totalorder %s86, %s88
      %p95 = scmp.eq.s32.totalorder %s24, 7
      %p96 = por %p94, %p95
      %p97 = scmp.ne.s32.totalorder %s88, %s89
      %p98 = scmp.eq.s32.totalorder %s24, 0
      %p99 = por %p97, %p98
      %p100 = scmp.ne.s32.totalorder %s88, %s89
      %p101 = scmp.eq.s32.totalorder %s25, 7
      %p102 = por %p100, %p101
      %p104 = scmp.ne.s32.totalorder %s89, %s103
      %p105 = scmp.eq.s32.totalorder %s25, 0
      %p106 = por %p104, %p105
      %s108 = sadd.s32 %s107, 1
      %p111 = scmp.eq.s32.totalorder %s19, 7
      %p112 = scmp.ne.s32.totalorder %s107, %s109
      %p113 = scmp.eq.s32.totalorder %s19, 0
      %p114 = por %p112, %p113
      %p115 = scmp.ne.s32.totalorder %s107, %s109
      %p116 = scmp.eq.s32.totalorder %s24, 7
      %p117 = por %p115, %p116
      %p118 = scmp.ne.s32.totalorder %s109, %s110
      %p119 = scmp.eq.s32.totalorder %s24, 0
      %p120 = por %p118, %p119
      %p121 = scmp.ne.s32.totalorder %s109, %s110
      %p122 = scmp.eq.s32.totalorder %s25, 7
      %p123 = por %p121, %p122
      %p125 = scmp.ne.s32.totalorder %s110, %s124
      %p126 = scmp.eq.s32.totalorder %s25, 0
      %p127 = por %p125, %p126
      %s128 = ssub.s32 %s27, %s34
      %p129 = scmp.eq.s32.totalorder %s128, 0
      %s131 = sadd.s32 %s130, 1
      %s132 = scalar_select %p129, %s130, %s131
      %p135 = pneg %p129
      %p136 = scmp.eq.s32.totalorder %s19, 7
      %p137 = por %p135, %p136
      %p138 = scmp.ne.s32.totalorder %s130, %s133
      %p139 = scmp.eq.s32.totalorder %s19, 0
      %p140 = por %p138, %p139
      %p141 = scmp.ne.s32.totalorder %s130, %s133
      %p142 = scmp.eq.s32.totalorder %s24, 7
      %p143 = por %p141, %p142
      %p144 = scmp.ne.s32.totalorder %s133, %s134
      %p145 = scmp.eq.s32.totalorder %s24, 0
      %p146 = por %p144, %p145
      %p147 = scmp.ne.s32.totalorder %s133, %s134
      %p148 = scmp.eq.s32.totalorder %s25, 7
      %p149 = por %p147, %p148
      %p151 = scmp.ne.s32.totalorder %s134, %s150
      %p152 = scmp.eq.s32.totalorder %s25, 0
      %p153 = por %p151, %p152
      %s154 = ssub.s32 %s27, %s34
      %p155 = scmp.eq.s32.totalorder %s154, 0
      %s157 = sadd.s32 %s156, 1
      %s158 = scalar_select %p155, %s156, %s157
      %p161 = pneg %p155
      %p162 = scmp.eq.s32.totalorder %s19, 7
      %p163 = por %p161, %p162
      %p164 = scmp.ne.s32.totalorder %s156, %s159
      %p165 = scmp.eq.s32.totalorder %s19, 0
      %p166 = por %p164, %p165
      %p167 = scmp.ne.s32.totalorder %s156, %s159
      %p168 = scmp.eq.s32.totalorder %s24, 7
      %p169 = por %p167, %p168
      %p170 = scmp.ne.s32.totalorder %s159, %s160
      %p171 = scmp.eq.s32.totalorder %s24, 0
      %p172 = por %p170, %p171
      %p173 = scmp.ne.s32.totalorder %s159, %s160
      %p174 = scmp.eq.s32.totalorder %s25, 7
      %p175 = por %p173, %p174
      %p177 = scmp.ne.s32.totalorder %s160, %s176
      %p178 = scmp.eq.s32.totalorder %s25, 0
      %p179 = por %p177, %p178
      %s180 = ssub.s32 %s26, %s38
      %p181 = scmp.eq.s32.totalorder %s180, 0
      %s183 = sadd.s32 %s182, 1
      %s184 = scalar_select %p181, %s182, %s183
      %p187 = pneg %p181
      %p188 = scmp.eq.s32.totalorder %s19, 7
      %p189 = por %p187, %p188
      %p190 = scmp.ne.s32.totalorder %s182, %s185
      %p191 = scmp.eq.s32.totalorder %s19, 0
      %p192 = por %p190, %p191
      %p193 = scmp.ne.s32.totalorder %s182, %s185
      %p194 = scmp.eq.s32.totalorder %s24, 7
      %p195 = por %p193, %p194
      %p196 = scmp.ne.s32.totalorder %s185, %s186
      %p197 = scmp.eq.s32.totalorder %s24, 0
      %p198 = por %p196, %p197
      %p199 = scmp.ne.s32.totalorder %s185, %s186
      %p200 = scmp.eq.s32.totalorder %s25, 7
      %p201 = por %p199, %p200
      %p203 = scmp.ne.s32.totalorder %s186, %s202
      %p204 = scmp.eq.s32.totalorder %s25, 0
      %p205 = por %p203, %p204
      %p206 = scmp.le.s32.totalorder 1, %s19
      %p207 = scmp.lt.s32.totalorder %s19, 9
      %p208 = pnand %p206, %p207
      %p209 = pneg %p208
      // Predicated region
      $region9: #{tpu_custom_call.1} parent=5 // pred_check
        _
      $region10: #{tpu_custom_call.1} parent=5 // pred_check_branch
        %211 = sbr.rel (%p208) target = $region12
      $region11: #{tpu_custom_call.1} parent=5 // pred_region
        %s212 = ssub.s32 %s19, 1
        // Predicated region
        $region13: #{tpu_custom_call.1} parent=11 // pred_check
          %p213 = pneg %p78
        $region14: #{tpu_custom_call.1} parent=11 // pred_check_branch
          %215 = sbr.rel (%p213) target = $region16
        $region15: #{tpu_custom_call.1} parent=11 // pred_region
          %s217 = ssub.s32 8192, 8192
          %218 = vsyncadd [#allocation6], %s217
          %s219 = sshll.u32 [#allocation5], 4
          %s220 = int_to_ptr.vmem [resolvable:$true] %s219
          %225 = dma.hbm_to_vmem [thread:$0]  %s1, 8192, %s220, [#allocation6], 64, 64, 4
        $region16: #{tpu_custom_call.1} parent=11 // pred_fallthru
          _
        // Predicated region
        $region17: #{tpu_custom_call.1} parent=11 // pred_check
          %p226 = pneg %p99
        $region18: #{tpu_custom_call.1} parent=11 // pred_check_branch
          %228 = sbr.rel (%p226) target = $region20
        $region19: #{tpu_custom_call.1} parent=11 // pred_region
          _
        $region20: #{tpu_custom_call.1} parent=11 // pred_fallthru
          _
        // Predicated region
        $region21: #{tpu_custom_call.1} parent=11 // pred_check
          %p229 = pneg %p120
        $region22: #{tpu_custom_call.1} parent=11 // pred_check_branch
          %231 = sbr.rel (%p229) target = $region24
        $region23: #{tpu_custom_call.1} parent=11 // pred_region
          _
        $region24: #{tpu_custom_call.1} parent=11 // pred_fallthru
          _
      $region12: #{tpu_custom_call.1} parent=5 // pred_fallthru
        _
      %p232 = scmp.lt.s32.totalorder %s19, 8
      // Predicated region
      $region25: #{tpu_custom_call.1} parent=5 // pred_check
        %p233 = pneg %p232
      $region26: #{tpu_custom_call.1} parent=5 // pred_check_branch
        %235 = sbr.rel (%p233) target = $region28
      $region27: #{tpu_custom_call.1} parent=5 // pred_region
        // Predicated region
        $region29: #{tpu_custom_call.1} parent=27 // pred_check
          %p236 = pneg %p51
        $region30: #{tpu_custom_call.1} parent=27 // pred_check_branch
          %238 = sbr.rel (%p236) target = $region32
        $region31: #{tpu_custom_call.1} parent=27 // pred_region
          %s239 = smul.u32 16, %s26
          %p240 = scmp.lt.s32.totalorder %s239, 31
          %s241 = scalar_select %p240, %s239, 31
          %s242 = smul.addr %s241, 8
          %s243 = scalar_lea.vmem %s0, %s242
          %s244 = smul.u32 16, %s26
        $region32: #{tpu_custom_call.1} parent=27 // pred_fallthru
          _
        // Predicated region
        $region33: #{tpu_custom_call.1} parent=27 // pred_check
          %p245 = pneg %p140
        $region34: #{tpu_custom_call.1} parent=27 // pred_check_branch
          %247 = sbr.rel (%p245) target = $region36
        $region35: #{tpu_custom_call.1} parent=27 // pred_region
          %s248 = sand.u32 %s130, 1
          %s249 = scalar_lea.sflag [#allocation9], %s248
          %s250 = sand.u32 %s130, 1
          %s251 = smul.addr %s250, 128
          %s252 = scalar_lea.vmem [#allocation8], %s251
          %s253 = smul.u32 2, %s27
          %s255 = ssub.s32 2048, 2048
          %256 = vsyncadd %s249, %s255
          %s257 = smul.addr %s253, 64
          %s258 = scalar_lea.hbm %s4, %s257
          %s259 = sshll.u32 %s252, 4
          %s260 = int_to_ptr.vmem [resolvable:$true] %s259
          %265 = dma.hbm_to_vmem [thread:$0]  %s258, 2048, %s260, %s249, 512, 128, 8
        $region36: #{tpu_custom_call.1} parent=27 // pred_fallthru
          _
        // Predicated region
        $region37: #{tpu_custom_call.1} parent=27 // pred_check
          %p266 = pneg %p166
        $region38: #{tpu_custom_call.1} parent=27 // pred_check_branch
          %268 = sbr.rel (%p266) target = $region40
        $region39: #{tpu_custom_call.1} parent=27 // pred_region
          %s269 = smul.u32 2, %s27
          %p270 = scmp.lt.s32.totalorder %s269, 7
          %s271 = scalar_select %p270, %s269, 7
          %s272 = scalar_lea.vmem %s5, %s271
          %s273 = smul.u32 2, %s27
        $region40: #{tpu_custom_call.1} parent=27 // pred_fallthru
          _
      $region28: #{tpu_custom_call.1} parent=5 // pred_fallthru
        _
      %p274 = scmp.le.s32.totalorder 1, %s19
      %p275 = scmp.lt.s32.totalorder %s19, 9
      %p276 = pnand %p274, %p275
      %p277 = pneg %p276
      // Predicated region
      $region41: #{tpu_custom_call.1} parent=5 // pred_check
        _
      $region42: #{tpu_custom_call.1} parent=5 // pred_check_branch
        %279 = sbr.rel (%p276) target = $region44
      $region43: #{tpu_custom_call.1} parent=5 // pred_region
        %s280 = ssub.s32 %s19, 1
        // Predicated region
        $region45: #{tpu_custom_call.1} parent=43 // pred_check
          %p281 = pneg %p78
        $region46: #{tpu_custom_call.1} parent=43 // pred_check_branch
          %283 = sbr.rel (%p281) target = $region48
        $region47: #{tpu_custom_call.1} parent=43 // pred_region
          %284 = dma.done [#allocation6], 8192
        $region48: #{tpu_custom_call.1} parent=43 // pred_fallthru
          _
        %s285 = sand.u32 %s133, 1
        %s286 = scalar_lea.sflag [#allocation9], %s285
        %s287 = sand.u32 %s133, 1
        %s288 = smul.addr %s287, 128
        %s289 = scalar_lea.vmem [#allocation8], %s288
        // Predicated region
        $region49: #{tpu_custom_call.1} parent=43 // pred_check
          %p290 = pneg %p146
        $region50: #{tpu_custom_call.1} parent=43 // pred_check_branch
          %292 = sbr.rel (%p290) target = $region52
        $region51: #{tpu_custom_call.1} parent=43 // pred_region
          %293 = dma.done %s286, 2048
        $region52: #{tpu_custom_call.1} parent=43 // pred_fallthru
          _
        %s294 = smul.u32 16, %s28
        %p295 = scmp.lt.s32.totalorder %s294, 31
        %s296 = scalar_select %p295, %s294, 31
        %s297 = smul.addr %s296, 8
        %s298 = scalar_lea.vmem %s0, %s297
        %p299 = pneg %p57
        %p300 = pneg %p54
        %p301 = pneg %p78
        %p302 = pneg %p75
        %p303 = pneg %p99
        %p304 = pneg %p96
        %p305 = pneg %p120
        %p306 = pneg %p117
        %s307 = sand.u32 %s133, 1
        %s308 = scalar_lea.sflag [#allocation9], %s307
        %s309 = sand.u32 %s133, 1
        %s310 = smul.addr %s309, 128
        %s311 = scalar_lea.vmem [#allocation8], %s310
        %p312 = pneg %p146
        %p313 = pneg %p143
        %s314 = smul.u32 2, %s29
        %p315 = scmp.lt.s32.totalorder %s314, 7
        %s316 = scalar_select %p315, %s314, 7
        %s317 = scalar_lea.vmem %s5, %s316
        %p318 = pneg %p172
        %p319 = pneg %p169
        %p320 = pneg %p198
        %p321 = pneg %p195
        %s322 = sand.u32 %s185, 1
        %s323 = scalar_lea.sflag [#allocation7], %s322
        %s324 = sand.u32 %s185, 1
        %s325 = smul.addr %s324, 1024
        %s326 = scalar_lea.vmem [#allocation10], %s325
        %s327 = smul.u32 16, %s28
        %p328 = scmp.lt.s32.totalorder %s327, 31
        %s329 = scalar_select %p328, %s327, 31
        %s330 = smul.addr %s329, 8
        %s331 = scalar_lea.vmem %s0, %s330
        %s332 = smul.u32 16, %s28
        %s333 = smul.u32 2, %s29
        %s334 = smul.u32 2, %s29
        %p335 = scmp.lt.s32.totalorder %s334, 7
        %s336 = scalar_select %p335, %s334, 7
        %s337 = scalar_lea.vmem %s5, %s336
        %s338 = smul.u32 2, %s29
        %s339 = smul.u32 16, %s28
        %p341 = scmp.eq.s32.totalorder %s29, 0
        // Predicated region
        $region53: #{tpu_custom_call.1} parent=43 // pred_check
          %p342 = pneg %p341
        $region54: #{tpu_custom_call.1} parent=43 // pred_check_branch
          %344 = sbr.rel (%p342) target = $region56
        $region55: #{tpu_custom_call.1} parent=43 // pred_region
          %v345 = vld [vmem:[%s331] sm:$0xff]
          %v346 = vld [vmem:[%s331 + $0x8] sm:$0xff]
          %v347 = vld [vmem:[%s331 + $0x10] sm:$0xff]
          %v348 = vld [vmem:[%s331 + $0x18] sm:$0xff]
          %v349 = vld [vmem:[%s331 + $0x20] sm:$0xff]
          %v350 = vld [vmem:[%s331 + $0x28] sm:$0xff]
          %v351 = vld [vmem:[%s331 + $0x30] sm:$0xff]
          %v352 = vld [vmem:[%s331 + $0x38] sm:$0xff]
          %v353 = vld [vmem:[%s331 + $0x40] sm:$0xff]
          %v354 = vld [vmem:[%s331 + $0x48] sm:$0xff]
          %v355 = vld [vmem:[%s331 + $0x50] sm:$0xff]
          %v356 = vld [vmem:[%s331 + $0x58] sm:$0xff]
          %v357 = vld [vmem:[%s331 + $0x60] sm:$0xff]
          %v358 = vld [vmem:[%s331 + $0x68] sm:$0xff]
          %v359 = vld [vmem:[%s331 + $0x70] sm:$0xff]
          %v360 = vld [vmem:[%s331 + $0x78] sm:$0xff]
          %v361 = vlaneseq
          %v362 = vand.u32 %v361, 127
          %v363 = vadd.s32 %v362, 128
          %v364 = vadd.s32 %v362, 256
          %v365 = vadd.s32 %v362, 384
          %v366 = vadd.s32 %v362, 512
          %v367 = vadd.s32 %v362, 640
          %v368 = vadd.s32 %v362, 768
          %v369 = vadd.s32 %v362, 896
          %370 = vset.pattern.permute.xlu0 0
          %371 = vperm.xlu0 %370, %v345
          %v372 = vpop.permute.xlu0 %371
          %373 = vset.pattern.permute.xlu0 0
          %374 = vperm.xlu0 %373, %v346
          %v375 = vpop.permute.xlu0 %374
          %376 = vset.pattern.permute.xlu0 0
          %377 = vperm.xlu0 %376, %v347
          %v378 = vpop.permute.xlu0 %377
          %379 = vset.pattern.permute.xlu0 0
          %380 = vperm.xlu0 %379, %v348
          %v381 = vpop.permute.xlu0 %380
          %382 = vset.pattern.permute.xlu0 0
          %383 = vperm.xlu0 %382, %v349
          %v384 = vpop.permute.xlu0 %383
          %385 = vset.pattern.permute.xlu0 0
          %386 = vperm.xlu0 %385, %v350
          %v387 = vpop.permute.xlu0 %386
          %388 = vset.pattern.permute.xlu0 0
          %389 = vperm.xlu0 %388, %v351
          %v390 = vpop.permute.xlu0 %389
          %391 = vset.pattern.permute.xlu0 0
          %392 = vperm.xlu0 %391, %v352
          %v393 = vpop.permute.xlu0 %392
          %394 = vset.pattern.permute.xlu0 0
          %395 = vperm.xlu0 %394, %v353
          %v396 = vpop.permute.xlu0 %395
          %397 = vset.pattern.permute.xlu0 0
          %398 = vperm.xlu0 %397, %v354
          %v399 = vpop.permute.xlu0 %398
          %400 = vset.pattern.permute.xlu0 0
          %401 = vperm.xlu0 %400, %v355
          %v402 = vpop.permute.xlu0 %401
          %403 = vset.pattern.permute.xlu0 0
          %404 = vperm.xlu0 %403, %v356
          %v405 = vpop.permute.xlu0 %404
          %406 = vset.pattern.permute.xlu0 0
          %407 = vperm.xlu0 %406, %v357
          %v408 = vpop.permute.xlu0 %407
          %409 = vset.pattern.permute.xlu0 0
          %410 = vperm.xlu0 %409, %v358
          %v411 = vpop.permute.xlu0 %410
          %412 = vset.pattern.permute.xlu0 0
          %413 = vperm.xlu0 %412, %v359
          %v414 = vpop.permute.xlu0 %413
          %415 = vset.pattern.permute.xlu0 0
          %416 = vperm.xlu0 %415, %v360
          %v417 = vpop.permute.xlu0 %416
          %vm418 = vcmp.eq.s32.totalorder %v362, %v372
          %vm419 = vcmp.eq.s32.totalorder %v363, %v372
          %vm420 = vcmp.eq.s32.totalorder %v364, %v372
          %vm421 = vcmp.eq.s32.totalorder %v365, %v372
          %vm422 = vcmp.eq.s32.totalorder %v366, %v372
          %vm423 = vcmp.eq.s32.totalorder %v367, %v372
          %vm424 = vcmp.eq.s32.totalorder %v368, %v372
          %vm425 = vcmp.eq.s32.totalorder %v369, %v372
          %vm426 = vcmp.eq.s32.totalorder %v362, %v375
          %vm427 = vcmp.eq.s32.totalorder %v363, %v375
          %vm428 = vcmp.eq.s32.totalorder %v364, %v375
          %vm429 = vcmp.eq.s32.totalorder %v365, %v375
          %vm430 = vcmp.eq.s32.totalorder %v366, %v375
          %vm431 = vcmp.eq.s32.totalorder %v367, %v375
          %vm432 = vcmp.eq.s32.totalorder %v368, %v375
          %vm433 = vcmp.eq.s32.totalorder %v369, %v375
          %vm434 = vcmp.eq.s32.totalorder %v362, %v378
          %vm435 = vcmp.eq.s32.totalorder %v363, %v378
          %vm436 = vcmp.eq.s32.totalorder %v364, %v378
          %vm437 = vcmp.eq.s32.totalorder %v365, %v378
          %vm438 = vcmp.eq.s32.totalorder %v366, %v378
          %vm439 = vcmp.eq.s32.totalorder %v367, %v378
          %vm440 = vcmp.eq.s32.totalorder %v368, %v378
          %vm441 = vcmp.eq.s32.totalorder %v369, %v378
          %vm442 = vcmp.eq.s32.totalorder %v362, %v381
          %vm443 = vcmp.eq.s32.totalorder %v363, %v381
          %vm444 = vcmp.eq.s32.totalorder %v364, %v381
          %vm445 = vcmp.eq.s32.totalorder %v365, %v381
          %vm446 = vcmp.eq.s32.totalorder %v366, %v381
          %vm447 = vcmp.eq.s32.totalorder %v367, %v381
          %vm448 = vcmp.eq.s32.totalorder %v368, %v381
          %vm449 = vcmp.eq.s32.totalorder %v369, %v381
          %vm450 = vcmp.eq.s32.totalorder %v362, %v384
          %vm451 = vcmp.eq.s32.totalorder %v363, %v384
          %vm452 = vcmp.eq.s32.totalorder %v364, %v384
          %vm453 = vcmp.eq.s32.totalorder %v365, %v384
          %vm454 = vcmp.eq.s32.totalorder %v366, %v384
          %vm455 = vcmp.eq.s32.totalorder %v367, %v384
          %vm456 = vcmp.eq.s32.totalorder %v368, %v384
          %vm457 = vcmp.eq.s32.totalorder %v369, %v384
          %vm458 = vcmp.eq.s32.totalorder %v362, %v387
          %vm459 = vcmp.eq.s32.totalorder %v363, %v387
          %vm460 = vcmp.eq.s32.totalorder %v364, %v387
          %vm461 = vcmp.eq.s32.totalorder %v365, %v387
          %vm462 = vcmp.eq.s32.totalorder %v366, %v387
          %vm463 = vcmp.eq.s32.totalorder %v367, %v387
          %vm464 = vcmp.eq.s32.totalorder %v368, %v387
          %vm465 = vcmp.eq.s32.totalorder %v369, %v387
          %vm466 = vcmp.eq.s32.totalorder %v362, %v390
          %vm467 = vcmp.eq.s32.totalorder %v363, %v390
          %vm468 = vcmp.eq.s32.totalorder %v364, %v390
          %vm469 = vcmp.eq.s32.totalorder %v365, %v390
          %vm470 = vcmp.eq.s32.totalorder %v366, %v390
          %vm471 = vcmp.eq.s32.totalorder %v367, %v390
          %vm472 = vcmp.eq.s32.totalorder %v368, %v390
          %vm473 = vcmp.eq.s32.totalorder %v369, %v390
          %vm474 = vcmp.eq.s32.totalorder %v362, %v393
          %vm475 = vcmp.eq.s32.totalorder %v363, %v393
          %vm476 = vcmp.eq.s32.totalorder %v364, %v393
          %vm477 = vcmp.eq.s32.totalorder %v365, %v393
          %vm478 = vcmp.eq.s32.totalorder %v366, %v393
          %vm479 = vcmp.eq.s32.totalorder %v367, %v393
          %vm480 = vcmp.eq.s32.totalorder %v368, %v393
          %vm481 = vcmp.eq.s32.totalorder %v369, %v393
          %vm482 = vcmp.eq.s32.totalorder %v362, %v396
          %vm483 = vcmp.eq.s32.totalorder %v363, %v396
          %vm484 = vcmp.eq.s32.totalorder %v364, %v396
          %vm485 = vcmp.eq.s32.totalorder %v365, %v396
          %vm486 = vcmp.eq.s32.totalorder %v366, %v396
          %vm487 = vcmp.eq.s32.totalorder %v367, %v396
          %vm488 = vcmp.eq.s32.totalorder %v368, %v396
          %vm489 = vcmp.eq.s32.totalorder %v369, %v396
          %vm490 = vcmp.eq.s32.totalorder %v362, %v399
          %vm491 = vcmp.eq.s32.totalorder %v363, %v399
          %vm492 = vcmp.eq.s32.totalorder %v364, %v399
          %vm493 = vcmp.eq.s32.totalorder %v365, %v399
          %vm494 = vcmp.eq.s32.totalorder %v366, %v399
          %vm495 = vcmp.eq.s32.totalorder %v367, %v399
          %vm496 = vcmp.eq.s32.totalorder %v368, %v399
          %vm497 = vcmp.eq.s32.totalorder %v369, %v399
          %vm498 = vcmp.eq.s32.totalorder %v362, %v402
          %vm499 = vcmp.eq.s32.totalorder %v363, %v402
          %vm500 = vcmp.eq.s32.totalorder %v364, %v402
          %vm501 = vcmp.eq.s32.totalorder %v365, %v402
          %vm502 = vcmp.eq.s32.totalorder %v366, %v402
          %vm503 = vcmp.eq.s32.totalorder %v367, %v402
          %vm504 = vcmp.eq.s32.totalorder %v368, %v402
          %vm505 = vcmp.eq.s32.totalorder %v369, %v402
          %vm506 = vcmp.eq.s32.totalorder %v362, %v405
          %vm507 = vcmp.eq.s32.totalorder %v363, %v405
          %vm508 = vcmp.eq.s32.totalorder %v364, %v405
          %vm509 = vcmp.eq.s32.totalorder %v365, %v405
          %vm510 = vcmp.eq.s32.totalorder %v366, %v405
          %vm511 = vcmp.eq.s32.totalorder %v367, %v405
          %vm512 = vcmp.eq.s32.totalorder %v368, %v405
          %vm513 = vcmp.eq.s32.totalorder %v369, %v405
          %vm514 = vcmp.eq.s32.totalorder %v362, %v408
          %vm515 = vcmp.eq.s32.totalorder %v363, %v408
          %vm516 = vcmp.eq.s32.totalorder %v364, %v408
          %vm517 = vcmp.eq.s32.totalorder %v365, %v408
          %vm518 = vcmp.eq.s32.totalorder %v366, %v408
          %vm519 = vcmp.eq.s32.totalorder %v367, %v408
          %vm520 = vcmp.eq.s32.totalorder %v368, %v408
          %vm521 = vcmp.eq.s32.totalorder %v369, %v408
          %vm522 = vcmp.eq.s32.totalorder %v362, %v411
          %vm523 = vcmp.eq.s32.totalorder %v363, %v411
          %vm524 = vcmp.eq.s32.totalorder %v364, %v411
          %vm525 = vcmp.eq.s32.totalorder %v365, %v411
          %vm526 = vcmp.eq.s32.totalorder %v366, %v411
          %vm527 = vcmp.eq.s32.totalorder %v367, %v411
          %vm528 = vcmp.eq.s32.totalorder %v368, %v411
          %vm529 = vcmp.eq.s32.totalorder %v369, %v411
          %vm530 = vcmp.eq.s32.totalorder %v362, %v414
          %vm531 = vcmp.eq.s32.totalorder %v363, %v414
          %vm532 = vcmp.eq.s32.totalorder %v364, %v414
          %vm533 = vcmp.eq.s32.totalorder %v365, %v414
          %vm534 = vcmp.eq.s32.totalorder %v366, %v414
          %vm535 = vcmp.eq.s32.totalorder %v367, %v414
          %vm536 = vcmp.eq.s32.totalorder %v368, %v414
          %vm537 = vcmp.eq.s32.totalorder %v369, %v414
          %vm538 = vcmp.eq.s32.totalorder %v362, %v417
          %vm539 = vcmp.eq.s32.totalorder %v363, %v417
          %vm540 = vcmp.eq.s32.totalorder %v364, %v417
          %vm541 = vcmp.eq.s32.totalorder %v365, %v417
          %vm542 = vcmp.eq.s32.totalorder %v366, %v417
          %vm543 = vcmp.eq.s32.totalorder %v367, %v417
          %vm544 = vcmp.eq.s32.totalorder %v368, %v417
          %vm545 = vcmp.eq.s32.totalorder %v369, %v417
          %v546 = vsel %vm418, 1, 0
          %v547 = vsel %vm419, 1, 0
          %v548 = vsel %vm420, 1, 0
          %v549 = vsel %vm421, 1, 0
          %v550 = vsel %vm422, 1, 0
          %v551 = vsel %vm423, 1, 0
          %v552 = vsel %vm424, 1, 0
          %v553 = vsel %vm425, 1, 0
          %v554 = vsel %vm426, 1, 0
          %v555 = vsel %vm427, 1, 0
          %v556 = vsel %vm428, 1, 0
          %v557 = vsel %vm429, 1, 0
          %v558 = vsel %vm430, 1, 0
          %v559 = vsel %vm431, 1, 0
          %v560 = vsel %vm432, 1, 0
          %v561 = vsel %vm433, 1, 0
          %v562 = vsel %vm434, 1, 0
          %v563 = vsel %vm435, 1, 0
          %v564 = vsel %vm436, 1, 0
          %v565 = vsel %vm437, 1, 0
          %v566 = vsel %vm438, 1, 0
          %v567 = vsel %vm439, 1, 0
          %v568 = vsel %vm440, 1, 0
          %v569 = vsel %vm441, 1, 0
          %v570 = vsel %vm442, 1, 0
          %v571 = vsel %vm443, 1, 0
          %v572 = vsel %vm444, 1, 0
          %v573 = vsel %vm445, 1, 0
          %v574 = vsel %vm446, 1, 0
          %v575 = vsel %vm447, 1, 0
          %v576 = vsel %vm448, 1, 0
          %v577 = vsel %vm449, 1, 0
          %v578 = vsel %vm450, 1, 0
          %v579 = vsel %vm451, 1, 0
          %v580 = vsel %vm452, 1, 0
          %v581 = vsel %vm453, 1, 0
          %v582 = vsel %vm454, 1, 0
          %v583 = vsel %vm455, 1, 0
          %v584 = vsel %vm456, 1, 0
          %v585 = vsel %vm457, 1, 0
          %v586 = vsel %vm458, 1, 0
          %v587 = vsel %vm459, 1, 0
          %v588 = vsel %vm460, 1, 0
          %v589 = vsel %vm461, 1, 0
          %v590 = vsel %vm462, 1, 0
          %v591 = vsel %vm463, 1, 0
          %v592 = vsel %vm464, 1, 0
          %v593 = vsel %vm465, 1, 0
          %v594 = vsel %vm466, 1, 0
          %v595 = vsel %vm467, 1, 0
          %v596 = vsel %vm468, 1, 0
          %v597 = vsel %vm469, 1, 0
          %v598 = vsel %vm470, 1, 0
          %v599 = vsel %vm471, 1, 0
          %v600 = vsel %vm472, 1, 0
          %v601 = vsel %vm473, 1, 0
          %v602 = vsel %vm474, 1, 0
          %v603 = vsel %vm475, 1, 0
          %v604 = vsel %vm476, 1, 0
          %v605 = vsel %vm477, 1, 0
          %v606 = vsel %vm478, 1, 0
          %v607 = vsel %vm479, 1, 0
          %v608 = vsel %vm480, 1, 0
          %v609 = vsel %vm481, 1, 0
          %v610 = vsel %vm482, 1, 0
          %v611 = vsel %vm483, 1, 0
          %v612 = vsel %vm484, 1, 0
          %v613 = vsel %vm485, 1, 0
          %v614 = vsel %vm486, 1, 0
          %v615 = vsel %vm487, 1, 0
          %v616 = vsel %vm488, 1, 0
          %v617 = vsel %vm489, 1, 0
          %v618 = vsel %vm490, 1, 0
          %v619 = vsel %vm491, 1, 0
          %v620 = vsel %vm492, 1, 0
          %v621 = vsel %vm493, 1, 0
          %v622 = vsel %vm494, 1, 0
          %v623 = vsel %vm495, 1, 0
          %v624 = vsel %vm496, 1, 0
          %v625 = vsel %vm497, 1, 0
          %v626 = vsel %vm498, 1, 0
          %v627 = vsel %vm499, 1, 0
          %v628 = vsel %vm500, 1, 0
          %v629 = vsel %vm501, 1, 0
          %v630 = vsel %vm502, 1, 0
          %v631 = vsel %vm503, 1, 0
          %v632 = vsel %vm504, 1, 0
          %v633 = vsel %vm505, 1, 0
          %v634 = vsel %vm506, 1, 0
          %v635 = vsel %vm507, 1, 0
          %v636 = vsel %vm508, 1, 0
          %v637 = vsel %vm509, 1, 0
          %v638 = vsel %vm510, 1, 0
          %v639 = vsel %vm511, 1, 0
          %v640 = vsel %vm512, 1, 0
          %v641 = vsel %vm513, 1, 0
          %v642 = vsel %vm514, 1, 0
          %v643 = vsel %vm515, 1, 0
          %v644 = vsel %vm516, 1, 0
          %v645 = vsel %vm517, 1, 0
          %v646 = vsel %vm518, 1, 0
          %v647 = vsel %vm519, 1, 0
          %v648 = vsel %vm520, 1, 0
          %v649 = vsel %vm521, 1, 0
          %v650 = vsel %vm522, 1, 0
          %v651 = vsel %vm523, 1, 0
          %v652 = vsel %vm524, 1, 0
          %v653 = vsel %vm525, 1, 0
          %v654 = vsel %vm526, 1, 0
          %v655 = vsel %vm527, 1, 0
          %v656 = vsel %vm528, 1, 0
          %v657 = vsel %vm529, 1, 0
          %v658 = vsel %vm530, 1, 0
          %v659 = vsel %vm531, 1, 0
          %v660 = vsel %vm532, 1, 0
          %v661 = vsel %vm533, 1, 0
          %v662 = vsel %vm534, 1, 0
          %v663 = vsel %vm535, 1, 0
          %v664 = vsel %vm536, 1, 0
          %v665 = vsel %vm537, 1, 0
          %v666 = vsel %vm538, 1, 0
          %v667 = vsel %vm539, 1, 0
          %v668 = vsel %vm540, 1, 0
          %v669 = vsel %vm541, 1, 0
          %v670 = vsel %vm542, 1, 0
          %v671 = vsel %vm543, 1, 0
          %v672 = vsel %vm544, 1, 0
          %v673 = vsel %vm545, 1, 0
          %v674 = vcvt.s32.f32 %v546
          %v675 = vcvt.s32.f32 %v547
          %v676 = vcvt.s32.f32 %v548
          %v677 = vcvt.s32.f32 %v549
          %v678 = vcvt.s32.f32 %v550
          %v679 = vcvt.s32.f32 %v551
          %v680 = vcvt.s32.f32 %v552
          %v681 = vcvt.s32.f32 %v553
          %v682 = vcvt.s32.f32 %v554
          %v683 = vcvt.s32.f32 %v555
          %v684 = vcvt.s32.f32 %v556
          %v685 = vcvt.s32.f32 %v557
          %v686 = vcvt.s32.f32 %v558
          %v687 = vcvt.s32.f32 %v559
          %v688 = vcvt.s32.f32 %v560
          %v689 = vcvt.s32.f32 %v561
          %v690 = vcvt.s32.f32 %v562
          %v691 = vcvt.s32.f32 %v563
          %v692 = vcvt.s32.f32 %v564
          %v693 = vcvt.s32.f32 %v565
          %v694 = vcvt.s32.f32 %v566
          %v695 = vcvt.s32.f32 %v567
          %v696 = vcvt.s32.f32 %v568
          %v697 = vcvt.s32.f32 %v569
          %v698 = vcvt.s32.f32 %v570
          %v699 = vcvt.s32.f32 %v571
          %v700 = vcvt.s32.f32 %v572
          %v701 = vcvt.s32.f32 %v573
          %v702 = vcvt.s32.f32 %v574
          %v703 = vcvt.s32.f32 %v575
          %v704 = vcvt.s32.f32 %v576
          %v705 = vcvt.s32.f32 %v577
          %v706 = vcvt.s32.f32 %v578
          %v707 = vcvt.s32.f32 %v579
          %v708 = vcvt.s32.f32 %v580
          %v709 = vcvt.s32.f32 %v581
          %v710 = vcvt.s32.f32 %v582
          %v711 = vcvt.s32.f32 %v583
          %v712 = vcvt.s32.f32 %v584
          %v713 = vcvt.s32.f32 %v585
          %v714 = vcvt.s32.f32 %v586
          %v715 = vcvt.s32.f32 %v587
          %v716 = vcvt.s32.f32 %v588
          %v717 = vcvt.s32.f32 %v589
          %v718 = vcvt.s32.f32 %v590
          %v719 = vcvt.s32.f32 %v591
          %v720 = vcvt.s32.f32 %v592
          %v721 = vcvt.s32.f32 %v593
          %v722 = vcvt.s32.f32 %v594
          %v723 = vcvt.s32.f32 %v595
          %v724 = vcvt.s32.f32 %v596
          %v725 = vcvt.s32.f32 %v597
          %v726 = vcvt.s32.f32 %v598
          %v727 = vcvt.s32.f32 %v599
          %v728 = vcvt.s32.f32 %v600
          %v729 = vcvt.s32.f32 %v601
          %v730 = vcvt.s32.f32 %v602
          %v731 = vcvt.s32.f32 %v603
          %v732 = vcvt.s32.f32 %v604
          %v733 = vcvt.s32.f32 %v605
          %v734 = vcvt.s32.f32 %v606
          %v735 = vcvt.s32.f32 %v607
          %v736 = vcvt.s32.f32 %v608
          %v737 = vcvt.s32.f32 %v609
          %v738 = vcvt.s32.f32 %v610
          %v739 = vcvt.s32.f32 %v611
          %v740 = vcvt.s32.f32 %v612
          %v741 = vcvt.s32.f32 %v613
          %v742 = vcvt.s32.f32 %v614
          %v743 = vcvt.s32.f32 %v615
          %v744 = vcvt.s32.f32 %v616
          %v745 = vcvt.s32.f32 %v617
          %v746 = vcvt.s32.f32 %v618
          %v747 = vcvt.s32.f32 %v619
          %v748 = vcvt.s32.f32 %v620
          %v749 = vcvt.s32.f32 %v621
          %v750 = vcvt.s32.f32 %v622
          %v751 = vcvt.s32.f32 %v623
          %v752 = vcvt.s32.f32 %v624
          %v753 = vcvt.s32.f32 %v625
          %v754 = vcvt.s32.f32 %v626
          %v755 = vcvt.s32.f32 %v627
          %v756 = vcvt.s32.f32 %v628
          %v757 = vcvt.s32.f32 %v629
          %v758 = vcvt.s32.f32 %v630
          %v759 = vcvt.s32.f32 %v631
          %v760 = vcvt.s32.f32 %v632
          %v761 = vcvt.s32.f32 %v633
          %v762 = vcvt.s32.f32 %v634
          %v763 = vcvt.s32.f32 %v635
          %v764 = vcvt.s32.f32 %v636
          %v765 = vcvt.s32.f32 %v637
          %v766 = vcvt.s32.f32 %v638
          %v767 = vcvt.s32.f32 %v639
          %v768 = vcvt.s32.f32 %v640
          %v769 = vcvt.s32.f32 %v641
          %v770 = vcvt.s32.f32 %v642
          %v771 = vcvt.s32.f32 %v643
          %v772 = vcvt.s32.f32 %v644
          %v773 = vcvt.s32.f32 %v645
          %v774 = vcvt.s32.f32 %v646
          %v775 = vcvt.s32.f32 %v647
          %v776 = vcvt.s32.f32 %v648
          %v777 = vcvt.s32.f32 %v649
          %v778 = vcvt.s32.f32 %v650
          %v779 = vcvt.s32.f32 %v651
          %v780 = vcvt.s32.f32 %v652
          %v781 = vcvt.s32.f32 %v653
          %v782 = vcvt.s32.f32 %v654
          %v783 = vcvt.s32.f32 %v655
          %v784 = vcvt.s32.f32 %v656
          %v785 = vcvt.s32.f32 %v657
          %v786 = vcvt.s32.f32 %v658
          %v787 = vcvt.s32.f32 %v659
          %v788 = vcvt.s32.f32 %v660
          %v789 = vcvt.s32.f32 %v661
          %v790 = vcvt.s32.f32 %v662
          %v791 = vcvt.s32.f32 %v663
          %v792 = vcvt.s32.f32 %v664
          %v793 = vcvt.s32.f32 %v665
          %v794 = vcvt.s32.f32 %v666
          %v795 = vcvt.s32.f32 %v667
          %v796 = vcvt.s32.f32 %v668
          %v797 = vcvt.s32.f32 %v669
          %v798 = vcvt.s32.f32 %v670
          %v799 = vcvt.s32.f32 %v671
          %v800 = vcvt.s32.f32 %v672
          %v801 = vcvt.s32.f32 %v673
          %v802 = vadd.f32 %v674, 0.0
          %v803 = vadd.f32 %v675, 0.0
          %v804 = vadd.f32 %v676, 0.0
          %v805 = vadd.f32 %v677, 0.0
          %v806 = vadd.f32 %v678, 0.0
          %v807 = vadd.f32 %v679, 0.0
          %v808 = vadd.f32 %v680, 0.0
          %v809 = vadd.f32 %v681, 0.0
          %v810 = vadd.f32 %v682, 0.0
          %v811 = vadd.f32 %v683, 0.0
          %v812 = vadd.f32 %v684, 0.0
          %v813 = vadd.f32 %v685, 0.0
          %v814 = vadd.f32 %v686, 0.0
          %v815 = vadd.f32 %v687, 0.0
          %v816 = vadd.f32 %v688, 0.0
          %v817 = vadd.f32 %v689, 0.0
          %v818 = vadd.f32 %v690, 0.0
          %v819 = vadd.f32 %v691, 0.0
          %v820 = vadd.f32 %v692, 0.0
          %v821 = vadd.f32 %v693, 0.0
          %v822 = vadd.f32 %v694, 0.0
          %v823 = vadd.f32 %v695, 0.0
          %v824 = vadd.f32 %v696, 0.0
          %v825 = vadd.f32 %v697, 0.0
          %v826 = vadd.f32 %v698, 0.0
          %v827 = vadd.f32 %v699, 0.0
          %v828 = vadd.f32 %v700, 0.0
          %v829 = vadd.f32 %v701, 0.0
          %v830 = vadd.f32 %v702, 0.0
          %v831 = vadd.f32 %v703, 0.0
          %v832 = vadd.f32 %v704, 0.0
          %v833 = vadd.f32 %v705, 0.0
          %v834 = vadd.f32 %v706, 0.0
          %v835 = vadd.f32 %v707, 0.0
          %v836 = vadd.f32 %v708, 0.0
          %v837 = vadd.f32 %v709, 0.0
          %v838 = vadd.f32 %v710, 0.0
          %v839 = vadd.f32 %v711, 0.0
          %v840 = vadd.f32 %v712, 0.0
          %v841 = vadd.f32 %v713, 0.0
          %v842 = vadd.f32 %v714, 0.0
          %v843 = vadd.f32 %v715, 0.0
          %v844 = vadd.f32 %v716, 0.0
          %v845 = vadd.f32 %v717, 0.0
          %v846 = vadd.f32 %v718, 0.0
          %v847 = vadd.f32 %v719, 0.0
          %v848 = vadd.f32 %v720, 0.0
          %v849 = vadd.f32 %v721, 0.0
          %v850 = vadd.f32 %v722, 0.0
          %v851 = vadd.f32 %v723, 0.0
          %v852 = vadd.f32 %v724, 0.0
          %v853 = vadd.f32 %v725, 0.0
          %v854 = vadd.f32 %v726, 0.0
          %v855 = vadd.f32 %v727, 0.0
          %v856 = vadd.f32 %v728, 0.0
          %v857 = vadd.f32 %v729, 0.0
          %v858 = vadd.f32 %v730, 0.0
          %v859 = vadd.f32 %v731, 0.0
          %v860 = vadd.f32 %v732, 0.0
          %v861 = vadd.f32 %v733, 0.0
          %v862 = vadd.f32 %v734, 0.0
          %v863 = vadd.f32 %v735, 0.0
          %v864 = vadd.f32 %v736, 0.0
          %v865 = vadd.f32 %v737, 0.0
          %v866 = vadd.f32 %v738, 0.0
          %v867 = vadd.f32 %v739, 0.0
          %v868 = vadd.f32 %v740, 0.0
          %v869 = vadd.f32 %v741, 0.0
          %v870 = vadd.f32 %v742, 0.0
          %v871 = vadd.f32 %v743, 0.0
          %v872 = vadd.f32 %v744, 0.0
          %v873 = vadd.f32 %v745, 0.0
          %v874 = vadd.f32 %v746, 0.0
          %v875 = vadd.f32 %v747, 0.0
          %v876 = vadd.f32 %v748, 0.0
          %v877 = vadd.f32 %v749, 0.0
          %v878 = vadd.f32 %v750, 0.0
          %v879 = vadd.f32 %v751, 0.0
          %v880 = vadd.f32 %v752, 0.0
          %v881 = vadd.f32 %v753, 0.0
          %v882 = vadd.f32 %v754, 0.0
          %v883 = vadd.f32 %v755, 0.0
          %v884 = vadd.f32 %v756, 0.0
          %v885 = vadd.f32 %v757, 0.0
          %v886 = vadd.f32 %v758, 0.0
          %v887 = vadd.f32 %v759, 0.0
          %v888 = vadd.f32 %v760, 0.0
          %v889 = vadd.f32 %v761, 0.0
          %v890 = vadd.f32 %v762, 0.0
          %v891 = vadd.f32 %v763, 0.0
          %v892 = vadd.f32 %v764, 0.0
          %v893 = vadd.f32 %v765, 0.0
          %v894 = vadd.f32 %v766, 0.0
          %v895 = vadd.f32 %v767, 0.0
          %v896 = vadd.f32 %v768, 0.0
          %v897 = vadd.f32 %v769, 0.0
          %v898 = vadd.f32 %v770, 0.0
          %v899 = vadd.f32 %v771, 0.0
          %v900 = vadd.f32 %v772, 0.0
          %v901 = vadd.f32 %v773, 0.0
          %v902 = vadd.f32 %v774, 0.0
          %v903 = vadd.f32 %v775, 0.0
          %v904 = vadd.f32 %v776, 0.0
          %v905 = vadd.f32 %v777, 0.0
          %v906 = vadd.f32 %v778, 0.0
          %v907 = vadd.f32 %v779, 0.0
          %v908 = vadd.f32 %v780, 0.0
          %v909 = vadd.f32 %v781, 0.0
          %v910 = vadd.f32 %v782, 0.0
          %v911 = vadd.f32 %v783, 0.0
          %v912 = vadd.f32 %v784, 0.0
          %v913 = vadd.f32 %v785, 0.0
          %v914 = vadd.f32 %v786, 0.0
          %v915 = vadd.f32 %v787, 0.0
          %v916 = vadd.f32 %v788, 0.0
          %v917 = vadd.f32 %v789, 0.0
          %v918 = vadd.f32 %v790, 0.0
          %v919 = vadd.f32 %v791, 0.0
          %v920 = vadd.f32 %v792, 0.0
          %v921 = vadd.f32 %v793, 0.0
          %v922 = vadd.f32 %v794, 0.0
          %v923 = vadd.f32 %v795, 0.0
          %v924 = vadd.f32 %v796, 0.0
          %v925 = vadd.f32 %v797, 0.0
          %v926 = vadd.f32 %v798, 0.0
          %v927 = vadd.f32 %v799, 0.0
          %v928 = vadd.f32 %v800, 0.0
          %v929 = vadd.f32 %v801, 0.0
          %930 = vset.pattern.permute.xlu0 1
          %931 = vperm.xlu0 %930, %v345
          %v932 = vpop.permute.xlu0 %931
          %933 = vset.pattern.permute.xlu0 1
          %934 = vperm.xlu0 %933, %v346
          %v935 = vpop.permute.xlu0 %934
          %936 = vset.pattern.permute.xlu0 1
          %937 = vperm.xlu0 %936, %v347
          %v938 = vpop.permute.xlu0 %937
          %939 = vset.pattern.permute.xlu0 1
          %940 = vperm.xlu0 %939, %v348
          %v941 = vpop.permute.xlu0 %940
          %942 = vset.pattern.permute.xlu0 1
          %943 = vperm.xlu0 %942, %v349
          %v944 = vpop.permute.xlu0 %943
          %945 = vset.pattern.permute.xlu0 1
          %946 = vperm.xlu0 %945, %v350
          %v947 = vpop.permute.xlu0 %946
          %948 = vset.pattern.permute.xlu0 1
          %949 = vperm.xlu0 %948, %v351
          %v950 = vpop.permute.xlu0 %949
          %951 = vset.pattern.permute.xlu0 1
          %952 = vperm.xlu0 %951, %v352
          %v953 = vpop.permute.xlu0 %952
          %954 = vset.pattern.permute.xlu0 1
          %955 = vperm.xlu0 %954, %v353
          %v956 = vpop.permute.xlu0 %955
          %957 = vset.pattern.permute.xlu0 1
          %958 = vperm.xlu0 %957, %v354
          %v959 = vpop.permute.xlu0 %958
          %960 = vset.pattern.permute.xlu0 1
          %961 = vperm.xlu0 %960, %v355
          %v962 = vpop.permute.xlu0 %961
          %963 = vset.pattern.permute.xlu0 1
          %964 = vperm.xlu0 %963, %v356
          %v965 = vpop.permute.xlu0 %964
          %966 = vset.pattern.permute.xlu0 1
          %967 = vperm.xlu0 %966, %v357
          %v968 = vpop.permute.xlu0 %967
          %969 = vset.pattern.permute.xlu0 1
          %970 = vperm.xlu0 %969, %v358
          %v971 = vpop.permute.xlu0 %970
          %972 = vset.pattern.permute.xlu0 1
          %973 = vperm.xlu0 %972, %v359
          %v974 = vpop.permute.xlu0 %973
          %975 = vset.pattern.permute.xlu0 1
          %976 = vperm.xlu0 %975, %v360
          %v977 = vpop.permute.xlu0 %976
          %vm978 = vcmp.eq.s32.totalorder %v362, %v932
          %vm979 = vcmp.eq.s32.totalorder %v363, %v932
          %vm980 = vcmp.eq.s32.totalorder %v364, %v932
          %vm981 = vcmp.eq.s32.totalorder %v365, %v932
          %vm982 = vcmp.eq.s32.totalorder %v366, %v932
          %vm983 = vcmp.eq.s32.totalorder %v367, %v932
          %vm984 = vcmp.eq.s32.totalorder %v368, %v932
          %vm985 = vcmp.eq.s32.totalorder %v369, %v932
          %vm986 = vcmp.eq.s32.totalorder %v362, %v935
          %vm987 = vcmp.eq.s32.totalorder %v363, %v935
          %vm988 = vcmp.eq.s32.totalorder %v364, %v935
          %vm989 = vcmp.eq.s32.totalorder %v365, %v935
          %vm990 = vcmp.eq.s32.totalorder %v366, %v935
          %vm991 = vcmp.eq.s32.totalorder %v367, %v935
          %vm992 = vcmp.eq.s32.totalorder %v368, %v935
          %vm993 = vcmp.eq.s32.totalorder %v369, %v935
          %vm994 = vcmp.eq.s32.totalorder %v362, %v938
          %vm995 = vcmp.eq.s32.totalorder %v363, %v938
          %vm996 = vcmp.eq.s32.totalorder %v364, %v938
          %vm997 = vcmp.eq.s32.totalorder %v365, %v938
          %vm998 = vcmp.eq.s32.totalorder %v366, %v938
          %vm999 = vcmp.eq.s32.totalorder %v367, %v938
          %vm1000 = vcmp.eq.s32.totalorder %v368, %v938
          %vm1001 = vcmp.eq.s32.totalorder %v369, %v938
          %vm1002 = vcmp.eq.s32.totalorder %v362, %v941
          %vm1003 = vcmp.eq.s32.totalorder %v363, %v941
          %vm1004 = vcmp.eq.s32.totalorder %v364, %v941
          %vm1005 = vcmp.eq.s32.totalorder %v365, %v941
          %vm1006 = vcmp.eq.s32.totalorder %v366, %v941
          %vm1007 = vcmp.eq.s32.totalorder %v367, %v941
          %vm1008 = vcmp.eq.s32.totalorder %v368, %v941
          %vm1009 = vcmp.eq.s32.totalorder %v369, %v941
          %vm1010 = vcmp.eq.s32.totalorder %v362, %v944
          %vm1011 = vcmp.eq.s32.totalorder %v363, %v944
          %vm1012 = vcmp.eq.s32.totalorder %v364, %v944
          %vm1013 = vcmp.eq.s32.totalorder %v365, %v944
          %vm1014 = vcmp.eq.s32.totalorder %v366, %v944
          %vm1015 = vcmp.eq.s32.totalorder %v367, %v944
          %vm1016 = vcmp.eq.s32.totalorder %v368, %v944
          %vm1017 = vcmp.eq.s32.totalorder %v369, %v944
          %vm1018 = vcmp.eq.s32.totalorder %v362, %v947
          %vm1019 = vcmp.eq.s32.totalorder %v363, %v947
          %vm1020 = vcmp.eq.s32.totalorder %v364, %v947
          %vm1021 = vcmp.eq.s32.totalorder %v365, %v947
          %vm1022 = vcmp.eq.s32.totalorder %v366, %v947
          %vm1023 = vcmp.eq.s32.totalorder %v367, %v947
          %vm1024 = vcmp.eq.s32.totalorder %v368, %v947
          %vm1025 = vcmp.eq.s32.totalorder %v369, %v947
          %vm1026 = vcmp.eq.s32.totalorder %v362, %v950
          %vm1027 = vcmp.eq.s32.totalorder %v363, %v950
          %vm1028 = vcmp.eq.s32.totalorder %v364, %v950
          %vm1029 = vcmp.eq.s32.totalorder %v365, %v950
          %vm1030 = vcmp.eq.s32.totalorder %v366, %v950
          %vm1031 = vcmp.eq.s32.totalorder %v367, %v950
          %vm1032 = vcmp.eq.s32.totalorder %v368, %v950
          %vm1033 = vcmp.eq.s32.totalorder %v369, %v950
          %vm1034 = vcmp.eq.s32.totalorder %v362, %v953
          %vm1035 = vcmp.eq.s32.totalorder %v363, %v953
          %vm1036 = vcmp.eq.s32.totalorder %v364, %v953
          %vm1037 = vcmp.eq.s32.totalorder %v365, %v953
          %vm1038 = vcmp.eq.s32.totalorder %v366, %v953
          %vm1039 = vcmp.eq.s32.totalorder %v367, %v953
          %vm1040 = vcmp.eq.s32.totalorder %v368, %v953
          %vm1041 = vcmp.eq.s32.totalorder %v369, %v953
          %vm1042 = vcmp.eq.s32.totalorder %v362, %v956
          %vm1043 = vcmp.eq.s32.totalorder %v363, %v956
          %vm1044 = vcmp.eq.s32.totalorder %v364, %v956
          %vm1045 = vcmp.eq.s32.totalorder %v365, %v956
          %vm1046 = vcmp.eq.s32.totalorder %v366, %v956
          %vm1047 = vcmp.eq.s32.totalorder %v367, %v956
          %vm1048 = vcmp.eq.s32.totalorder %v368, %v956
          %vm1049 = vcmp.eq.s32.totalorder %v369, %v956
          %vm1050 = vcmp.eq.s32.totalorder %v362, %v959
          %vm1051 = vcmp.eq.s32.totalorder %v363, %v959
          %vm1052 = vcmp.eq.s32.totalorder %v364, %v959
          %vm1053 = vcmp.eq.s32.totalorder %v365, %v959
          %vm1054 = vcmp.eq.s32.totalorder %v366, %v959
          %vm1055 = vcmp.eq.s32.totalorder %v367, %v959
          %vm1056 = vcmp.eq.s32.totalorder %v368, %v959
          %vm1057 = vcmp.eq.s32.totalorder %v369, %v959
          %vm1058 = vcmp.eq.s32.totalorder %v362, %v962
          %vm1059 = vcmp.eq.s32.totalorder %v363, %v962
          %vm1060 = vcmp.eq.s32.totalorder %v364, %v962
          %vm1061 = vcmp.eq.s32.totalorder %v365, %v962
          %vm1062 = vcmp.eq.s32.totalorder %v366, %v962
          %vm1063 = vcmp.eq.s32.totalorder %v367, %v962
          %vm1064 = vcmp.eq.s32.totalorder %v368, %v962
          %vm1065 = vcmp.eq.s32.totalorder %v369, %v962
          %vm1066 = vcmp.eq.s32.totalorder %v362, %v965
          %vm1067 = vcmp.eq.s32.totalorder %v363, %v965
          %vm1068 = vcmp.eq.s32.totalorder %v364, %v965
          %vm1069 = vcmp.eq.s32.totalorder %v365, %v965
          %vm1070 = vcmp.eq.s32.totalorder %v366, %v965
          %vm1071 = vcmp.eq.s32.totalorder %v367, %v965
          %vm1072 = vcmp.eq.s32.totalorder %v368, %v965
          %vm1073 = vcmp.eq.s32.totalorder %v369, %v965
          %vm1074 = vcmp.eq.s32.totalorder %v362, %v968
          %vm1075 = vcmp.eq.s32.totalorder %v363, %v968
          %vm1076 = vcmp.eq.s32.totalorder %v364, %v968
          %vm1077 = vcmp.eq.s32.totalorder %v365, %v968
          %vm1078 = vcmp.eq.s32.totalorder %v366, %v968
          %vm1079 = vcmp.eq.s32.totalorder %v367, %v968
          %vm1080 = vcmp.eq.s32.totalorder %v368, %v968
          %vm1081 = vcmp.eq.s32.totalorder %v369, %v968
          %vm1082 = vcmp.eq.s32.totalorder %v362, %v971
          %vm1083 = vcmp.eq.s32.totalorder %v363, %v971
          %vm1084 = vcmp.eq.s32.totalorder %v364, %v971
          %vm1085 = vcmp.eq.s32.totalorder %v365, %v971
          %vm1086 = vcmp.eq.s32.totalorder %v366, %v971
          %vm1087 = vcmp.eq.s32.totalorder %v367, %v971
          %vm1088 = vcmp.eq.s32.totalorder %v368, %v971
          %vm1089 = vcmp.eq.s32.totalorder %v369, %v971
          %vm1090 = vcmp.eq.s32.totalorder %v362, %v974
          %vm1091 = vcmp.eq.s32.totalorder %v363, %v974
          %vm1092 = vcmp.eq.s32.totalorder %v364, %v974
          %vm1093 = vcmp.eq.s32.totalorder %v365, %v974
          %vm1094 = vcmp.eq.s32.totalorder %v366, %v974
          %vm1095 = vcmp.eq.s32.totalorder %v367, %v974
          %vm1096 = vcmp.eq.s32.totalorder %v368, %v974
          %vm1097 = vcmp.eq.s32.totalorder %v369, %v974
          %vm1098 = vcmp.eq.s32.totalorder %v362, %v977
          %vm1099 = vcmp.eq.s32.totalorder %v363, %v977
          %vm1100 = vcmp.eq.s32.totalorder %v364, %v977
          %vm1101 = vcmp.eq.s32.totalorder %v365, %v977
          %vm1102 = vcmp.eq.s32.totalorder %v366, %v977
          %vm1103 = vcmp.eq.s32.totalorder %v367, %v977
          %vm1104 = vcmp.eq.s32.totalorder %v368, %v977
          %vm1105 = vcmp.eq.s32.totalorder %v369, %v977
          %v1106 = vsel %vm978, 1, 0
          %v1107 = vsel %vm979, 1, 0
          %v1108 = vsel %vm980, 1, 0
          %v1109 = vsel %vm981, 1, 0
          %v1110 = vsel %vm982, 1, 0
          %v1111 = vsel %vm983, 1, 0
          %v1112 = vsel %vm984, 1, 0
          %v1113 = vsel %vm985, 1, 0
          %v1114 = vsel %vm986, 1, 0
          %v1115 = vsel %vm987, 1, 0
          %v1116 = vsel %vm988, 1, 0
          %v1117 = vsel %vm989, 1, 0
          %v1118 = vsel %vm990, 1, 0
          %v1119 = vsel %vm991, 1, 0
          %v1120 = vsel %vm992, 1, 0
          %v1121 = vsel %vm993, 1, 0
          %v1122 = vsel %vm994, 1, 0
          %v1123 = vsel %vm995, 1, 0
          %v1124 = vsel %vm996, 1, 0
          %v1125 = vsel %vm997, 1, 0
          %v1126 = vsel %vm998, 1, 0
          %v1127 = vsel %vm999, 1, 0
          %v1128 = vsel %vm1000, 1, 0
          %v1129 = vsel %vm1001, 1, 0
          %v1130 = vsel %vm1002, 1, 0
          %v1131 = vsel %vm1003, 1, 0
          %v1132 = vsel %vm1004, 1, 0
          %v1133 = vsel %vm1005, 1, 0
          %v1134 = vsel %vm1006, 1, 0
          %v1135 = vsel %vm1007, 1, 0
          %v1136 = vsel %vm1008, 1, 0
          %v1137 = vsel %vm1009, 1, 0
          %v1138 = vsel %vm1010, 1, 0
          %v1139 = vsel %vm1011, 1, 0
          %v1140 = vsel %vm1012, 1, 0
          %v1141 = vsel %vm1013, 1, 0
          %v1142 = vsel %vm1014, 1, 0
          %v1143 = vsel %vm1015, 1, 0
          %v1144 = vsel %vm1016, 1, 0
          %v1145 = vsel %vm1017, 1, 0
          %v1146 = vsel %vm1018, 1, 0
          %v1147 = vsel %vm1019, 1, 0
          %v1148 = vsel %vm1020, 1, 0
          %v1149 = vsel %vm1021, 1, 0
          %v1150 = vsel %vm1022, 1, 0
          %v1151 = vsel %vm1023, 1, 0
          %v1152 = vsel %vm1024, 1, 0
          %v1153 = vsel %vm1025, 1, 0
          %v1154 = vsel %vm1026, 1, 0
          %v1155 = vsel %vm1027, 1, 0
          %v1156 = vsel %vm1028, 1, 0
          %v1157 = vsel %vm1029, 1, 0
          %v1158 = vsel %vm1030, 1, 0
          %v1159 = vsel %vm1031, 1, 0
          %v1160 = vsel %vm1032, 1, 0
          %v1161 = vsel %vm1033, 1, 0
          %v1162 = vsel %vm1034, 1, 0
          %v1163 = vsel %vm1035, 1, 0
          %v1164 = vsel %vm1036, 1, 0
          %v1165 = vsel %vm1037, 1, 0
          %v1166 = vsel %vm1038, 1, 0
          %v1167 = vsel %vm1039, 1, 0
          %v1168 = vsel %vm1040, 1, 0
          %v1169 = vsel %vm1041, 1, 0
          %v1170 = vsel %vm1042, 1, 0
          %v1171 = vsel %vm1043, 1, 0
          %v1172 = vsel %vm1044, 1, 0
          %v1173 = vsel %vm1045, 1, 0
          %v1174 = vsel %vm1046, 1, 0
          %v1175 = vsel %vm1047, 1, 0
          %v1176 = vsel %vm1048, 1, 0
          %v1177 = vsel %vm1049, 1, 0
          %v1178 = vsel %vm1050, 1, 0
          %v1179 = vsel %vm1051, 1, 0
          %v1180 = vsel %vm1052, 1, 0
          %v1181 = vsel %vm1053, 1, 0
          %v1182 = vsel %vm1054, 1, 0
          %v1183 = vsel %vm1055, 1, 0
          %v1184 = vsel %vm1056, 1, 0
          %v1185 = vsel %vm1057, 1, 0
          %v1186 = vsel %vm1058, 1, 0
          %v1187 = vsel %vm1059, 1, 0
          %v1188 = vsel %vm1060, 1, 0
          %v1189 = vsel %vm1061, 1, 0
          %v1190 = vsel %vm1062, 1, 0
          %v1191 = vsel %vm1063, 1, 0
          %v1192 = vsel %vm1064, 1, 0
          %v1193 = vsel %vm1065, 1, 0
          %v1194 = vsel %vm1066, 1, 0
          %v1195 = vsel %vm1067, 1, 0
          %v1196 = vsel %vm1068, 1, 0
          %v1197 = vsel %vm1069, 1, 0
          %v1198 = vsel %vm1070, 1, 0
          %v1199 = vsel %vm1071, 1, 0
          %v1200 = vsel %vm1072, 1, 0
          %v1201 = vsel %vm1073, 1, 0
          %v1202 = vsel %vm1074, 1, 0
          %v1203 = vsel %vm1075, 1, 0
          %v1204 = vsel %vm1076, 1, 0
          %v1205 = vsel %vm1077, 1, 0
          %v1206 = vsel %vm1078, 1, 0
          %v1207 = vsel %vm1079, 1, 0
          %v1208 = vsel %vm1080, 1, 0
          %v1209 = vsel %vm1081, 1, 0
          %v1210 = vsel %vm1082, 1, 0
          %v1211 = vsel %vm1083, 1, 0
          %v1212 = vsel %vm1084, 1, 0
          %v1213 = vsel %vm1085, 1, 0
          %v1214 = vsel %vm1086, 1, 0
          %v1215 = vsel %vm1087, 1, 0
          %v1216 = vsel %vm1088, 1, 0
          %v1217 = vsel %vm1089, 1, 0
          %v1218 = vsel %vm1090, 1, 0
          %v1219 = vsel %vm1091, 1, 0
          %v1220 = vsel %vm1092, 1, 0
          %v1221 = vsel %vm1093, 1, 0
          %v1222 = vsel %vm1094, 1, 0
          %v1223 = vsel %vm1095, 1, 0
          %v1224 = vsel %vm1096, 1, 0
          %v1225 = vsel %vm1097, 1, 0
          %v1226 = vsel %vm1098, 1, 0
          %v1227 = vsel %vm1099, 1, 0
          %v1228 = vsel %vm1100, 1, 0
          %v1229 = vsel %vm1101, 1, 0
          %v1230 = vsel %vm1102, 1, 0
          %v1231 = vsel %vm1103, 1, 0
          %v1232 = vsel %vm1104, 1, 0
          %v1233 = vsel %vm1105, 1, 0
          %v1234 = vcvt.s32.f32 %v1106
          %v1235 = vcvt.s32.f32 %v1107
          %v1236 = vcvt.s32.f32 %v1108
          %v1237 = vcvt.s32.f32 %v1109
          %v1238 = vcvt.s32.f32 %v1110
          %v1239 = vcvt.s32.f32 %v1111
          %v1240 = vcvt.s32.f32 %v1112
          %v1241 = vcvt.s32.f32 %v1113
          %v1242 = vcvt.s32.f32 %v1114
          %v1243 = vcvt.s32.f32 %v1115
          %v1244 = vcvt.s32.f32 %v1116
          %v1245 = vcvt.s32.f32 %v1117
          %v1246 = vcvt.s32.f32 %v1118
          %v1247 = vcvt.s32.f32 %v1119
          %v1248 = vcvt.s32.f32 %v1120
          %v1249 = vcvt.s32.f32 %v1121
          %v1250 = vcvt.s32.f32 %v1122
          %v1251 = vcvt.s32.f32 %v1123
          %v1252 = vcvt.s32.f32 %v1124
          %v1253 = vcvt.s32.f32 %v1125
          %v1254 = vcvt.s32.f32 %v1126
          %v1255 = vcvt.s32.f32 %v1127
          %v1256 = vcvt.s32.f32 %v1128
          %v1257 = vcvt.s32.f32 %v1129
          %v1258 = vcvt.s32.f32 %v1130
          %v1259 = vcvt.s32.f32 %v1131
          %v1260 = vcvt.s32.f32 %v1132
          %v1261 = vcvt.s32.f32 %v1133
          %v1262 = vcvt.s32.f32 %v1134
          %v1263 = vcvt.s32.f32 %v1135
          %v1264 = vcvt.s32.f32 %v1136
          %v1265 = vcvt.s32.f32 %v1137
          %v1266 = vcvt.s32.f32 %v1138
          %v1267 = vcvt.s32.f32 %v1139
          %v1268 = vcvt.s32.f32 %v1140
          %v1269 = vcvt.s32.f32 %v1141
          %v1270 = vcvt.s32.f32 %v1142
          %v1271 = vcvt.s32.f32 %v1143
          %v1272 = vcvt.s32.f32 %v1144
          %v1273 = vcvt.s32.f32 %v1145
          %v1274 = vcvt.s32.f32 %v1146
          %v1275 = vcvt.s32.f32 %v1147
          %v1276 = vcvt.s32.f32 %v1148
          %v1277 = vcvt.s32.f32 %v1149
          %v1278 = vcvt.s32.f32 %v1150
          %v1279 = vcvt.s32.f32 %v1151
          %v1280 = vcvt.s32.f32 %v1152
          %v1281 = vcvt.s32.f32 %v1153
          %v1282 = vcvt.s32.f32 %v1154
          %v1283 = vcvt.s32.f32 %v1155
          %v1284 = vcvt.s32.f32 %v1156
          %v1285 = vcvt.s32.f32 %v1157
          %v1286 = vcvt.s32.f32 %v1158
          %v1287 = vcvt.s32.f32 %v1159
          %v1288 = vcvt.s32.f32 %v1160
          %v1289 = vcvt.s32.f32 %v1161
          %v1290 = vcvt.s32.f32 %v1162
          %v1291 = vcvt.s32.f32 %v1163
          %v1292 = vcvt.s32.f32 %v1164
          %v1293 = vcvt.s32.f32 %v1165
          %v1294 = vcvt.s32.f32 %v1166
          %v1295 = vcvt.s32.f32 %v1167
          %v1296 = vcvt.s32.f32 %v1168
          %v1297 = vcvt.s32.f32 %v1169
          %v1298 = vcvt.s32.f32 %v1170
          %v1299 = vcvt.s32.f32 %v1171
          %v1300 = vcvt.s32.f32 %v1172
          %v1301 = vcvt.s32.f32 %v1173
          %v1302 = vcvt.s32.f32 %v1174
          %v1303 = vcvt.s32.f32 %v1175
          %v1304 = vcvt.s32.f32 %v1176
          %v1305 = vcvt.s32.f32 %v1177
          %v1306 = vcvt.s32.f32 %v1178
          %v1307 = vcvt.s32.f32 %v1179
          %v1308 = vcvt.s32.f32 %v1180
          %v1309 = vcvt.s32.f32 %v1181
          %v1310 = vcvt.s32.f32 %v1182
          %v1311 = vcvt.s32.f32 %v1183
          %v1312 = vcvt.s32.f32 %v1184
          %v1313 = vcvt.s32.f32 %v1185
          %v1314 = vcvt.s32.f32 %v1186
          %v1315 = vcvt.s32.f32 %v1187
          %v1316 = vcvt.s32.f32 %v1188
          %v1317 = vcvt.s32.f32 %v1189
          %v1318 = vcvt.s32.f32 %v1190
          %v1319 = vcvt.s32.f32 %v1191
          %v1320 = vcvt.s32.f32 %v1192
          %v1321 = vcvt.s32.f32 %v1193
          %v1322 = vcvt.s32.f32 %v1194
          %v1323 = vcvt.s32.f32 %v1195
          %v1324 = vcvt.s32.f32 %v1196
          %v1325 = vcvt.s32.f32 %v1197
          %v1326 = vcvt.s32.f32 %v1198
          %v1327 = vcvt.s32.f32 %v1199
          %v1328 = vcvt.s32.f32 %v1200
          %v1329 = vcvt.s32.f32 %v1201
          %v1330 = vcvt.s32.f32 %v1202
          %v1331 = vcvt.s32.f32 %v1203
          %v1332 = vcvt.s32.f32 %v1204
          %v1333 = vcvt.s32.f32 %v1205
          %v1334 = vcvt.s32.f32 %v1206
          %v1335 = vcvt.s32.f32 %v1207
          %v1336 = vcvt.s32.f32 %v1208
          %v1337 = vcvt.s32.f32 %v1209
          %v1338 = vcvt.s32.f32 %v1210
          %v1339 = vcvt.s32.f32 %v1211
          %v1340 = vcvt.s32.f32 %v1212
          %v1341 = vcvt.s32.f32 %v1213
          %v1342 = vcvt.s32.f32 %v1214
          %v1343 = vcvt.s32.f32 %v1215
          %v1344 = vcvt.s32.f32 %v1216
          %v1345 = vcvt.s32.f32 %v1217
          %v1346 = vcvt.s32.f32 %v1218
          %v1347 = vcvt.s32.f32 %v1219
          %v1348 = vcvt.s32.f32 %v1220
          %v1349 = vcvt.s32.f32 %v1221
          %v1350 = vcvt.s32.f32 %v1222
          %v1351 = vcvt.s32.f32 %v1223
          %v1352 = vcvt.s32.f32 %v1224
          %v1353 = vcvt.s32.f32 %v1225
          %v1354 = vcvt.s32.f32 %v1226
          %v1355 = vcvt.s32.f32 %v1227
          %v1356 = vcvt.s32.f32 %v1228
          %v1357 = vcvt.s32.f32 %v1229
          %v1358 = vcvt.s32.f32 %v1230
          %v1359 = vcvt.s32.f32 %v1231
          %v1360 = vcvt.s32.f32 %v1232
          %v1361 = vcvt.s32.f32 %v1233
          %v1362 = vadd.f32 %v802, %v1234
          %v1363 = vadd.f32 %v803, %v1235
          %v1364 = vadd.f32 %v804, %v1236
          %v1365 = vadd.f32 %v805, %v1237
          %v1366 = vadd.f32 %v806, %v1238
          %v1367 = vadd.f32 %v807, %v1239
          %v1368 = vadd.f32 %v808, %v1240
          %v1369 = vadd.f32 %v809, %v1241
          %v1370 = vadd.f32 %v810, %v1242
          %v1371 = vadd.f32 %v811, %v1243
          %v1372 = vadd.f32 %v812, %v1244
          %v1373 = vadd.f32 %v813, %v1245
          %v1374 = vadd.f32 %v814, %v1246
          %v1375 = vadd.f32 %v815, %v1247
          %v1376 = vadd.f32 %v816, %v1248
          %v1377 = vadd.f32 %v817, %v1249
          %v1378 = vadd.f32 %v818, %v1250
          %v1379 = vadd.f32 %v819, %v1251
          %v1380 = vadd.f32 %v820, %v1252
          %v1381 = vadd.f32 %v821, %v1253
          %v1382 = vadd.f32 %v822, %v1254
          %v1383 = vadd.f32 %v823, %v1255
          %v1384 = vadd.f32 %v824, %v1256
          %v1385 = vadd.f32 %v825, %v1257
          %v1386 = vadd.f32 %v826, %v1258
          %v1387 = vadd.f32 %v827, %v1259
          %v1388 = vadd.f32 %v828, %v1260
          %v1389 = vadd.f32 %v829, %v1261
          %v1390 = vadd.f32 %v830, %v1262
          %v1391 = vadd.f32 %v831, %v1263
          %v1392 = vadd.f32 %v832, %v1264
          %v1393 = vadd.f32 %v833, %v1265
          %v1394 = vadd.f32 %v834, %v1266
          %v1395 = vadd.f32 %v835, %v1267
          %v1396 = vadd.f32 %v836, %v1268
          %v1397 = vadd.f32 %v837, %v1269
          %v1398 = vadd.f32 %v838, %v1270
          %v1399 = vadd.f32 %v839, %v1271
          %v1400 = vadd.f32 %v840, %v1272
          %v1401 = vadd.f32 %v841, %v1273
          %v1402 = vadd.f32 %v842, %v1274
          %v1403 = vadd.f32 %v843, %v1275
          %v1404 = vadd.f32 %v844, %v1276
          %v1405 = vadd.f32 %v845, %v1277
          %v1406 = vadd.f32 %v846, %v1278
          %v1407 = vadd.f32 %v847, %v1279
          %v1408 = vadd.f32 %v848, %v1280
          %v1409 = vadd.f32 %v849, %v1281
          %v1410 = vadd.f32 %v850, %v1282
          %v1411 = vadd.f32 %v851, %v1283
          %v1412 = vadd.f32 %v852, %v1284
          %v1413 = vadd.f32 %v853, %v1285
          %v1414 = vadd.f32 %v854, %v1286
          %v1415 = vadd.f32 %v855, %v1287
          %v1416 = vadd.f32 %v856, %v1288
          %v1417 = vadd.f32 %v857, %v1289
          %v1418 = vadd.f32 %v858, %v1290
          %v1419 = vadd.f32 %v859, %v1291
          %v1420 = vadd.f32 %v860, %v1292
          %v1421 = vadd.f32 %v861, %v1293
          %v1422 = vadd.f32 %v862, %v1294
          %v1423 = vadd.f32 %v863, %v1295
          %v1424 = vadd.f32 %v864, %v1296
          %v1425 = vadd.f32 %v865, %v1297
          %v1426 = vadd.f32 %v866, %v1298
          %v1427 = vadd.f32 %v867, %v1299
          %v1428 = vadd.f32 %v868, %v1300
          %v1429 = vadd.f32 %v869, %v1301
          %v1430 = vadd.f32 %v870, %v1302
          %v1431 = vadd.f32 %v871, %v1303
          %v1432 = vadd.f32 %v872, %v1304
          %v1433 = vadd.f32 %v873, %v1305
          %v1434 = vadd.f32 %v874, %v1306
          %v1435 = vadd.f32 %v875, %v1307
          %v1436 = vadd.f32 %v876, %v1308
          %v1437 = vadd.f32 %v877, %v1309
          %v1438 = vadd.f32 %v878, %v1310
          %v1439 = vadd.f32 %v879, %v1311
          %v1440 = vadd.f32 %v880, %v1312
          %v1441 = vadd.f32 %v881, %v1313
          %v1442 = vadd.f32 %v882, %v1314
          %v1443 = vadd.f32 %v883, %v1315
          %v1444 = vadd.f32 %v884, %v1316
          %v1445 = vadd.f32 %v885, %v1317
          %v1446 = vadd.f32 %v886, %v1318
          %v1447 = vadd.f32 %v887, %v1319
          %v1448 = vadd.f32 %v888, %v1320
          %v1449 = vadd.f32 %v889, %v1321
          %v1450 = vadd.f32 %v890, %v1322
          %v1451 = vadd.f32 %v891, %v1323
          %v1452 = vadd.f32 %v892, %v1324
          %v1453 = vadd.f32 %v893, %v1325
          %v1454 = vadd.f32 %v894, %v1326
          %v1455 = vadd.f32 %v895, %v1327
          %v1456 = vadd.f32 %v896, %v1328
          %v1457 = vadd.f32 %v897, %v1329
          %v1458 = vadd.f32 %v898, %v1330
          %v1459 = vadd.f32 %v899, %v1331
          %v1460 = vadd.f32 %v900, %v1332
          %v1461 = vadd.f32 %v901, %v1333
          %v1462 = vadd.f32 %v902, %v1334
          %v1463 = vadd.f32 %v903, %v1335
          %v1464 = vadd.f32 %v904, %v1336
          %v1465 = vadd.f32 %v905, %v1337
          %v1466 = vadd.f32 %v906, %v1338
          %v1467 = vadd.f32 %v907, %v1339
          %v1468 = vadd.f32 %v908, %v1340
          %v1469 = vadd.f32 %v909, %v1341
          %v1470 = vadd.f32 %v910, %v1342
          %v1471 = vadd.f32 %v911, %v1343
          %v1472 = vadd.f32 %v912, %v1344
          %v1473 = vadd.f32 %v913, %v1345
          %v1474 = vadd.f32 %v914, %v1346
          %v1475 = vadd.f32 %v915, %v1347
          %v1476 = vadd.f32 %v916, %v1348
          %v1477 = vadd.f32 %v917, %v1349
          %v1478 = vadd.f32 %v918, %v1350
          %v1479 = vadd.f32 %v919, %v1351
          %v1480 = vadd.f32 %v920, %v1352
          %v1481 = vadd.f32 %v921, %v1353
          %v1482 = vadd.f32 %v922, %v1354
          %v1483 = vadd.f32 %v923, %v1355
          %v1484 = vadd.f32 %v924, %v1356
          %v1485 = vadd.f32 %v925, %v1357
          %v1486 = vadd.f32 %v926, %v1358
          %v1487 = vadd.f32 %v927, %v1359
          %v1488 = vadd.f32 %v928, %v1360
          %v1489 = vadd.f32 %v929, %v1361
          %1490 = vset.pattern.permute.xlu0 2
          %1491 = vperm.xlu0 %1490, %v345
          %v1492 = vpop.permute.xlu0 %1491
          %1493 = vset.pattern.permute.xlu0 2
          %1494 = vperm.xlu0 %1493, %v346
          %v1495 = vpop.permute.xlu0 %1494
          %1496 = vset.pattern.permute.xlu0 2
          %1497 = vperm.xlu0 %1496, %v347
          %v1498 = vpop.permute.xlu0 %1497
          %1499 = vset.pattern.permute.xlu0 2
          %1500 = vperm.xlu0 %1499, %v348
          %v1501 = vpop.permute.xlu0 %1500
          %1502 = vset.pattern.permute.xlu0 2
          %1503 = vperm.xlu0 %1502, %v349
          %v1504 = vpop.permute.xlu0 %1503
          %1505 = vset.pattern.permute.xlu0 2
          %1506 = vperm.xlu0 %1505, %v350
          %v1507 = vpop.permute.xlu0 %1506
          %1508 = vset.pattern.permute.xlu0 2
          %1509 = vperm.xlu0 %1508, %v351
          %v1510 = vpop.permute.xlu0 %1509
          %1511 = vset.pattern.permute.xlu0 2
          %1512 = vperm.xlu0 %1511, %v352
          %v1513 = vpop.permute.xlu0 %1512
          %1514 = vset.pattern.permute.xlu0 2
          %1515 = vperm.xlu0 %1514, %v353
          %v1516 = vpop.permute.xlu0 %1515
          %1517 = vset.pattern.permute.xlu0 2
          %1518 = vperm.xlu0 %1517, %v354
          %v1519 = vpop.permute.xlu0 %1518
          %1520 = vset.pattern.permute.xlu0 2
          %1521 = vperm.xlu0 %1520, %v355
          %v1522 = vpop.permute.xlu0 %1521
          %1523 = vset.pattern.permute.xlu0 2
          %1524 = vperm.xlu0 %1523, %v356
          %v1525 = vpop.permute.xlu0 %1524
          %1526 = vset.pattern.permute.xlu0 2
          %1527 = vperm.xlu0 %1526, %v357
          %v1528 = vpop.permute.xlu0 %1527
          %1529 = vset.pattern.permute.xlu0 2
          %1530 = vperm.xlu0 %1529, %v358
          %v1531 = vpop.permute.xlu0 %1530
          %1532 = vset.pattern.permute.xlu0 2
          %1533 = vperm.xlu0 %1532, %v359
          %v1534 = vpop.permute.xlu0 %1533
          %1535 = vset.pattern.permute.xlu0 2
          %1536 = vperm.xlu0 %1535, %v360
          %v1537 = vpop.permute.xlu0 %1536
          %vm1538 = vcmp.eq.s32.totalorder %v362, %v1492
          %vm1539 = vcmp.eq.s32.totalorder %v363, %v1492
          %vm1540 = vcmp.eq.s32.totalorder %v364, %v1492
          %vm1541 = vcmp.eq.s32.totalorder %v365, %v1492
          %vm1542 = vcmp.eq.s32.totalorder %v366, %v1492
          %vm1543 = vcmp.eq.s32.totalorder %v367, %v1492
          %vm1544 = vcmp.eq.s32.totalorder %v368, %v1492
          %vm1545 = vcmp.eq.s32.totalorder %v369, %v1492
          %vm1546 = vcmp.eq.s32.totalorder %v362, %v1495
          %vm1547 = vcmp.eq.s32.totalorder %v363, %v1495
          %vm1548 = vcmp.eq.s32.totalorder %v364, %v1495
          %vm1549 = vcmp.eq.s32.totalorder %v365, %v1495
          %vm1550 = vcmp.eq.s32.totalorder %v366, %v1495
          %vm1551 = vcmp.eq.s32.totalorder %v367, %v1495
          %vm1552 = vcmp.eq.s32.totalorder %v368, %v1495
          %vm1553 = vcmp.eq.s32.totalorder %v369, %v1495
          %vm1554 = vcmp.eq.s32.totalorder %v362, %v1498
          %vm1555 = vcmp.eq.s32.totalorder %v363, %v1498
          %vm1556 = vcmp.eq.s32.totalorder %v364, %v1498
          %vm1557 = vcmp.eq.s32.totalorder %v365, %v1498
          %vm1558 = vcmp.eq.s32.totalorder %v366, %v1498
          %vm1559 = vcmp.eq.s32.totalorder %v367, %v1498
          %vm1560 = vcmp.eq.s32.totalorder %v368, %v1498
          %vm1561 = vcmp.eq.s32.totalorder %v369, %v1498
          %vm1562 = vcmp.eq.s32.totalorder %v362, %v1501
          %vm1563 = vcmp.eq.s32.totalorder %v363, %v1501
          %vm1564 = vcmp.eq.s32.totalorder %v364, %v1501
          %vm1565 = vcmp.eq.s32.totalorder %v365, %v1501
          %vm1566 = vcmp.eq.s32.totalorder %v366, %v1501
          %vm1567 = vcmp.eq.s32.totalorder %v367, %v1501
          %vm1568 = vcmp.eq.s32.totalorder %v368, %v1501
          %vm1569 = vcmp.eq.s32.totalorder %v369, %v1501
          %vm1570 = vcmp.eq.s32.totalorder %v362, %v1504
          %vm1571 = vcmp.eq.s32.totalorder %v363, %v1504
          %vm1572 = vcmp.eq.s32.totalorder %v364, %v1504
          %vm1573 = vcmp.eq.s32.totalorder %v365, %v1504
          %vm1574 = vcmp.eq.s32.totalorder %v366, %v1504
          %vm1575 = vcmp.eq.s32.totalorder %v367, %v1504
          %vm1576 = vcmp.eq.s32.totalorder %v368, %v1504
          %vm1577 = vcmp.eq.s32.totalorder %v369, %v1504
          %vm1578 = vcmp.eq.s32.totalorder %v362, %v1507
          %vm1579 = vcmp.eq.s32.totalorder %v363, %v1507
          %vm1580 = vcmp.eq.s32.totalorder %v364, %v1507
          %vm1581 = vcmp.eq.s32.totalorder %v365, %v1507
          %vm1582 = vcmp.eq.s32.totalorder %v366, %v1507
          %vm1583 = vcmp.eq.s32.totalorder %v367, %v1507
          %vm1584 = vcmp.eq.s32.totalorder %v368, %v1507
          %vm1585 = vcmp.eq.s32.totalorder %v369, %v1507
          %vm1586 = vcmp.eq.s32.totalorder %v362, %v1510
          %vm1587 = vcmp.eq.s32.totalorder %v363, %v1510
          %vm1588 = vcmp.eq.s32.totalorder %v364, %v1510
          %vm1589 = vcmp.eq.s32.totalorder %v365, %v1510
          %vm1590 = vcmp.eq.s32.totalorder %v366, %v1510
          %vm1591 = vcmp.eq.s32.totalorder %v367, %v1510
          %vm1592 = vcmp.eq.s32.totalorder %v368, %v1510
          %vm1593 = vcmp.eq.s32.totalorder %v369, %v1510
          %vm1594 = vcmp.eq.s32.totalorder %v362, %v1513
          %vm1595 = vcmp.eq.s32.totalorder %v363, %v1513
          %vm1596 = vcmp.eq.s32.totalorder %v364, %v1513
          %vm1597 = vcmp.eq.s32.totalorder %v365, %v1513
          %vm1598 = vcmp.eq.s32.totalorder %v366, %v1513
          %vm1599 = vcmp.eq.s32.totalorder %v367, %v1513
          %vm1600 = vcmp.eq.s32.totalorder %v368, %v1513
          %vm1601 = vcmp.eq.s32.totalorder %v369, %v1513
          %vm1602 = vcmp.eq.s32.totalorder %v362, %v1516
          %vm1603 = vcmp.eq.s32.totalorder %v363, %v1516
          %vm1604 = vcmp.eq.s32.totalorder %v364, %v1516
          %vm1605 = vcmp.eq.s32.totalorder %v365, %v1516
          %vm1606 = vcmp.eq.s32.totalorder %v366, %v1516
          %vm1607 = vcmp.eq.s32.totalorder %v367, %v1516
          %vm1608 = vcmp.eq.s32.totalorder %v368, %v1516
          %vm1609 = vcmp.eq.s32.totalorder %v369, %v1516
          %vm1610 = vcmp.eq.s32.totalorder %v362, %v1519
          %vm1611 = vcmp.eq.s32.totalorder %v363, %v1519
          %vm1612 = vcmp.eq.s32.totalorder %v364, %v1519
          %vm1613 = vcmp.eq.s32.totalorder %v365, %v1519
          %vm1614 = vcmp.eq.s32.totalorder %v366, %v1519
          %vm1615 = vcmp.eq.s32.totalorder %v367, %v1519
          %vm1616 = vcmp.eq.s32.totalorder %v368, %v1519
          %vm1617 = vcmp.eq.s32.totalorder %v369, %v1519
          %vm1618 = vcmp.eq.s32.totalorder %v362, %v1522
          %vm1619 = vcmp.eq.s32.totalorder %v363, %v1522
          %vm1620 = vcmp.eq.s32.totalorder %v364, %v1522
          %vm1621 = vcmp.eq.s32.totalorder %v365, %v1522
          %vm1622 = vcmp.eq.s32.totalorder %v366, %v1522
          %vm1623 = vcmp.eq.s32.totalorder %v367, %v1522
          %vm1624 = vcmp.eq.s32.totalorder %v368, %v1522
          %vm1625 = vcmp.eq.s32.totalorder %v369, %v1522
          %vm1626 = vcmp.eq.s32.totalorder %v362, %v1525
          %vm1627 = vcmp.eq.s32.totalorder %v363, %v1525
          %vm1628 = vcmp.eq.s32.totalorder %v364, %v1525
          %vm1629 = vcmp.eq.s32.totalorder %v365, %v1525
          %vm1630 = vcmp.eq.s32.totalorder %v366, %v1525
          %vm1631 = vcmp.eq.s32.totalorder %v367, %v1525
          %vm1632 = vcmp.eq.s32.totalorder %v368, %v1525
          %vm1633 = vcmp.eq.s32.totalorder %v369, %v1525
          %vm1634 = vcmp.eq.s32.totalorder %v362, %v1528
          %vm1635 = vcmp.eq.s32.totalorder %v363, %v1528
          %vm1636 = vcmp.eq.s32.totalorder %v364, %v1528
          %vm1637 = vcmp.eq.s32.totalorder %v365, %v1528
          %vm1638 = vcmp.eq.s32.totalorder %v366, %v1528
          %vm1639 = vcmp.eq.s32.totalorder %v367, %v1528
          %vm1640 = vcmp.eq.s32.totalorder %v368, %v1528
          %vm1641 = vcmp.eq.s32.totalorder %v369, %v1528
          %vm1642 = vcmp.eq.s32.totalorder %v362, %v1531
          %vm1643 = vcmp.eq.s32.totalorder %v363, %v1531
          %vm1644 = vcmp.eq.s32.totalorder %v364, %v1531
          %vm1645 = vcmp.eq.s32.totalorder %v365, %v1531
          %vm1646 = vcmp.eq.s32.totalorder %v366, %v1531
          %vm1647 = vcmp.eq.s32.totalorder %v367, %v1531
          %vm1648 = vcmp.eq.s32.totalorder %v368, %v1531
          %vm1649 = vcmp.eq.s32.totalorder %v369, %v1531
          %vm1650 = vcmp.eq.s32.totalorder %v362, %v1534
          %vm1651 = vcmp.eq.s32.totalorder %v363, %v1534
          %vm1652 = vcmp.eq.s32.totalorder %v364, %v1534
          %vm1653 = vcmp.eq.s32.totalorder %v365, %v1534
          %vm1654 = vcmp.eq.s32.totalorder %v366, %v1534
          %vm1655 = vcmp.eq.s32.totalorder %v367, %v1534
          %vm1656 = vcmp.eq.s32.totalorder %v368, %v1534
          %vm1657 = vcmp.eq.s32.totalorder %v369, %v1534
          %vm1658 = vcmp.eq.s32.totalorder %v362, %v1537
          %vm1659 = vcmp.eq.s32.totalorder %v363, %v1537
          %vm1660 = vcmp.eq.s32.totalorder %v364, %v1537
          %vm1661 = vcmp.eq.s32.totalorder %v365, %v1537
          %vm1662 = vcmp.eq.s32.totalorder %v366, %v1537
          %vm1663 = vcmp.eq.s32.totalorder %v367, %v1537
          %vm1664 = vcmp.eq.s32.totalorder %v368, %v1537
          %vm1665 = vcmp.eq.s32.totalorder %v369, %v1537
          %v1666 = vsel %vm1538, 1, 0
          %v1667 = vsel %vm1539, 1, 0
          %v1668 = vsel %vm1540, 1, 0
          %v1669 = vsel %vm1541, 1, 0
          %v1670 = vsel %vm1542, 1, 0
          %v1671 = vsel %vm1543, 1, 0
          %v1672 = vsel %vm1544, 1, 0
          %v1673 = vsel %vm1545, 1, 0
          %v1674 = vsel %vm1546, 1, 0
          %v1675 = vsel %vm1547, 1, 0
          %v1676 = vsel %vm1548, 1, 0
          %v1677 = vsel %vm1549, 1, 0
          %v1678 = vsel %vm1550, 1, 0
          %v1679 = vsel %vm1551, 1, 0
          %v1680 = vsel %vm1552, 1, 0
          %v1681 = vsel %vm1553, 1, 0
          %v1682 = vsel %vm1554, 1, 0
          %v1683 = vsel %vm1555, 1, 0
          %v1684 = vsel %vm1556, 1, 0
          %v1685 = vsel %vm1557, 1, 0
          %v1686 = vsel %vm1558, 1, 0
          %v1687 = vsel %vm1559, 1, 0
          %v1688 = vsel %vm1560, 1, 0
          %v1689 = vsel %vm1561, 1, 0
          %v1690 = vsel %vm1562, 1, 0
          %v1691 = vsel %vm1563, 1, 0
          %v1692 = vsel %vm1564, 1, 0
          %v1693 = vsel %vm1565, 1, 0
          %v1694 = vsel %vm1566, 1, 0
          %v1695 = vsel %vm1567, 1, 0
          %v1696 = vsel %vm1568, 1, 0
          %v1697 = vsel %vm1569, 1, 0
          %v1698 = vsel %vm1570, 1, 0
          %v1699 = vsel %vm1571, 1, 0
          %v1700 = vsel %vm1572, 1, 0
          %v1701 = vsel %vm1573, 1, 0
          %v1702 = vsel %vm1574, 1, 0
          %v1703 = vsel %vm1575, 1, 0
          %v1704 = vsel %vm1576, 1, 0
          %v1705 = vsel %vm1577, 1, 0
          %v1706 = vsel %vm1578, 1, 0
          %v1707 = vsel %vm1579, 1, 0
          %v1708 = vsel %vm1580, 1, 0
          %v1709 = vsel %vm1581, 1, 0
          %v1710 = vsel %vm1582, 1, 0
          %v1711 = vsel %vm1583, 1, 0
          %v1712 = vsel %vm1584, 1, 0
          %v1713 = vsel %vm1585, 1, 0
          %v1714 = vsel %vm1586, 1, 0
          %v1715 = vsel %vm1587, 1, 0
          %v1716 = vsel %vm1588, 1, 0
          %v1717 = vsel %vm1589, 1, 0
          %v1718 = vsel %vm1590, 1, 0
          %v1719 = vsel %vm1591, 1, 0
          %v1720 = vsel %vm1592, 1, 0
          %v1721 = vsel %vm1593, 1, 0
          %v1722 = vsel %vm1594, 1, 0
          %v1723 = vsel %vm1595, 1, 0
          %v1724 = vsel %vm1596, 1, 0
          %v1725 = vsel %vm1597, 1, 0
          %v1726 = vsel %vm1598, 1, 0
          %v1727 = vsel %vm1599, 1, 0
          %v1728 = vsel %vm1600, 1, 0
          %v1729 = vsel %vm1601, 1, 0
          %v1730 = vsel %vm1602, 1, 0
          %v1731 = vsel %vm1603, 1, 0
          %v1732 = vsel %vm1604, 1, 0
          %v1733 = vsel %vm1605, 1, 0
          %v1734 = vsel %vm1606, 1, 0
          %v1735 = vsel %vm1607, 1, 0
          %v1736 = vsel %vm1608, 1, 0
          %v1737 = vsel %vm1609, 1, 0
          %v1738 = vsel %vm1610, 1, 0
          %v1739 = vsel %vm1611, 1, 0
          %v1740 = vsel %vm1612, 1, 0
          %v1741 = vsel %vm1613, 1, 0
          %v1742 = vsel %vm1614, 1, 0
          %v1743 = vsel %vm1615, 1, 0
          %v1744 = vsel %vm1616, 1, 0
          %v1745 = vsel %vm1617, 1, 0
          %v1746 = vsel %vm1618, 1, 0
          %v1747 = vsel %vm1619, 1, 0
          %v1748 = vsel %vm1620, 1, 0
          %v1749 = vsel %vm1621, 1, 0
          %v1750 = vsel %vm1622, 1, 0
          %v1751 = vsel %vm1623, 1, 0
          %v1752 = vsel %vm1624, 1, 0
          %v1753 = vsel %vm1625, 1, 0
          %v1754 = vsel %vm1626, 1, 0
          %v1755 = vsel %vm1627, 1, 0
          %v1756 = vsel %vm1628, 1, 0
          %v1757 = vsel %vm1629, 1, 0
          %v1758 = vsel %vm1630, 1, 0
          %v1759 = vsel %vm1631, 1, 0
          %v1760 = vsel %vm1632, 1, 0
          %v1761 = vsel %vm1633, 1, 0
          %v1762 = vsel %vm1634, 1, 0
          %v1763 = vsel %vm1635, 1, 0
          %v1764 = vsel %vm1636, 1, 0
          %v1765 = vsel %vm1637, 1, 0
          %v1766 = vsel %vm1638, 1, 0
          %v1767 = vsel %vm1639, 1, 0
          %v1768 = vsel %vm1640, 1, 0
          %v1769 = vsel %vm1641, 1, 0
          %v1770 = vsel %vm1642, 1, 0
          %v1771 = vsel %vm1643, 1, 0
          %v1772 = vsel %vm1644, 1, 0
          %v1773 = vsel %vm1645, 1, 0
          %v1774 = vsel %vm1646, 1, 0
          %v1775 = vsel %vm1647, 1, 0
          %v1776 = vsel %vm1648, 1, 0
          %v1777 = vsel %vm1649, 1, 0
          %v1778 = vsel %vm1650, 1, 0
          %v1779 = vsel %vm1651, 1, 0
          %v1780 = vsel %vm1652, 1, 0
          %v1781 = vsel %vm1653, 1, 0
          %v1782 = vsel %vm1654, 1, 0
          %v1783 = vsel %vm1655, 1, 0
          %v1784 = vsel %vm1656, 1, 0
          %v1785 = vsel %vm1657, 1, 0
          %v1786 = vsel %vm1658, 1, 0
          %v1787 = vsel %vm1659, 1, 0
          %v1788 = vsel %vm1660, 1, 0
          %v1789 = vsel %vm1661, 1, 0
          %v1790 = vsel %vm1662, 1, 0
          %v1791 = vsel %vm1663, 1, 0
          %v1792 = vsel %vm1664, 1, 0
          %v1793 = vsel %vm1665, 1, 0
          %v1794 = vcvt.s32.f32 %v1666
          %v1795 = vcvt.s32.f32 %v1667
          %v1796 = vcvt.s32.f32 %v1668
          %v1797 = vcvt.s32.f32 %v1669
          %v1798 = vcvt.s32.f32 %v1670
          %v1799 = vcvt.s32.f32 %v1671
          %v1800 = vcvt.s32.f32 %v1672
          %v1801 = vcvt.s32.f32 %v1673
          %v1802 = vcvt.s32.f32 %v1674
          %v1803 = vcvt.s32.f32 %v1675
          %v1804 = vcvt.s32.f32 %v1676
          %v1805 = vcvt.s32.f32 %v1677
          %v1806 = vcvt.s32.f32 %v1678
          %v1807 = vcvt.s32.f32 %v1679
          %v1808 = vcvt.s32.f32 %v1680
          %v1809 = vcvt.s32.f32 %v1681
          %v1810 = vcvt.s32.f32 %v1682
          %v1811 = vcvt.s32.f32 %v1683
          %v1812 = vcvt.s32.f32 %v1684
          %v1813 = vcvt.s32.f32 %v1685
          %v1814 = vcvt.s32.f32 %v1686
          %v1815 = vcvt.s32.f32 %v1687
          %v1816 = vcvt.s32.f32 %v1688
          %v1817 = vcvt.s32.f32 %v1689
          %v1818 = vcvt.s32.f32 %v1690
          %v1819 = vcvt.s32.f32 %v1691
          %v1820 = vcvt.s32.f32 %v1692
          %v1821 = vcvt.s32.f32 %v1693
          %v1822 = vcvt.s32.f32 %v1694
          %v1823 = vcvt.s32.f32 %v1695
          %v1824 = vcvt.s32.f32 %v1696
          %v1825 = vcvt.s32.f32 %v1697
          %v1826 = vcvt.s32.f32 %v1698
          %v1827 = vcvt.s32.f32 %v1699
          %v1828 = vcvt.s32.f32 %v1700
          %v1829 = vcvt.s32.f32 %v1701
          %v1830 = vcvt.s32.f32 %v1702
          %v1831 = vcvt.s32.f32 %v1703
          %v1832 = vcvt.s32.f32 %v1704
          %v1833 = vcvt.s32.f32 %v1705
          %v1834 = vcvt.s32.f32 %v1706
          %v1835 = vcvt.s32.f32 %v1707
          %v1836 = vcvt.s32.f32 %v1708
          %v1837 = vcvt.s32.f32 %v1709
          %v1838 = vcvt.s32.f32 %v1710
          %v1839 = vcvt.s32.f32 %v1711
          %v1840 = vcvt.s32.f32 %v1712
          %v1841 = vcvt.s32.f32 %v1713
          %v1842 = vcvt.s32.f32 %v1714
          %v1843 = vcvt.s32.f32 %v1715
          %v1844 = vcvt.s32.f32 %v1716
          %v1845 = vcvt.s32.f32 %v1717
          %v1846 = vcvt.s32.f32 %v1718
          %v1847 = vcvt.s32.f32 %v1719
          %v1848 = vcvt.s32.f32 %v1720
          %v1849 = vcvt.s32.f32 %v1721
          %v1850 = vcvt.s32.f32 %v1722
          %v1851 = vcvt.s32.f32 %v1723
          %v1852 = vcvt.s32.f32 %v1724
          %v1853 = vcvt.s32.f32 %v1725
          %v1854 = vcvt.s32.f32 %v1726
          %v1855 = vcvt.s32.f32 %v1727
          %v1856 = vcvt.s32.f32 %v1728
          %v1857 = vcvt.s32.f32 %v1729
          %v1858 = vcvt.s32.f32 %v1730
          %v1859 = vcvt.s32.f32 %v1731
          %v1860 = vcvt.s32.f32 %v1732
          %v1861 = vcvt.s32.f32 %v1733
          %v1862 = vcvt.s32.f32 %v1734
          %v1863 = vcvt.s32.f32 %v1735
          %v1864 = vcvt.s32.f32 %v1736
          %v1865 = vcvt.s32.f32 %v1737
          %v1866 = vcvt.s32.f32 %v1738
          %v1867 = vcvt.s32.f32 %v1739
          %v1868 = vcvt.s32.f32 %v1740
          %v1869 = vcvt.s32.f32 %v1741
          %v1870 = vcvt.s32.f32 %v1742
          %v1871 = vcvt.s32.f32 %v1743
          %v1872 = vcvt.s32.f32 %v1744
          %v1873 = vcvt.s32.f32 %v1745
          %v1874 = vcvt.s32.f32 %v1746
          %v1875 = vcvt.s32.f32 %v1747
          %v1876 = vcvt.s32.f32 %v1748
          %v1877 = vcvt.s32.f32 %v1749
          %v1878 = vcvt.s32.f32 %v1750
          %v1879 = vcvt.s32.f32 %v1751
          %v1880 = vcvt.s32.f32 %v1752
          %v1881 = vcvt.s32.f32 %v1753
          %v1882 = vcvt.s32.f32 %v1754
          %v1883 = vcvt.s32.f32 %v1755
          %v1884 = vcvt.s32.f32 %v1756
          %v1885 = vcvt.s32.f32 %v1757
          %v1886 = vcvt.s32.f32 %v1758
          %v1887 = vcvt.s32.f32 %v1759
          %v1888 = vcvt.s32.f32 %v1760
          %v1889 = vcvt.s32.f32 %v1761
          %v1890 = vcvt.s32.f32 %v1762
          %v1891 = vcvt.s32.f32 %v1763
          %v1892 = vcvt.s32.f32 %v1764
          %v1893 = vcvt.s32.f32 %v1765
          %v1894 = vcvt.s32.f32 %v1766
          %v1895 = vcvt.s32.f32 %v1767
          %v1896 = vcvt.s32.f32 %v1768
          %v1897 = vcvt.s32.f32 %v1769
          %v1898 = vcvt.s32.f32 %v1770
          %v1899 = vcvt.s32.f32 %v1771
          %v1900 = vcvt.s32.f32 %v1772
          %v1901 = vcvt.s32.f32 %v1773
          %v1902 = vcvt.s32.f32 %v1774
          %v1903 = vcvt.s32.f32 %v1775
          %v1904 = vcvt.s32.f32 %v1776
          %v1905 = vcvt.s32.f32 %v1777
          %v1906 = vcvt.s32.f32 %v1778
          %v1907 = vcvt.s32.f32 %v1779
          %v1908 = vcvt.s32.f32 %v1780
          %v1909 = vcvt.s32.f32 %v1781
          %v1910 = vcvt.s32.f32 %v1782
          %v1911 = vcvt.s32.f32 %v1783
          %v1912 = vcvt.s32.f32 %v1784
          %v1913 = vcvt.s32.f32 %v1785
          %v1914 = vcvt.s32.f32 %v1786
          %v1915 = vcvt.s32.f32 %v1787
          %v1916 = vcvt.s32.f32 %v1788
          %v1917 = vcvt.s32.f32 %v1789
          %v1918 = vcvt.s32.f32 %v1790
          %v1919 = vcvt.s32.f32 %v1791
          %v1920 = vcvt.s32.f32 %v1792
          %v1921 = vcvt.s32.f32 %v1793
          %v1922 = vadd.f32 %v1362, %v1794
          %v1923 = vadd.f32 %v1363, %v1795
          %v1924 = vadd.f32 %v1364, %v1796
          %v1925 = vadd.f32 %v1365, %v1797
          %v1926 = vadd.f32 %v1366, %v1798
          %v1927 = vadd.f32 %v1367, %v1799
          %v1928 = vadd.f32 %v1368, %v1800
          %v1929 = vadd.f32 %v1369, %v1801
          %v1930 = vadd.f32 %v1370, %v1802
          %v1931 = vadd.f32 %v1371, %v1803
          %v1932 = vadd.f32 %v1372, %v1804
          %v1933 = vadd.f32 %v1373, %v1805
          %v1934 = vadd.f32 %v1374, %v1806
          %v1935 = vadd.f32 %v1375, %v1807
          %v1936 = vadd.f32 %v1376, %v1808
          %v1937 = vadd.f32 %v1377, %v1809
          %v1938 = vadd.f32 %v1378, %v1810
          %v1939 = vadd.f32 %v1379, %v1811
          %v1940 = vadd.f32 %v1380, %v1812
          %v1941 = vadd.f32 %v1381, %v1813
          %v1942 = vadd.f32 %v1382, %v1814
          %v1943 = vadd.f32 %v1383, %v1815
          %v1944 = vadd.f32 %v1384, %v1816
          %v1945 = vadd.f32 %v1385, %v1817
          %v1946 = vadd.f32 %v1386, %v1818
          %v1947 = vadd.f32 %v1387, %v1819
          %v1948 = vadd.f32 %v1388, %v1820
          %v1949 = vadd.f32 %v1389, %v1821
          %v1950 = vadd.f32 %v1390, %v1822
          %v1951 = vadd.f32 %v1391, %v1823
          %v1952 = vadd.f32 %v1392, %v1824
          %v1953 = vadd.f32 %v1393, %v1825
          %v1954 = vadd.f32 %v1394, %v1826
          %v1955 = vadd.f32 %v1395, %v1827
          %v1956 = vadd.f32 %v1396, %v1828
          %v1957 = vadd.f32 %v1397, %v1829
          %v1958 = vadd.f32 %v1398, %v1830
          %v1959 = vadd.f32 %v1399, %v1831
          %v1960 = vadd.f32 %v1400, %v1832
          %v1961 = vadd.f32 %v1401, %v1833
          %v1962 = vadd.f32 %v1402, %v1834
          %v1963 = vadd.f32 %v1403, %v1835
          %v1964 = vadd.f32 %v1404, %v1836
          %v1965 = vadd.f32 %v1405, %v1837
          %v1966 = vadd.f32 %v1406, %v1838
          %v1967 = vadd.f32 %v1407, %v1839
          %v1968 = vadd.f32 %v1408, %v1840
          %v1969 = vadd.f32 %v1409, %v1841
          %v1970 = vadd.f32 %v1410, %v1842
          %v1971 = vadd.f32 %v1411, %v1843
          %v1972 = vadd.f32 %v1412, %v1844
          %v1973 = vadd.f32 %v1413, %v1845
          %v1974 = vadd.f32 %v1414, %v1846
          %v1975 = vadd.f32 %v1415, %v1847
          %v1976 = vadd.f32 %v1416, %v1848
          %v1977 = vadd.f32 %v1417, %v1849
          %v1978 = vadd.f32 %v1418, %v1850
          %v1979 = vadd.f32 %v1419, %v1851
          %v1980 = vadd.f32 %v1420, %v1852
          %v1981 = vadd.f32 %v1421, %v1853
          %v1982 = vadd.f32 %v1422, %v1854
          %v1983 = vadd.f32 %v1423, %v1855
          %v1984 = vadd.f32 %v1424, %v1856
          %v1985 = vadd.f32 %v1425, %v1857
          %v1986 = vadd.f32 %v1426, %v1858
          %v1987 = vadd.f32 %v1427, %v1859
          %v1988 = vadd.f32 %v1428, %v1860
          %v1989 = vadd.f32 %v1429, %v1861
          %v1990 = vadd.f32 %v1430, %v1862
          %v1991 = vadd.f32 %v1431, %v1863
          %v1992 = vadd.f32 %v1432, %v1864
          %v1993 = vadd.f32 %v1433, %v1865
          %v1994 = vadd.f32 %v1434, %v1866
          %v1995 = vadd.f32 %v1435, %v1867
          %v1996 = vadd.f32 %v1436, %v1868
          %v1997 = vadd.f32 %v1437, %v1869
          %v1998 = vadd.f32 %v1438, %v1870
          %v1999 = vadd.f32 %v1439, %v1871
          %v2000 = vadd.f32 %v1440, %v1872
          %v2001 = vadd.f32 %v1441, %v1873
          %v2002 = vadd.f32 %v1442, %v1874
          %v2003 = vadd.f32 %v1443, %v1875
          %v2004 = vadd.f32 %v1444, %v1876
          %v2005 = vadd.f32 %v1445, %v1877
          %v2006 = vadd.f32 %v1446, %v1878
          %v2007 = vadd.f32 %v1447, %v1879
          %v2008 = vadd.f32 %v1448, %v1880
          %v2009 = vadd.f32 %v1449, %v1881
          %v2010 = vadd.f32 %v1450, %v1882
          %v2011 = vadd.f32 %v1451, %v1883
          %v2012 = vadd.f32 %v1452, %v1884
          %v2013 = vadd.f32 %v1453, %v1885
          %v2014 = vadd.f32 %v1454, %v1886
          %v2015 = vadd.f32 %v1455, %v1887
          %v2016 = vadd.f32 %v1456, %v1888
          %v2017 = vadd.f32 %v1457, %v1889
          %v2018 = vadd.f32 %v1458, %v1890
          %v2019 = vadd.f32 %v1459, %v1891
          %v2020 = vadd.f32 %v1460, %v1892
          %v2021 = vadd.f32 %v1461, %v1893
          %v2022 = vadd.f32 %v1462, %v1894
          %v2023 = vadd.f32 %v1463, %v1895
          %v2024 = vadd.f32 %v1464, %v1896
          %v2025 = vadd.f32 %v1465, %v1897
          %v2026 = vadd.f32 %v1466, %v1898
          %v2027 = vadd.f32 %v1467, %v1899
          %v2028 = vadd.f32 %v1468, %v1900
          %v2029 = vadd.f32 %v1469, %v1901
          %v2030 = vadd.f32 %v1470, %v1902
          %v2031 = vadd.f32 %v1471, %v1903
          %v2032 = vadd.f32 %v1472, %v1904
          %v2033 = vadd.f32 %v1473, %v1905
          %v2034 = vadd.f32 %v1474, %v1906
          %v2035 = vadd.f32 %v1475, %v1907
          %v2036 = vadd.f32 %v1476, %v1908
          %v2037 = vadd.f32 %v1477, %v1909
          %v2038 = vadd.f32 %v1478, %v1910
          %v2039 = vadd.f32 %v1479, %v1911
          %v2040 = vadd.f32 %v1480, %v1912
          %v2041 = vadd.f32 %v1481, %v1913
          %v2042 = vadd.f32 %v1482, %v1914
          %v2043 = vadd.f32 %v1483, %v1915
          %v2044 = vadd.f32 %v1484, %v1916
          %v2045 = vadd.f32 %v1485, %v1917
          %v2046 = vadd.f32 %v1486, %v1918
          %v2047 = vadd.f32 %v1487, %v1919
          %v2048 = vadd.f32 %v1488, %v1920
          %v2049 = vadd.f32 %v1489, %v1921
          %v2050 = vpack.c.bf16 %v1930, %v1922
          %v2051 = vpack.c.bf16 %v1931, %v1923
          %v2052 = vpack.c.bf16 %v1932, %v1924
          %v2053 = vpack.c.bf16 %v1933, %v1925
          %v2054 = vpack.c.bf16 %v1934, %v1926
          %v2055 = vpack.c.bf16 %v1935, %v1927
          %v2056 = vpack.c.bf16 %v1936, %v1928
          %v2057 = vpack.c.bf16 %v1937, %v1929
          %v2058 = vpack.c.bf16 %v1946, %v1938
          %v2059 = vpack.c.bf16 %v1947, %v1939
          %v2060 = vpack.c.bf16 %v1948, %v1940
          %v2061 = vpack.c.bf16 %v1949, %v1941
          %v2062 = vpack.c.bf16 %v1950, %v1942
          %v2063 = vpack.c.bf16 %v1951, %v1943
          %v2064 = vpack.c.bf16 %v1952, %v1944
          %v2065 = vpack.c.bf16 %v1953, %v1945
          %v2066 = vpack.c.bf16 %v1962, %v1954
          %v2067 = vpack.c.bf16 %v1963, %v1955
          %v2068 = vpack.c.bf16 %v1964, %v1956
          %v2069 = vpack.c.bf16 %v1965, %v1957
          %v2070 = vpack.c.bf16 %v1966, %v1958
          %v2071 = vpack.c.bf16 %v1967, %v1959
          %v2072 = vpack.c.bf16 %v1968, %v1960
          %v2073 = vpack.c.bf16 %v1969, %v1961
          %v2074 = vpack.c.bf16 %v1978, %v1970
          %v2075 = vpack.c.bf16 %v1979, %v1971
          %v2076 = vpack.c.bf16 %v1980, %v1972
          %v2077 = vpack.c.bf16 %v1981, %v1973
          %v2078 = vpack.c.bf16 %v1982, %v1974
          %v2079 = vpack.c.bf16 %v1983, %v1975
          %v2080 = vpack.c.bf16 %v1984, %v1976
          %v2081 = vpack.c.bf16 %v1985, %v1977
          %v2082 = vpack.c.bf16 %v1994, %v1986
          %v2083 = vpack.c.bf16 %v1995, %v1987
          %v2084 = vpack.c.bf16 %v1996, %v1988
          %v2085 = vpack.c.bf16 %v1997, %v1989
          %v2086 = vpack.c.bf16 %v1998, %v1990
          %v2087 = vpack.c.bf16 %v1999, %v1991
          %v2088 = vpack.c.bf16 %v2000, %v1992
          %v2089 = vpack.c.bf16 %v2001, %v1993
          %v2090 = vpack.c.bf16 %v2010, %v2002
          %v2091 = vpack.c.bf16 %v2011, %v2003
          %v2092 = vpack.c.bf16 %v2012, %v2004
          %v2093 = vpack.c.bf16 %v2013, %v2005
          %v2094 = vpack.c.bf16 %v2014, %v2006
          %v2095 = vpack.c.bf16 %v2015, %v2007
          %v2096 = vpack.c.bf16 %v2016, %v2008
          %v2097 = vpack.c.bf16 %v2017, %v2009
          %v2098 = vpack.c.bf16 %v2026, %v2018
          %v2099 = vpack.c.bf16 %v2027, %v2019
          %v2100 = vpack.c.bf16 %v2028, %v2020
          %v2101 = vpack.c.bf16 %v2029, %v2021
          %v2102 = vpack.c.bf16 %v2030, %v2022
          %v2103 = vpack.c.bf16 %v2031, %v2023
          %v2104 = vpack.c.bf16 %v2032, %v2024
          %v2105 = vpack.c.bf16 %v2033, %v2025
          %v2106 = vpack.c.bf16 %v2042, %v2034
          %v2107 = vpack.c.bf16 %v2043, %v2035
          %v2108 = vpack.c.bf16 %v2044, %v2036
          %v2109 = vpack.c.bf16 %v2045, %v2037
          %v2110 = vpack.c.bf16 %v2046, %v2038
          %v2111 = vpack.c.bf16 %v2047, %v2039
          %v2112 = vpack.c.bf16 %v2048, %v2040
          %v2113 = vpack.c.bf16 %v2049, %v2041
          %v2114 = vld [vmem:[#allocation5] sm:$0xf]
          %v2115 = vld [vmem:[#allocation5 + $0x4] sm:$0xf]
          %v2116 = vld [vmem:[#allocation5 + $0x8] sm:$0xf]
          %v2117 = vld [vmem:[#allocation5 + $0xc] sm:$0xf]
          %v2118 = vld [vmem:[#allocation5 + $0x10] sm:$0xf]
          %v2119 = vld [vmem:[#allocation5 + $0x14] sm:$0xf]
          %v2120 = vld [vmem:[#allocation5 + $0x18] sm:$0xf]
          %v2121 = vld [vmem:[#allocation5 + $0x1c] sm:$0xf]
          %v2122 = vld [vmem:[#allocation5 + $0x20] sm:$0xf]
          %v2123 = vld [vmem:[#allocation5 + $0x24] sm:$0xf]
          %v2124 = vld [vmem:[#allocation5 + $0x28] sm:$0xf]
          %v2125 = vld [vmem:[#allocation5 + $0x2c] sm:$0xf]
          %v2126 = vld [vmem:[#allocation5 + $0x30] sm:$0xf]
          %v2127 = vld [vmem:[#allocation5 + $0x34] sm:$0xf]
          %v2128 = vld [vmem:[#allocation5 + $0x38] sm:$0xf]
          %v2129 = vld [vmem:[#allocation5 + $0x3c] sm:$0xf]
          %v2130 = vld [vmem:[#allocation5 + $0x40] sm:$0xf]
          %v2131 = vld [vmem:[#allocation5 + $0x44] sm:$0xf]
          %v2132 = vld [vmem:[#allocation5 + $0x48] sm:$0xf]
          %v2133 = vld [vmem:[#allocation5 + $0x4c] sm:$0xf]
          %v2134 = vld [vmem:[#allocation5 + $0x50] sm:$0xf]
          %v2135 = vld [vmem:[#allocation5 + $0x54] sm:$0xf]
          %v2136 = vld [vmem:[#allocation5 + $0x58] sm:$0xf]
          %v2137 = vld [vmem:[#allocation5 + $0x5c] sm:$0xf]
          %v2138 = vld [vmem:[#allocation5 + $0x60] sm:$0xf]
          %v2139 = vld [vmem:[#allocation5 + $0x64] sm:$0xf]
          %v2140 = vld [vmem:[#allocation5 + $0x68] sm:$0xf]
          %v2141 = vld [vmem:[#allocation5 + $0x6c] sm:$0xf]
          %v2142 = vld [vmem:[#allocation5 + $0x70] sm:$0xf]
          %v2143 = vld [vmem:[#allocation5 + $0x74] sm:$0xf]
          %v2144 = vld [vmem:[#allocation5 + $0x78] sm:$0xf]
          %v2145 = vld [vmem:[#allocation5 + $0x7c] sm:$0xf]
          %v2146 = vld [vmem:[#allocation5 + $0x80] sm:$0xf]
          %v2147 = vld [vmem:[#allocation5 + $0x84] sm:$0xf]
          %v2148 = vld [vmem:[#allocation5 + $0x88] sm:$0xf]
          %v2149 = vld [vmem:[#allocation5 + $0x8c] sm:$0xf]
          %v2150 = vld [vmem:[#allocation5 + $0x90] sm:$0xf]
          %v2151 = vld [vmem:[#allocation5 + $0x94] sm:$0xf]
          %v2152 = vld [vmem:[#allocation5 + $0x98] sm:$0xf]
          %v2153 = vld [vmem:[#allocation5 + $0x9c] sm:$0xf]
          %v2154 = vld [vmem:[#allocation5 + $0xa0] sm:$0xf]
          %v2155 = vld [vmem:[#allocation5 + $0xa4] sm:$0xf]
          %v2156 = vld [vmem:[#allocation5 + $0xa8] sm:$0xf]
          %v2157 = vld [vmem:[#allocation5 + $0xac] sm:$0xf]
          %v2158 = vld [vmem:[#allocation5 + $0xb0] sm:$0xf]
          %v2159 = vld [vmem:[#allocation5 + $0xb4] sm:$0xf]
          %v2160 = vld [vmem:[#allocation5 + $0xb8] sm:$0xf]
          %v2161 = vld [vmem:[#allocation5 + $0xbc] sm:$0xf]
          %v2162 = vld [vmem:[#allocation5 + $0xc0] sm:$0xf]
          %v2163 = vld [vmem:[#allocation5 + $0xc4] sm:$0xf]
          %v2164 = vld [vmem:[#allocation5 + $0xc8] sm:$0xf]
          %v2165 = vld [vmem:[#allocation5 + $0xcc] sm:$0xf]
          %v2166 = vld [vmem:[#allocation5 + $0xd0] sm:$0xf]
          %v2167 = vld [vmem:[#allocation5 + $0xd4] sm:$0xf]
          %v2168 = vld [vmem:[#allocation5 + $0xd8] sm:$0xf]
          %v2169 = vld [vmem:[#allocation5 + $0xdc] sm:$0xf]
          %v2170 = vld [vmem:[#allocation5 + $0xe0] sm:$0xf]
          %v2171 = vld [vmem:[#allocation5 + $0xe4] sm:$0xf]
          %v2172 = vld [vmem:[#allocation5 + $0xe8] sm:$0xf]
          %v2173 = vld [vmem:[#allocation5 + $0xec] sm:$0xf]
          %v2174 = vld [vmem:[#allocation5 + $0xf0] sm:$0xf]
          %v2175 = vld [vmem:[#allocation5 + $0xf4] sm:$0xf]
          %v2176 = vld [vmem:[#allocation5 + $0xf8] sm:$0xf]
          %v2177 = vld [vmem:[#allocation5 + $0xfc] sm:$0xf]
          %v2178 = vld [vmem:[#allocation5 + $0x100] sm:$0xf]
          %v2179 = vld [vmem:[#allocation5 + $0x104] sm:$0xf]
          %v2180 = vld [vmem:[#allocation5 + $0x108] sm:$0xf]
          %v2181 = vld [vmem:[#allocation5 + $0x10c] sm:$0xf]
          %v2182 = vld [vmem:[#allocation5 + $0x110] sm:$0xf]
          %v2183 = vld [vmem:[#allocation5 + $0x114] sm:$0xf]
          %v2184 = vld [vmem:[#allocation5 + $0x118] sm:$0xf]
          %v2185 = vld [vmem:[#allocation5 + $0x11c] sm:$0xf]
          %v2186 = vld [vmem:[#allocation5 + $0x120] sm:$0xf]
          %v2187 = vld [vmem:[#allocation5 + $0x124] sm:$0xf]
          %v2188 = vld [vmem:[#allocation5 + $0x128] sm:$0xf]
          %v2189 = vld [vmem:[#allocation5 + $0x12c] sm:$0xf]
          %v2190 = vld [vmem:[#allocation5 + $0x130] sm:$0xf]
          %v2191 = vld [vmem:[#allocation5 + $0x134] sm:$0xf]
          %v2192 = vld [vmem:[#allocation5 + $0x138] sm:$0xf]
          %v2193 = vld [vmem:[#allocation5 + $0x13c] sm:$0xf]
          %v2194 = vld [vmem:[#allocation5 + $0x140] sm:$0xf]
          %v2195 = vld [vmem:[#allocation5 + $0x144] sm:$0xf]
          %v2196 = vld [vmem:[#allocation5 + $0x148] sm:$0xf]
          %v2197 = vld [vmem:[#allocation5 + $0x14c] sm:$0xf]
          %v2198 = vld [vmem:[#allocation5 + $0x150] sm:$0xf]
          %v2199 = vld [vmem:[#allocation5 + $0x154] sm:$0xf]
          %v2200 = vld [vmem:[#allocation5 + $0x158] sm:$0xf]
          %v2201 = vld [vmem:[#allocation5 + $0x15c] sm:$0xf]
          %v2202 = vld [vmem:[#allocation5 + $0x160] sm:$0xf]
          %v2203 = vld [vmem:[#allocation5 + $0x164] sm:$0xf]
          %v2204 = vld [vmem:[#allocation5 + $0x168] sm:$0xf]
          %v2205 = vld [vmem:[#allocation5 + $0x16c] sm:$0xf]
          %v2206 = vld [vmem:[#allocation5 + $0x170] sm:$0xf]
          %v2207 = vld [vmem:[#allocation5 + $0x174] sm:$0xf]
          %v2208 = vld [vmem:[#allocation5 + $0x178] sm:$0xf]
          %v2209 = vld [vmem:[#allocation5 + $0x17c] sm:$0xf]
          %v2210 = vld [vmem:[#allocation5 + $0x180] sm:$0xf]
          %v2211 = vld [vmem:[#allocation5 + $0x184] sm:$0xf]
          %v2212 = vld [vmem:[#allocation5 + $0x188] sm:$0xf]
          %v2213 = vld [vmem:[#allocation5 + $0x18c] sm:$0xf]
          %v2214 = vld [vmem:[#allocation5 + $0x190] sm:$0xf]
          %v2215 = vld [vmem:[#allocation5 + $0x194] sm:$0xf]
          %v2216 = vld [vmem:[#allocation5 + $0x198] sm:$0xf]
          %v2217 = vld [vmem:[#allocation5 + $0x19c] sm:$0xf]
          %v2218 = vld [vmem:[#allocation5 + $0x1a0] sm:$0xf]
          %v2219 = vld [vmem:[#allocation5 + $0x1a4] sm:$0xf]
          %v2220 = vld [vmem:[#allocation5 + $0x1a8] sm:$0xf]
          %v2221 = vld [vmem:[#allocation5 + $0x1ac] sm:$0xf]
          %v2222 = vld [vmem:[#allocation5 + $0x1b0] sm:$0xf]
          %v2223 = vld [vmem:[#allocation5 + $0x1b4] sm:$0xf]
          %v2224 = vld [vmem:[#allocation5 + $0x1b8] sm:$0xf]
          %v2225 = vld [vmem:[#allocation5 + $0x1bc] sm:$0xf]
          %v2226 = vld [vmem:[#allocation5 + $0x1c0] sm:$0xf]
          %v2227 = vld [vmem:[#allocation5 + $0x1c4] sm:$0xf]
          %v2228 = vld [vmem:[#allocation5 + $0x1c8] sm:$0xf]
          %v2229 = vld [vmem:[#allocation5 + $0x1cc] sm:$0xf]
          %v2230 = vld [vmem:[#allocation5 + $0x1d0] sm:$0xf]
          %v2231 = vld [vmem:[#allocation5 + $0x1d4] sm:$0xf]
          %v2232 = vld [vmem:[#allocation5 + $0x1d8] sm:$0xf]
          %v2233 = vld [vmem:[#allocation5 + $0x1dc] sm:$0xf]
          %v2234 = vld [vmem:[#allocation5 + $0x1e0] sm:$0xf]
          %v2235 = vld [vmem:[#allocation5 + $0x1e4] sm:$0xf]
          %v2236 = vld [vmem:[#allocation5 + $0x1e8] sm:$0xf]
          %v2237 = vld [vmem:[#allocation5 + $0x1ec] sm:$0xf]
          %v2238 = vld [vmem:[#allocation5 + $0x1f0] sm:$0xf]
          %v2239 = vld [vmem:[#allocation5 + $0x1f4] sm:$0xf]
          %v2240 = vld [vmem:[#allocation5 + $0x1f8] sm:$0xf]
          %v2241 = vld [vmem:[#allocation5 + $0x1fc] sm:$0xf]
          %v2370 = vunpack.c.l.b16 %v2114
          %v2371 = vunpack.c.l.b16 %v2115
          %v2372 = vunpack.c.l.b16 %v2116
          %v2373 = vunpack.c.l.b16 %v2117
          %v2374 = vunpack.c.l.b16 %v2118
          %v2375 = vunpack.c.l.b16 %v2119
          %v2376 = vunpack.c.l.b16 %v2120
          %v2377 = vunpack.c.l.b16 %v2121
          %v2378 = vunpack.c.l.b16 %v2122
          %v2379 = vunpack.c.l.b16 %v2123
          %v2380 = vunpack.c.l.b16 %v2124
          %v2381 = vunpack.c.l.b16 %v2125
          %v2382 = vunpack.c.l.b16 %v2126
          %v2383 = vunpack.c.l.b16 %v2127
          %v2384 = vunpack.c.l.b16 %v2128
          %v2385 = vunpack.c.l.b16 %v2129
          %v2386 = vunpack.c.l.b16 %v2130
          %v2387 = vunpack.c.l.b16 %v2131
          %v2388 = vunpack.c.l.b16 %v2132
          %v2389 = vunpack.c.l.b16 %v2133
          %v2390 = vunpack.c.l.b16 %v2134
          %v2391 = vunpack.c.l.b16 %v2135
          %v2392 = vunpack.c.l.b16 %v2136
          %v2393 = vunpack.c.l.b16 %v2137
          %v2394 = vunpack.c.l.b16 %v2138
          %v2395 = vunpack.c.l.b16 %v2139
          %v2396 = vunpack.c.l.b16 %v2140
          %v2397 = vunpack.c.l.b16 %v2141
          %v2398 = vunpack.c.l.b16 %v2142
          %v2399 = vunpack.c.l.b16 %v2143
          %v2400 = vunpack.c.l.b16 %v2144
          %v2401 = vunpack.c.l.b16 %v2145
          %v2402 = vunpack.c.l.b16 %v2146
          %v2403 = vunpack.c.l.b16 %v2147
          %v2404 = vunpack.c.l.b16 %v2148
          %v2405 = vunpack.c.l.b16 %v2149
          %v2406 = vunpack.c.l.b16 %v2150
          %v2407 = vunpack.c.l.b16 %v2151
          %v2408 = vunpack.c.l.b16 %v2152
          %v2409 = vunpack.c.l.b16 %v2153
          %v2410 = vunpack.c.l.b16 %v2154
          %v2411 = vunpack.c.l.b16 %v2155
          %v2412 = vunpack.c.l.b16 %v2156
          %v2413 = vunpack.c.l.b16 %v2157
          %v2414 = vunpack.c.l.b16 %v2158
          %v2415 = vunpack.c.l.b16 %v2159
          %v2416 = vunpack.c.l.b16 %v2160
          %v2417 = vunpack.c.l.b16 %v2161
          %v2418 = vunpack.c.l.b16 %v2162
          %v2419 = vunpack.c.l.b16 %v2163
          %v2420 = vunpack.c.l.b16 %v2164
          %v2421 = vunpack.c.l.b16 %v2165
          %v2422 = vunpack.c.l.b16 %v2166
          %v2423 = vunpack.c.l.b16 %v2167
          %v2424 = vunpack.c.l.b16 %v2168
          %v2425 = vunpack.c.l.b16 %v2169
          %v2426 = vunpack.c.l.b16 %v2170
          %v2427 = vunpack.c.l.b16 %v2171
          %v2428 = vunpack.c.l.b16 %v2172
          %v2429 = vunpack.c.l.b16 %v2173
          %v2430 = vunpack.c.l.b16 %v2174
          %v2431 = vunpack.c.l.b16 %v2175
          %v2432 = vunpack.c.l.b16 %v2176
          %v2433 = vunpack.c.l.b16 %v2177
          %v2434 = vunpack.c.l.b16 %v2178
          %v2435 = vunpack.c.l.b16 %v2179
          %v2436 = vunpack.c.l.b16 %v2180
          %v2437 = vunpack.c.l.b16 %v2181
          %v2438 = vunpack.c.l.b16 %v2182
          %v2439 = vunpack.c.l.b16 %v2183
          %v2440 = vunpack.c.l.b16 %v2184
          %v2441 = vunpack.c.l.b16 %v2185
          %v2442 = vunpack.c.l.b16 %v2186
          %v2443 = vunpack.c.l.b16 %v2187
          %v2444 = vunpack.c.l.b16 %v2188
          %v2445 = vunpack.c.l.b16 %v2189
          %v2446 = vunpack.c.l.b16 %v2190
          %v2447 = vunpack.c.l.b16 %v2191
          %v2448 = vunpack.c.l.b16 %v2192
          %v2449 = vunpack.c.l.b16 %v2193
          %v2450 = vunpack.c.l.b16 %v2194
          %v2451 = vunpack.c.l.b16 %v2195
          %v2452 = vunpack.c.l.b16 %v2196
          %v2453 = vunpack.c.l.b16 %v2197
          %v2454 = vunpack.c.l.b16 %v2198
          %v2455 = vunpack.c.l.b16 %v2199
          %v2456 = vunpack.c.l.b16 %v2200
          %v2457 = vunpack.c.l.b16 %v2201
          %v2458 = vunpack.c.l.b16 %v2202
          %v2459 = vunpack.c.l.b16 %v2203
          %v2460 = vunpack.c.l.b16 %v2204
          %v2461 = vunpack.c.l.b16 %v2205
          %v2462 = vunpack.c.l.b16 %v2206
          %v2463 = vunpack.c.l.b16 %v2207
          %v2464 = vunpack.c.l.b16 %v2208
          %v2465 = vunpack.c.l.b16 %v2209
          %v2466 = vunpack.c.l.b16 %v2210
          %v2467 = vunpack.c.l.b16 %v2211
          %v2468 = vunpack.c.l.b16 %v2212
          %v2469 = vunpack.c.l.b16 %v2213
          %v2470 = vunpack.c.l.b16 %v2214
          %v2471 = vunpack.c.l.b16 %v2215
          %v2472 = vunpack.c.l.b16 %v2216
          %v2473 = vunpack.c.l.b16 %v2217
          %v2474 = vunpack.c.l.b16 %v2218
          %v2475 = vunpack.c.l.b16 %v2219
          %v2476 = vunpack.c.l.b16 %v2220
          %v2477 = vunpack.c.l.b16 %v2221
          %v2478 = vunpack.c.l.b16 %v2222
          %v2479 = vunpack.c.l.b16 %v2223
          %v2480 = vunpack.c.l.b16 %v2224
          %v2481 = vunpack.c.l.b16 %v2225
          %v2482 = vunpack.c.l.b16 %v2226
          %v2483 = vunpack.c.l.b16 %v2227
          %v2484 = vunpack.c.l.b16 %v2228
          %v2485 = vunpack.c.l.b16 %v2229
          %v2486 = vunpack.c.l.b16 %v2230
          %v2487 = vunpack.c.l.b16 %v2231
          %v2488 = vunpack.c.l.b16 %v2232
          %v2489 = vunpack.c.l.b16 %v2233
          %v2490 = vunpack.c.l.b16 %v2234
          %v2491 = vunpack.c.l.b16 %v2235
          %v2492 = vunpack.c.l.b16 %v2236
          %v2493 = vunpack.c.l.b16 %v2237
          %v2494 = vunpack.c.l.b16 %v2238
          %v2495 = vunpack.c.l.b16 %v2239
          %v2496 = vunpack.c.l.b16 %v2240
          %v2497 = vunpack.c.l.b16 %v2241
          %v2498 = vpack.c.b16 %v2371, %v2370
          %v2499 = vpack.c.b16 %v2373, %v2372
          %v2500 = vpack.c.b16 %v2375, %v2374
          %v2501 = vpack.c.b16 %v2377, %v2376
          %v2502 = vpack.c.b16 %v2379, %v2378
          %v2503 = vpack.c.b16 %v2381, %v2380
          %v2504 = vpack.c.b16 %v2383, %v2382
          %v2505 = vpack.c.b16 %v2385, %v2384
          %v2506 = vpack.c.b16 %v2387, %v2386
          %v2507 = vpack.c.b16 %v2389, %v2388
          %v2508 = vpack.c.b16 %v2391, %v2390
          %v2509 = vpack.c.b16 %v2393, %v2392
          %v2510 = vpack.c.b16 %v2395, %v2394
          %v2511 = vpack.c.b16 %v2397, %v2396
          %v2512 = vpack.c.b16 %v2399, %v2398
          %v2513 = vpack.c.b16 %v2401, %v2400
          %v2514 = vpack.c.b16 %v2403, %v2402
          %v2515 = vpack.c.b16 %v2405, %v2404
          %v2516 = vpack.c.b16 %v2407, %v2406
          %v2517 = vpack.c.b16 %v2409, %v2408
          %v2518 = vpack.c.b16 %v2411, %v2410
          %v2519 = vpack.c.b16 %v2413, %v2412
          %v2520 = vpack.c.b16 %v2415, %v2414
          %v2521 = vpack.c.b16 %v2417, %v2416
          %v2522 = vpack.c.b16 %v2419, %v2418
          %v2523 = vpack.c.b16 %v2421, %v2420
          %v2524 = vpack.c.b16 %v2423, %v2422
          %v2525 = vpack.c.b16 %v2425, %v2424
          %v2526 = vpack.c.b16 %v2427, %v2426
          %v2527 = vpack.c.b16 %v2429, %v2428
          %v2528 = vpack.c.b16 %v2431, %v2430
          %v2529 = vpack.c.b16 %v2433, %v2432
          %v2530 = vpack.c.b16 %v2435, %v2434
          %v2531 = vpack.c.b16 %v2437, %v2436
          %v2532 = vpack.c.b16 %v2439, %v2438
          %v2533 = vpack.c.b16 %v2441, %v2440
          %v2534 = vpack.c.b16 %v2443, %v2442
          %v2535 = vpack.c.b16 %v2445, %v2444
          %v2536 = vpack.c.b16 %v2447, %v2446
          %v2537 = vpack.c.b16 %v2449, %v2448
          %v2538 = vpack.c.b16 %v2451, %v2450
          %v2539 = vpack.c.b16 %v2453, %v2452
          %v2540 = vpack.c.b16 %v2455, %v2454
          %v2541 = vpack.c.b16 %v2457, %v2456
          %v2542 = vpack.c.b16 %v2459, %v2458
          %v2543 = vpack.c.b16 %v2461, %v2460
          %v2544 = vpack.c.b16 %v2463, %v2462
          %v2545 = vpack.c.b16 %v2465, %v2464
          %v2546 = vpack.c.b16 %v2467, %v2466
          %v2547 = vpack.c.b16 %v2469, %v2468
          %v2548 = vpack.c.b16 %v2471, %v2470
          %v2549 = vpack.c.b16 %v2473, %v2472
          %v2550 = vpack.c.b16 %v2475, %v2474
          %v2551 = vpack.c.b16 %v2477, %v2476
          %v2552 = vpack.c.b16 %v2479, %v2478
          %v2553 = vpack.c.b16 %v2481, %v2480
          %v2554 = vpack.c.b16 %v2483, %v2482
          %v2555 = vpack.c.b16 %v2485, %v2484
          %v2556 = vpack.c.b16 %v2487, %v2486
          %v2557 = vpack.c.b16 %v2489, %v2488
          %v2558 = vpack.c.b16 %v2491, %v2490
          %v2559 = vpack.c.b16 %v2493, %v2492
          %v2560 = vpack.c.b16 %v2495, %v2494
          %v2561 = vpack.c.b16 %v2497, %v2496
          %2626 = vmatprep.subr.bf16.mxu0 0
          %2627 = vmatpush1.bf16.msra.mxu0 %v2498
          %2628 = vmatprep.subr.bf16.mxu0 0
          %2629 = vmatpush1.bf16.msra.mxu0 %v2499
          %2630 = vmatprep.subr.bf16.mxu0 0
          %2631 = vmatpush1.bf16.msra.mxu0 %v2500
          %2632 = vmatprep.subr.bf16.mxu0 0
          %2633 = vmatpush1.bf16.msra.mxu0 %v2501
          %2634 = vmatprep.subr.bf16.mxu0 0
          %2635 = vmatpush1.bf16.msra.mxu0 %v2502
          %2636 = vmatprep.subr.bf16.mxu0 0
          %2637 = vmatpush1.bf16.msra.mxu0 %v2503
          %2638 = vmatprep.subr.bf16.mxu0 0
          %2639 = vmatpush1.bf16.msra.mxu0 %v2504
          %2640 = vmatprep.subr.bf16.mxu0 0
          %2641 = vmatpush1.bf16.msra.mxu0 %v2505
          %2642 = vmatprep.subr.bf16.mxu0 0
          %2643 = vmatpush1.bf16.msra.mxu0 %v2506
          %2644 = vmatprep.subr.bf16.mxu0 0
          %2645 = vmatpush1.bf16.msra.mxu0 %v2507
          %2646 = vmatprep.subr.bf16.mxu0 0
          %2647 = vmatpush1.bf16.msra.mxu0 %v2508
          %2648 = vmatprep.subr.bf16.mxu0 0
          %2649 = vmatpush1.bf16.msra.mxu0 %v2509
          %2650 = vmatprep.subr.bf16.mxu0 0
          %2651 = vmatpush1.bf16.msra.mxu0 %v2510
          %2652 = vmatprep.subr.bf16.mxu0 0
          %2653 = vmatpush1.bf16.msra.mxu0 %v2511
          %2654 = vmatprep.subr.bf16.mxu0 0
          %2655 = vmatpush1.bf16.msra.mxu0 %v2512
          %2656 = vmatprep.subr.bf16.mxu0 0
          %2657 = vmatpush1.bf16.msra.mxu0 %v2513
          %2658 = vmatprep.mubr.bf16.mxu0 %v2051
          %2659 = vmatmul.mubr.bf16.gmra.mrb[0].mxu0 %v2050
          %v2660 = vpop.f32.mrb[0].mxu0
          %v2661 = vadd.f32 0.0, %v2660
          %v2662 = vpop.f32.mrb[0].mxu0
          %v2663 = vpop.f32.mrb[0].mxu0
          %v2664 = vadd.f32 0.0, %v2663
          %v2665 = vpop.f32.mrb[0].mxu0
          %2666 = vmatprep.mubr.bf16.mxu0 %v2059
          %2667 = vmatmul.mubr.bf16.gmra.mrb[0].mxu0 %v2058
          %v2668 = vpop.f32.mrb[0].mxu0
          %v2669 = vadd.f32 0.0, %v2668
          %v2670 = vpop.f32.mrb[0].mxu0
          %v2671 = vpop.f32.mrb[0].mxu0
          %v2672 = vadd.f32 0.0, %v2671
          %v2673 = vpop.f32.mrb[0].mxu0
          %2674 = vmatprep.mubr.bf16.mxu0 %v2067
          %2675 = vmatmul.mubr.bf16.gmra.mrb[0].mxu0 %v2066
          %v2676 = vpop.f32.mrb[0].mxu0
          %v2677 = vadd.f32 0.0, %v2676
          %v2678 = vpop.f32.mrb[0].mxu0
          %v2679 = vpop.f32.mrb[0].mxu0
          %v2680 = vadd.f32 0.0, %v2679
          %v2681 = vpop.f32.mrb[0].mxu0
          %2682 = vmatprep.mubr.bf16.mxu0 %v2075
          %2683 = vmatmul.mubr.bf16.gmra.mrb[0].mxu0 %v2074
          %v2684 = vpop.f32.mrb[0].mxu0
          %v2685 = vadd.f32 0.0, %v2684
          %v2686 = vpop.f32.mrb[0].mxu0
          %v2687 = vpop.f32.mrb[0].mxu0
          %v2688 = vadd.f32 0.0, %v2687
          %v2689 = vpop.f32.mrb[0].mxu0
          %2690 = vmatprep.mubr.bf16.mxu0 %v2083
          %2691 = vmatmul.mubr.bf16.gmra.mrb[0].mxu0 %v2082
          %v2692 = vpop.f32.mrb[0].mxu0
          %v2693 = vadd.f32 0.0, %v2692
          %v2694 = vpop.f32.mrb[0].mxu0
          %v2695 = vpop.f32.mrb[0].mxu0
          %v2696 = vadd.f32 0.0, %v2695
          %v2697 = vpop.f32.mrb[0].mxu0
          %2698 = vmatprep.mubr.bf16.mxu0 %v2091
          %2699 = vmatmul.mubr.bf16.gmra.mrb[0].mxu0 %v2090
          %v2700 = vpop.f32.mrb[0].mxu0
          %v2701 = vadd.f32 0.0, %v2700
          %v2702 = vpop.f32.mrb[0].mxu0
          %v2703 = vpop.f32.mrb[0].mxu0
          %v2704 = vadd.f32 0.0, %v2703
          %v2705 = vpop.f32.mrb[0].mxu0
          %2706 = vmatprep.mubr.bf16.mxu0 %v2099
          %2707 = vmatmul.mubr.bf16.gmra.mrb[0].mxu0 %v2098
          %v2708 = vpop.f32.mrb[0].mxu0
          %v2709 = vadd.f32 0.0, %v2708
          %v2710 = vpop.f32.mrb[0].mxu0
          %v2711 = vpop.f32.mrb[0].mxu0
          %v2712 = vadd.f32 0.0, %v2711
          %v2713 = vpop.f32.mrb[0].mxu0
          %2714 = vmatprep.mubr.bf16.mxu0 %v2107
          %2715 = vmatmul.mubr.bf16.gmra.mrb[0].mxu0 %v2106
          %v2716 = vpop.f32.mrb[0].mxu0
          %v2717 = vadd.f32 0.0, %v2716
          %v2718 = vpop.f32.mrb[0].mxu0
          %v2719 = vpop.f32.mrb[0].mxu0
          %v2720 = vadd.f32 0.0, %v2719
          %v2721 = vpop.f32.mrb[0].mxu0
          %2722 = vdwg.mxu0
          %2723 = vmatprep.subr.bf16.mxu0 0
          %2724 = vmatpush1.bf16.msra.mxu0 %v2514
          %2725 = vmatprep.subr.bf16.mxu0 0
          %2726 = vmatpush1.bf16.msra.mxu0 %v2515
          %2727 = vmatprep.subr.bf16.mxu0 0
          %2728 = vmatpush1.bf16.msra.mxu0 %v2516
          %2729 = vmatprep.subr.bf16.mxu0 0
          %2730 = vmatpush1.bf16.msra.mxu0 %v2517
          %2731 = vmatprep.subr.bf16.mxu0 0
          %2732 = vmatpush1.bf16.msra.mxu0 %v2518
          %2733 = vmatprep.subr.bf16.mxu0 0
          %2734 = vmatpush1.bf16.msra.mxu0 %v2519
          %2735 = vmatprep.subr.bf16.mxu0 0
          %2736 = vmatpush1.bf16.msra.mxu0 %v2520
          %2737 = vmatprep.subr.bf16.mxu0 0
          %2738 = vmatpush1.bf16.msra.mxu0 %v2521
          %2739 = vmatprep.subr.bf16.mxu0 0
          %2740 = vmatpush1.bf16.msra.mxu0 %v2522
          %2741 = vmatprep.subr.bf16.mxu0 0
          %2742 = vmatpush1.bf16.msra.mxu0 %v2523
          %2743 = vmatprep.subr.bf16.mxu0 0
          %2744 = vmatpush1.bf16.msra.mxu0 %v2524
          %2745 = vmatprep.subr.bf16.mxu0 0
          %2746 = vmatpush1.bf16.msra.mxu0 %v2525
          %2747 = vmatprep.subr.bf16.mxu0 0
          %2748 = vmatpush1.bf16.msra.mxu0 %v2526
          %2749 = vmatprep.subr.bf16.mxu0 0
          %2750 = vmatpush1.bf16.msra.mxu0 %v2527
          %2751 = vmatprep.subr.bf16.mxu0 0
          %2752 = vmatpush1.bf16.msra.mxu0 %v2528
          %2753 = vmatprep.subr.bf16.mxu0 0
          %2754 = vmatpush1.bf16.msra.mxu0 %v2529
          %2755 = vmatprep.mubr.bf16.mxu0 %v2053
          %2756 = vmatmul.mubr.bf16.gmra.mrb[0].mxu0 %v2052
          %v2757 = vpop.f32.mrb[0].mxu0
          %v2758 = vadd.f32 %v2661, %v2757
          %v2759 = vpop.f32.mrb[0].mxu0
          %v2760 = vpop.f32.mrb[0].mxu0
          %v2761 = vadd.f32 %v2664, %v2760
          %v2762 = vpop.f32.mrb[0].mxu0
          %2763 = vmatprep.mubr.bf16.mxu0 %v2061
          %2764 = vmatmul.mubr.bf16.gmra.mrb[0].mxu0 %v2060
          %v2765 = vpop.f32.mrb[0].mxu0
          %v2766 = vadd.f32 %v2669, %v2765
          %v2767 = vpop.f32.mrb[0].mxu0
          %v2768 = vpop.f32.mrb[0].mxu0
          %v2769 = vadd.f32 %v2672, %v2768
          %v2770 = vpop.f32.mrb[0].mxu0
          %2771 = vmatprep.mubr.bf16.mxu0 %v2069
          %2772 = vmatmul.mubr.bf16.gmra.mrb[0].mxu0 %v2068
          %v2773 = vpop.f32.mrb[0].mxu0
          %v2774 = vadd.f32 %v2677, %v2773
          %v2775 = vpop.f32.mrb[0].mxu0
          %v2776 = vpop.f32.mrb[0].mxu0
          %v2777 = vadd.f32 %v2680, %v2776
          %v2778 = vpop.f32.mrb[0].mxu0
          %2779 = vmatprep.mubr.bf16.mxu0 %v2077
          %2780 = vmatmul.mubr.bf16.gmra.mrb[0].mxu0 %v2076
          %v2781 = vpop.f32.mrb[0].mxu0
          %v2782 = vadd.f32 %v2685, %v2781
          %v2783 = vpop.f32.mrb[0].mxu0
          %v2784 = vpop.f32.mrb[0].mxu0
          %v2785 = vadd.f32 %v2688, %v2784
          %v2786 = vpop.f32.mrb[0].mxu0
          %2787 = vmatprep.mubr.bf16.mxu0 %v2085
          %2788 = vmatmul.mubr.bf16.gmra.mrb[0].mxu0 %v2084
          %v2789 = vpop.f32.mrb[0].mxu0
          %v2790 = vadd.f32 %v2693, %v2789
          %v2791 = vpop.f32.mrb[0].mxu0
          %v2792 = vpop.f32.mrb[0].mxu0
          %v2793 = vadd.f32 %v2696, %v2792
          %v2794 = vpop.f32.mrb[0].mxu0
          %2795 = vmatprep.mubr.bf16.mxu0 %v2093
          %2796 = vmatmul.mubr.bf16.gmra.mrb[0].mxu0 %v2092
          %v2797 = vpop.f32.mrb[0].mxu0
          %v2798 = vadd.f32 %v2701, %v2797
          %v2799 = vpop.f32.mrb[0].mxu0
          %v2800 = vpop.f32.mrb[0].mxu0
          %v2801 = vadd.f32 %v2704, %v2800
          %v2802 = vpop.f32.mrb[0].mxu0
          %2803 = vmatprep.mubr.bf16.mxu0 %v2101
          %2804 = vmatmul.mubr.bf16.gmra.mrb[0].mxu0 %v2100
          %v2805 = vpop.f32.mrb[0].mxu0
          %v2806 = vadd.f32 %v2709, %v2805
          %v2807 = vpop.f32.mrb[0].mxu0
          %v2808 = vpop.f32.mrb[0].mxu0
          %v2809 = vadd.f32 %v2712, %v2808
          %v2810 = vpop.f32.mrb[0].mxu0
          %2811 = vmatprep.mubr.bf16.mxu0 %v2109
          %2812 = vmatmul.mubr.bf16.gmra.mrb[0].mxu0 %v2108
          %v2813 = vpop.f32.mrb[0].mxu0
          %v2814 = vadd.f32 %v2717, %v2813
          %v2815 = vpop.f32.mrb[0].mxu0
          %v2816 = vpop.f32.mrb[0].mxu0
          %v2817 = vadd.f32 %v2720, %v2816
          %v2818 = vpop.f32.mrb[0].mxu0
          %2819 = vdwg.mxu0
          %2820 = vmatprep.subr.bf16.mxu0 0
          %2821 = vmatpush1.bf16.msra.mxu0 %v2530
          %2822 = vmatprep.subr.bf16.mxu0 0
          %2823 = vmatpush1.bf16.msra.mxu0 %v2531
          %2824 = vmatprep.subr.bf16.mxu0 0
          %2825 = vmatpush1.bf16.msra.mxu0 %v2532
          %2826 = vmatprep.subr.bf16.mxu0 0
          %2827 = vmatpush1.bf16.msra.mxu0 %v2533
          %2828 = vmatprep.subr.bf16.mxu0 0
          %2829 = vmatpush1.bf16.msra.mxu0 %v2534
          %2830 = vmatprep.subr.bf16.mxu0 0
          %2831 = vmatpush1.bf16.msra.mxu0 %v2535
          %2832 = vmatprep.subr.bf16.mxu0 0
          %2833 = vmatpush1.bf16.msra.mxu0 %v2536
          %2834 = vmatprep.subr.bf16.mxu0 0
          %2835 = vmatpush1.bf16.msra.mxu0 %v2537
          %2836 = vmatprep.subr.bf16.mxu0 0
          %2837 = vmatpush1.bf16.msra.mxu0 %v2538
          %2838 = vmatprep.subr.bf16.mxu0 0
          %2839 = vmatpush1.bf16.msra.mxu0 %v2539
          %2840 = vmatprep.subr.bf16.mxu0 0
          %2841 = vmatpush1.bf16.msra.mxu0 %v2540
          %2842 = vmatprep.subr.bf16.mxu0 0
          %2843 = vmatpush1.bf16.msra.mxu0 %v2541
          %2844 = vmatprep.subr.bf16.mxu0 0
          %2845 = vmatpush1.bf16.msra.mxu0 %v2542
          %2846 = vmatprep.subr.bf16.mxu0 0
          %2847 = vmatpush1.bf16.msra.mxu0 %v2543
          %2848 = vmatprep.subr.bf16.mxu0 0
          %2849 = vmatpush1.bf16.msra.mxu0 %v2544
          %2850 = vmatprep.subr.bf16.mxu0 0
          %2851 = vmatpush1.bf16.msra.mxu0 %v2545
          %2852 = vmatprep.mubr.bf16.mxu0 %v2055
          %2853 = vmatmul.mubr.bf16.gmra.mrb[0].mxu0 %v2054
          %v2854 = vpop.f32.mrb[0].mxu0
          %v2855 = vadd.f32 %v2758, %v2854
          %v2856 = vpop.f32.mrb[0].mxu0
          %v2857 = vpop.f32.mrb[0].mxu0
          %v2858 = vadd.f32 %v2761, %v2857
          %v2859 = vpop.f32.mrb[0].mxu0
          %2860 = vmatprep.mubr.bf16.mxu0 %v2063
          %2861 = vmatmul.mubr.bf16.gmra.mrb[0].mxu0 %v2062
          %v2862 = vpop.f32.mrb[0].mxu0
          %v2863 = vadd.f32 %v2766, %v2862
          %v2864 = vpop.f32.mrb[0].mxu0
          %v2865 = vpop.f32.mrb[0].mxu0
          %v2866 = vadd.f32 %v2769, %v2865
          %v2867 = vpop.f32.mrb[0].mxu0
          %2868 = vmatprep.mubr.bf16.mxu0 %v2071
          %2869 = vmatmul.mubr.bf16.gmra.mrb[0].mxu0 %v2070
          %v2870 = vpop.f32.mrb[0].mxu0
          %v2871 = vadd.f32 %v2774, %v2870
          %v2872 = vpop.f32.mrb[0].mxu0
          %v2873 = vpop.f32.mrb[0].mxu0
          %v2874 = vadd.f32 %v2777, %v2873
          %v2875 = vpop.f32.mrb[0].mxu0
          %2876 = vmatprep.mubr.bf16.mxu0 %v2079
          %2877 = vmatmul.mubr.bf16.gmra.mrb[0].mxu0 %v2078
          %v2878 = vpop.f32.mrb[0].mxu0
          %v2879 = vadd.f32 %v2782, %v2878
          %v2880 = vpop.f32.mrb[0].mxu0
          %v2881 = vpop.f32.mrb[0].mxu0
          %v2882 = vadd.f32 %v2785, %v2881
          %v2883 = vpop.f32.mrb[0].mxu0
          %2884 = vmatprep.mubr.bf16.mxu0 %v2087
          %2885 = vmatmul.mubr.bf16.gmra.mrb[0].mxu0 %v2086
          %v2886 = vpop.f32.mrb[0].mxu0
          %v2887 = vadd.f32 %v2790, %v2886
          %v2888 = vpop.f32.mrb[0].mxu0
          %v2889 = vpop.f32.mrb[0].mxu0
          %v2890 = vadd.f32 %v2793, %v2889
          %v2891 = vpop.f32.mrb[0].mxu0
          %2892 = vmatprep.mubr.bf16.mxu0 %v2095
          %2893 = vmatmul.mubr.bf16.gmra.mrb[0].mxu0 %v2094
          %v2894 = vpop.f32.mrb[0].mxu0
          %v2895 = vadd.f32 %v2798, %v2894
          %v2896 = vpop.f32.mrb[0].mxu0
          %v2897 = vpop.f32.mrb[0].mxu0
          %v2898 = vadd.f32 %v2801, %v2897
          %v2899 = vpop.f32.mrb[0].mxu0
          %2900 = vmatprep.mubr.bf16.mxu0 %v2103
          %2901 = vmatmul.mubr.bf16.gmra.mrb[0].mxu0 %v2102
          %v2902 = vpop.f32.mrb[0].mxu0
          %v2903 = vadd.f32 %v2806, %v2902
          %v2904 = vpop.f32.mrb[0].mxu0
          %v2905 = vpop.f32.mrb[0].mxu0
          %v2906 = vadd.f32 %v2809, %v2905
          %v2907 = vpop.f32.mrb[0].mxu0
          %2908 = vmatprep.mubr.bf16.mxu0 %v2111
          %2909 = vmatmul.mubr.bf16.gmra.mrb[0].mxu0 %v2110
          %v2910 = vpop.f32.mrb[0].mxu0
          %v2911 = vadd.f32 %v2814, %v2910
          %v2912 = vpop.f32.mrb[0].mxu0
          %v2913 = vpop.f32.mrb[0].mxu0
          %v2914 = vadd.f32 %v2817, %v2913
          %v2915 = vpop.f32.mrb[0].mxu0
          %2916 = vdwg.mxu0
          %2917 = vmatprep.subr.bf16.mxu0 0
          %2918 = vmatpush1.bf16.msra.mxu0 %v2546
          %2919 = vmatprep.subr.bf16.mxu0 0
          %2920 = vmatpush1.bf16.msra.mxu0 %v2547
          %2921 = vmatprep.subr.bf16.mxu0 0
          %2922 = vmatpush1.bf16.msra.mxu0 %v2548
          %2923 = vmatprep.subr.bf16.mxu0 0
          %2924 = vmatpush1.bf16.msra.mxu0 %v2549
          %2925 = vmatprep.subr.bf16.mxu0 0
          %2926 = vmatpush1.bf16.msra.mxu0 %v2550
          %2927 = vmatprep.subr.bf16.mxu0 0
          %2928 = vmatpush1.bf16.msra.mxu0 %v2551
          %2929 = vmatprep.subr.bf16.mxu0 0
          %2930 = vmatpush1.bf16.msra.mxu0 %v2552
          %2931 = vmatprep.subr.bf16.mxu0 0
          %2932 = vmatpush1.bf16.msra.mxu0 %v2553
          %2933 = vmatprep.subr.bf16.mxu0 0
          %2934 = vmatpush1.bf16.msra.mxu0 %v2554
          %2935 = vmatprep.subr.bf16.mxu0 0
          %2936 = vmatpush1.bf16.msra.mxu0 %v2555
          %2937 = vmatprep.subr.bf16.mxu0 0
          %2938 = vmatpush1.bf16.msra.mxu0 %v2556
          %2939 = vmatprep.subr.bf16.mxu0 0
          %2940 = vmatpush1.bf16.msra.mxu0 %v2557
          %2941 = vmatprep.subr.bf16.mxu0 0
          %2942 = vmatpush1.bf16.msra.mxu0 %v2558
          %2943 = vmatprep.subr.bf16.mxu0 0
          %2944 = vmatpush1.bf16.msra.mxu0 %v2559
          %2945 = vmatprep.subr.bf16.mxu0 0
          %2946 = vmatpush1.bf16.msra.mxu0 %v2560
          %2947 = vmatprep.subr.bf16.mxu0 0
          %2948 = vmatpush1.bf16.msra.mxu0 %v2561
          %2949 = vmatprep.mubr.bf16.mxu0 %v2057
          %2950 = vmatmul.mubr.bf16.gmra.mrb[0].mxu0 %v2056
          %v2951 = vpop.f32.mrb[0].mxu0
          %v2952 = vadd.f32 %v2855, %v2951
          %v2953 = vpop.f32.mrb[0].mxu0
          %v2954 = vpop.f32.mrb[0].mxu0
          %v2955 = vadd.f32 %v2858, %v2954
          %v2956 = vpop.f32.mrb[0].mxu0
          %2957 = vmatprep.mubr.bf16.mxu0 %v2065
          %2958 = vmatmul.mubr.bf16.gmra.mrb[0].mxu0 %v2064
          %v2959 = vpop.f32.mrb[0].mxu0
          %v2960 = vadd.f32 %v2863, %v2959
          %v2961 = vpop.f32.mrb[0].mxu0
          %v2962 = vpop.f32.mrb[0].mxu0
          %v2963 = vadd.f32 %v2866, %v2962
          %v2964 = vpop.f32.mrb[0].mxu0
          %2965 = vmatprep.mubr.bf16.mxu0 %v2073
          %2966 = vmatmul.mubr.bf16.gmra.mrb[0].mxu0 %v2072
          %v2967 = vpop.f32.mrb[0].mxu0
          %v2968 = vadd.f32 %v2871, %v2967
          %v2969 = vpop.f32.mrb[0].mxu0
          %v2970 = vpop.f32.mrb[0].mxu0
          %v2971 = vadd.f32 %v2874, %v2970
          %v2972 = vpop.f32.mrb[0].mxu0
          %2973 = vmatprep.mubr.bf16.mxu0 %v2081
          %2974 = vmatmul.mubr.bf16.gmra.mrb[0].mxu0 %v2080
          %v2975 = vpop.f32.mrb[0].mxu0
          %v2976 = vadd.f32 %v2879, %v2975
          %v2977 = vpop.f32.mrb[0].mxu0
          %v2978 = vpop.f32.mrb[0].mxu0
          %v2979 = vadd.f32 %v2882, %v2978
          %v2980 = vpop.f32.mrb[0].mxu0
          %2981 = vmatprep.mubr.bf16.mxu0 %v2089
          %2982 = vmatmul.mubr.bf16.gmra.mrb[0].mxu0 %v2088
          %v2983 = vpop.f32.mrb[0].mxu0
          %v2984 = vadd.f32 %v2887, %v2983
          %v2985 = vpop.f32.mrb[0].mxu0
          %v2986 = vpop.f32.mrb[0].mxu0
          %v2987 = vadd.f32 %v2890, %v2986
          %v2988 = vpop.f32.mrb[0].mxu0
          %2989 = vmatprep.mubr.bf16.mxu0 %v2097
          %2990 = vmatmul.mubr.bf16.gmra.mrb[0].mxu0 %v2096
          %v2991 = vpop.f32.mrb[0].mxu0
          %v2992 = vadd.f32 %v2895, %v2991
          %v2993 = vpop.f32.mrb[0].mxu0
          %v2994 = vpop.f32.mrb[0].mxu0
          %v2995 = vadd.f32 %v2898, %v2994
          %v2996 = vpop.f32.mrb[0].mxu0
          %2997 = vmatprep.mubr.bf16.mxu0 %v2105
          %2998 = vmatmul.mubr.bf16.gmra.mrb[0].mxu0 %v2104
          %v2999 = vpop.f32.mrb[0].mxu0
          %v3000 = vadd.f32 %v2903, %v2999
          %v3001 = vpop.f32.mrb[0].mxu0
          %v3002 = vpop.f32.mrb[0].mxu0
          %v3003 = vadd.f32 %v2906, %v3002
          %v3004 = vpop.f32.mrb[0].mxu0
          %3005 = vmatprep.mubr.bf16.mxu0 %v2113
          %3006 = vmatmul.mubr.bf16.gmra.mrb[0].mxu0 %v2112
          %v3007 = vpop.f32.mrb[0].mxu0
          %v3008 = vadd.f32 %v2911, %v3007
          %v3009 = vpop.f32.mrb[0].mxu0
          %v3010 = vpop.f32.mrb[0].mxu0
          %v3011 = vadd.f32 %v2914, %v3010
          %v3012 = vpop.f32.mrb[0].mxu0
          %3013 = vdwg.mxu0
          %v3014 = vpack.c.bf16 %v2955, %v2952
          %v3015 = vpack.c.bf16 %v2963, %v2960
          %v3016 = vpack.c.bf16 %v2971, %v2968
          %v3017 = vpack.c.bf16 %v2979, %v2976
          %v3018 = vpack.c.bf16 %v2987, %v2984
          %v3019 = vpack.c.bf16 %v2995, %v2992
          %v3020 = vpack.c.bf16 %v3003, %v3000
          %v3021 = vpack.c.bf16 %v3011, %v3008
          %v3022 = vld [vmem:[%s2] sm:$0xf]
          %v3023 = vld [vmem:[%s2 + $0x4] sm:$0xf]
          %v3024 = vld [vmem:[%s2 + $0x8] sm:$0xf]
          %v3025 = vld [vmem:[%s2 + $0xc] sm:$0xf]
          %v3026 = vld [vmem:[%s2 + $0x10] sm:$0xf]
          %v3027 = vld [vmem:[%s2 + $0x14] sm:$0xf]
          %v3028 = vld [vmem:[%s2 + $0x18] sm:$0xf]
          %v3029 = vld [vmem:[%s2 + $0x1c] sm:$0xf]
          %v3030 = vld [vmem:[%s2 + $0x20] sm:$0xf]
          %v3031 = vld [vmem:[%s2 + $0x24] sm:$0xf]
          %v3032 = vld [vmem:[%s2 + $0x28] sm:$0xf]
          %v3033 = vld [vmem:[%s2 + $0x2c] sm:$0xf]
          %v3034 = vld [vmem:[%s2 + $0x30] sm:$0xf]
          %v3035 = vld [vmem:[%s2 + $0x34] sm:$0xf]
          %v3036 = vld [vmem:[%s2 + $0x38] sm:$0xf]
          %v3037 = vld [vmem:[%s2 + $0x3c] sm:$0xf]
          %v3038 = vld [vmem:[%s3] sm:$0x1]
          %v3040 = vlaneseq
          %v3041 = vshrl.u32 %v3040, 7
          %v3042 = vsub.s32 0, %v3041
          %v3043 = vrot.slane %v3038, %v3042
          %v3061 = vunpack.c.l.b16 %v3022
          %v3062 = vunpack.c.l.b16 %v3023
          %v3063 = vunpack.c.l.b16 %v3024
          %v3064 = vunpack.c.l.b16 %v3025
          %v3065 = vunpack.c.l.b16 %v3026
          %v3066 = vunpack.c.l.b16 %v3027
          %v3067 = vunpack.c.l.b16 %v3028
          %v3068 = vunpack.c.l.b16 %v3029
          %v3069 = vunpack.c.l.b16 %v3030
          %v3070 = vunpack.c.l.b16 %v3031
          %v3071 = vunpack.c.l.b16 %v3032
          %v3072 = vunpack.c.l.b16 %v3033
          %v3073 = vunpack.c.l.b16 %v3034
          %v3074 = vunpack.c.l.b16 %v3035
          %v3075 = vunpack.c.l.b16 %v3036
          %v3076 = vunpack.c.l.b16 %v3037
          %v3077 = vpack.c.b16 %v3062, %v3061
          %v3078 = vpack.c.b16 %v3064, %v3063
          %v3079 = vpack.c.b16 %v3066, %v3065
          %v3080 = vpack.c.b16 %v3068, %v3067
          %v3081 = vpack.c.b16 %v3070, %v3069
          %v3082 = vpack.c.b16 %v3072, %v3071
          %v3083 = vpack.c.b16 %v3074, %v3073
          %v3084 = vpack.c.b16 %v3076, %v3075
          %3093 = vmatprep.subr.bf16.mxu0 0
          %3094 = vmatpush1.bf16.msra.mxu0 %v3077
          %3095 = vmatprep.subr.bf16.mxu0 0
          %3096 = vmatpush1.bf16.msra.mxu0 %v3078
          %3097 = vmatprep.subr.bf16.mxu0 0
          %3098 = vmatpush1.bf16.msra.mxu0 %v3079
          %3099 = vmatprep.subr.bf16.mxu0 0
          %3100 = vmatpush1.bf16.msra.mxu0 %v3080
          %3101 = vmatprep.subr.bf16.mxu0 0
          %3102 = vmatpush1.bf16.msra.mxu0 %v3081
          %3103 = vmatprep.subr.bf16.mxu0 0
          %3104 = vmatpush1.bf16.msra.mxu0 %v3082
          %3105 = vmatprep.subr.bf16.mxu0 0
          %3106 = vmatpush1.bf16.msra.mxu0 %v3083
          %3107 = vmatprep.subr.bf16.mxu0 0
          %3108 = vmatpush1.bf16.msra.mxu0 %v3084
          %3109 = vmatprep.subr.bf16.mxu0 0
          %3110 = vmatpush1.bf16.msra.mxu0 0
          %3111 = vmatprep.subr.bf16.mxu0 0
          %3112 = vmatpush1.bf16.msra.mxu0 0
          %3113 = vmatprep.subr.bf16.mxu0 0
          %3114 = vmatpush1.bf16.msra.mxu0 0
          %3115 = vmatprep.subr.bf16.mxu0 0
          %3116 = vmatpush1.bf16.msra.mxu0 0
          %3117 = vmatprep.subr.bf16.mxu0 0
          %3118 = vmatpush1.bf16.msra.mxu0 0
          %3119 = vmatprep.subr.bf16.mxu0 0
          %3120 = vmatpush1.bf16.msra.mxu0 0
          %3121 = vmatprep.subr.bf16.mxu0 0
          %3122 = vmatpush1.bf16.msra.mxu0 0
          %3123 = vmatprep.subr.bf16.mxu0 0
          %3124 = vmatpush1.bf16.msra.mxu0 0
          %3125 = vmatprep.mubr.bf16.mxu0 0
          %3126 = vmatmul.mubr.bf16.gmra.mrb[0].mxu0 %v3014
          %v3127 = vpop.f32.mrb[0].mxu0
          %v3128 = vadd.f32 %v3043, %v3127
          %v3129 = vpop.f32.mrb[0].mxu0
          %v3130 = vpop.f32.mrb[0].mxu0
          %v3131 = vadd.f32 %v3043, %v3130
          %v3132 = vpop.f32.mrb[0].mxu0
          %3133 = vmatprep.mubr.bf16.mxu0 0
          %3134 = vmatmul.mubr.bf16.gmra.mrb[0].mxu0 %v3015
          %v3135 = vpop.f32.mrb[0].mxu0
          %v3136 = vadd.f32 %v3043, %v3135
          %v3137 = vpop.f32.mrb[0].mxu0
          %v3138 = vpop.f32.mrb[0].mxu0
          %v3139 = vadd.f32 %v3043, %v3138
          %v3140 = vpop.f32.mrb[0].mxu0
          %3141 = vmatprep.mubr.bf16.mxu0 0
          %3142 = vmatmul.mubr.bf16.gmra.mrb[0].mxu0 %v3016
          %v3143 = vpop.f32.mrb[0].mxu0
          %v3144 = vadd.f32 %v3043, %v3143
          %v3145 = vpop.f32.mrb[0].mxu0
          %v3146 = vpop.f32.mrb[0].mxu0
          %v3147 = vadd.f32 %v3043, %v3146
          %v3148 = vpop.f32.mrb[0].mxu0
          %3149 = vmatprep.mubr.bf16.mxu0 0
          %3150 = vmatmul.mubr.bf16.gmra.mrb[0].mxu0 %v3017
          %v3151 = vpop.f32.mrb[0].mxu0
          %v3152 = vadd.f32 %v3043, %v3151
          %v3153 = vpop.f32.mrb[0].mxu0
          %v3154 = vpop.f32.mrb[0].mxu0
          %v3155 = vadd.f32 %v3043, %v3154
          %v3156 = vpop.f32.mrb[0].mxu0
          %3157 = vmatprep.mubr.bf16.mxu0 0
          %3158 = vmatmul.mubr.bf16.gmra.mrb[0].mxu0 %v3018
          %v3159 = vpop.f32.mrb[0].mxu0
          %v3160 = vadd.f32 %v3043, %v3159
          %v3161 = vpop.f32.mrb[0].mxu0
          %v3162 = vpop.f32.mrb[0].mxu0
          %v3163 = vadd.f32 %v3043, %v3162
          %v3164 = vpop.f32.mrb[0].mxu0
          %3165 = vmatprep.mubr.bf16.mxu0 0
          %3166 = vmatmul.mubr.bf16.gmra.mrb[0].mxu0 %v3019
          %v3167 = vpop.f32.mrb[0].mxu0
          %v3168 = vadd.f32 %v3043, %v3167
          %v3169 = vpop.f32.mrb[0].mxu0
          %v3170 = vpop.f32.mrb[0].mxu0
          %v3171 = vadd.f32 %v3043, %v3170
          %v3172 = vpop.f32.mrb[0].mxu0
          %3173 = vmatprep.mubr.bf16.mxu0 0
          %3174 = vmatmul.mubr.bf16.gmra.mrb[0].mxu0 %v3020
          %v3175 = vpop.f32.mrb[0].mxu0
          %v3176 = vadd.f32 %v3043, %v3175
          %v3177 = vpop.f32.mrb[0].mxu0
          %v3178 = vpop.f32.mrb[0].mxu0
          %v3179 = vadd.f32 %v3043, %v3178
          %v3180 = vpop.f32.mrb[0].mxu0
          %3181 = vmatprep.mubr.bf16.mxu0 0
          %3182 = vmatmul.mubr.bf16.gmra.mrb[0].mxu0 %v3021
          %v3183 = vpop.f32.mrb[0].mxu0
          %v3184 = vadd.f32 %v3043, %v3183
          %v3185 = vpop.f32.mrb[0].mxu0
          %v3186 = vpop.f32.mrb[0].mxu0
          %v3187 = vadd.f32 %v3043, %v3186
          %v3188 = vpop.f32.mrb[0].mxu0
          %3189 = vdwg.mxu0
          %v3190 = vtanh.pop %v3128
          %v3191 = vtanh.pop %v3131
          %v3192 = vtanh.pop %v3136
          %v3193 = vtanh.pop %v3139
          %v3194 = vtanh.pop %v3144
          %v3195 = vtanh.pop %v3147
          %v3196 = vtanh.pop %v3152
          %v3197 = vtanh.pop %v3155
          %v3198 = vtanh.pop %v3160
          %v3199 = vtanh.pop %v3163
          %v3200 = vtanh.pop %v3168
          %v3201 = vtanh.pop %v3171
          %v3202 = vtanh.pop %v3176
          %v3203 = vtanh.pop %v3179
          %v3204 = vtanh.pop %v3184
          %v3205 = vtanh.pop %v3187
          %v3206 = vpack.c.bf16 %v3191, %v3190
          %v3207 = vpack.c.bf16 %v3193, %v3192
          %v3208 = vpack.c.bf16 %v3195, %v3194
          %v3209 = vpack.c.bf16 %v3197, %v3196
          %v3210 = vpack.c.bf16 %v3199, %v3198
          %v3211 = vpack.c.bf16 %v3201, %v3200
          %v3212 = vpack.c.bf16 %v3203, %v3202
          %v3213 = vpack.c.bf16 %v3205, %v3204
          %3214 = vst [vmem:[#allocation2] sm:$0xff] %v3206
          %3215 = vst [vmem:[#allocation2 + $0x8] sm:$0xff] %v3207
          %3216 = vst [vmem:[#allocation2 + $0x10] sm:$0xff] %v3208
          %3217 = vst [vmem:[#allocation2 + $0x18] sm:$0xff] %v3209
          %3218 = vst [vmem:[#allocation2 + $0x20] sm:$0xff] %v3210
          %3219 = vst [vmem:[#allocation2 + $0x28] sm:$0xff] %v3211
          %3220 = vst [vmem:[#allocation2 + $0x30] sm:$0xff] %v3212
          %3221 = vst [vmem:[#allocation2 + $0x38] sm:$0xff] %v3213
          %vm3222 = vcmask 7168
          %3223 = vst.msk [vmem:[#allocation3] sm:$0xff] %vm3222, -inf
          %3224 = vst.msk [vmem:[#allocation3 + $0x8] sm:$0xff] %vm3222, -inf
          %3225 = vst.msk [vmem:[#allocation3 + $0x10] sm:$0xff] %vm3222, -inf
          %3226 = vst.msk [vmem:[#allocation3 + $0x18] sm:$0xff] %vm3222, -inf
          %3227 = vst.msk [vmem:[#allocation3 + $0x20] sm:$0xff] %vm3222, -inf
          %3228 = vst.msk [vmem:[#allocation3 + $0x28] sm:$0xff] %vm3222, -inf
          %3229 = vst.msk [vmem:[#allocation3 + $0x30] sm:$0xff] %vm3222, -inf
          %3230 = vst.msk [vmem:[#allocation3 + $0x38] sm:$0xff] %vm3222, -inf
          %3231 = vst.msk [vmem:[#allocation3 + $0x40] sm:$0xff] %vm3222, -inf
          %3232 = vst.msk [vmem:[#allocation3 + $0x48] sm:$0xff] %vm3222, -inf
          %3233 = vst.msk [vmem:[#allocation3 + $0x50] sm:$0xff] %vm3222, -inf
          %3234 = vst.msk [vmem:[#allocation3 + $0x58] sm:$0xff] %vm3222, -inf
          %3235 = vst.msk [vmem:[#allocation3 + $0x60] sm:$0xff] %vm3222, -inf
          %3236 = vst.msk [vmem:[#allocation3 + $0x68] sm:$0xff] %vm3222, -inf
          %3237 = vst.msk [vmem:[#allocation3 + $0x70] sm:$0xff] %vm3222, -inf
          %3238 = vst.msk [vmem:[#allocation3 + $0x78] sm:$0xff] %vm3222, -inf
          %3239 = vst.msk [vmem:[#allocation4] sm:$0xff] %vm3222, 0.0
          %3240 = vst.msk [vmem:[#allocation4 + $0x8] sm:$0xff] %vm3222, 0.0
          %3241 = vst.msk [vmem:[#allocation4 + $0x10] sm:$0xff] %vm3222, 0.0
          %3242 = vst.msk [vmem:[#allocation4 + $0x18] sm:$0xff] %vm3222, 0.0
          %3243 = vst.msk [vmem:[#allocation4 + $0x20] sm:$0xff] %vm3222, 0.0
          %3244 = vst.msk [vmem:[#allocation4 + $0x28] sm:$0xff] %vm3222, 0.0
          %3245 = vst.msk [vmem:[#allocation4 + $0x30] sm:$0xff] %vm3222, 0.0
          %3246 = vst.msk [vmem:[#allocation4 + $0x38] sm:$0xff] %vm3222, 0.0
          %3247 = vst.msk [vmem:[#allocation4 + $0x40] sm:$0xff] %vm3222, 0.0
          %3248 = vst.msk [vmem:[#allocation4 + $0x48] sm:$0xff] %vm3222, 0.0
          %3249 = vst.msk [vmem:[#allocation4 + $0x50] sm:$0xff] %vm3222, 0.0
          %3250 = vst.msk [vmem:[#allocation4 + $0x58] sm:$0xff] %vm3222, 0.0
          %3251 = vst.msk [vmem:[#allocation4 + $0x60] sm:$0xff] %vm3222, 0.0
          %3252 = vst.msk [vmem:[#allocation4 + $0x68] sm:$0xff] %vm3222, 0.0
          %3253 = vst.msk [vmem:[#allocation4 + $0x70] sm:$0xff] %vm3222, 0.0
          %3254 = vst.msk [vmem:[#allocation4 + $0x78] sm:$0xff] %vm3222, 0.0
        $region56: #{tpu_custom_call.1} parent=43 // pred_fallthru
          _
        %v3255 = vld [vmem:[#allocation2] sm:$0xff]
        %v3256 = vld [vmem:[#allocation2 + $0x8] sm:$0xff]
        %v3257 = vld [vmem:[#allocation2 + $0x10] sm:$0xff]
        %v3258 = vld [vmem:[#allocation2 + $0x18] sm:$0xff]
        %v3259 = vld [vmem:[#allocation2 + $0x20] sm:$0xff]
        %v3260 = vld [vmem:[#allocation2 + $0x28] sm:$0xff]
        %v3261 = vld [vmem:[#allocation2 + $0x30] sm:$0xff]
        %v3262 = vld [vmem:[#allocation2 + $0x38] sm:$0xff]
        %v3263 = vld [vmem:[%s289] sm:$0xff]
        %v3264 = vld [vmem:[%s289 + $0x8] sm:$0xff]
        %v3265 = vld [vmem:[%s289 + $0x10] sm:$0xff]
        %v3266 = vld [vmem:[%s289 + $0x18] sm:$0xff]
        %v3267 = vld [vmem:[%s289 + $0x20] sm:$0xff]
        %v3268 = vld [vmem:[%s289 + $0x28] sm:$0xff]
        %v3269 = vld [vmem:[%s289 + $0x30] sm:$0xff]
        %v3270 = vld [vmem:[%s289 + $0x38] sm:$0xff]
        %v3271 = vld [vmem:[%s289 + $0x40] sm:$0xff]
        %v3272 = vld [vmem:[%s289 + $0x48] sm:$0xff]
        %v3273 = vld [vmem:[%s289 + $0x50] sm:$0xff]
        %v3274 = vld [vmem:[%s289 + $0x58] sm:$0xff]
        %v3275 = vld [vmem:[%s289 + $0x60] sm:$0xff]
        %v3276 = vld [vmem:[%s289 + $0x68] sm:$0xff]
        %v3277 = vld [vmem:[%s289 + $0x70] sm:$0xff]
        %v3278 = vld [vmem:[%s289 + $0x78] sm:$0xff]
        %v3279 = vld [vmem:[%s337] sm:$0x3]
        %v3281 = vlaneseq
        %v3282 = vshrl.u32 %v3281, 7
        %v3283 = vsub.s32 0, %v3282
        %v3284 = vrot.slane %v3279, %v3283
        %v3285 = vlaneseq
        %v3286 = vshrl.u32 %v3285, 7
        %v3287 = vsub.s32 1, %v3286
        %v3288 = vrot.slane %v3279, %v3287
        %v3307 = vunpack.c.l.b16 %v3263
        %v3308 = vunpack.c.h.b16 %v3263
        %v3309 = vunpack.c.l.b16 %v3264
        %v3310 = vunpack.c.h.b16 %v3264
        %v3311 = vunpack.c.l.b16 %v3265
        %v3312 = vunpack.c.h.b16 %v3265
        %v3313 = vunpack.c.l.b16 %v3266
        %v3314 = vunpack.c.h.b16 %v3266
        %v3315 = vunpack.c.l.b16 %v3267
        %v3316 = vunpack.c.h.b16 %v3267
        %v3317 = vunpack.c.l.b16 %v3268
        %v3318 = vunpack.c.h.b16 %v3268
        %v3319 = vunpack.c.l.b16 %v3269
        %v3320 = vunpack.c.h.b16 %v3269
        %v3321 = vunpack.c.l.b16 %v3270
        %v3322 = vunpack.c.h.b16 %v3270
        %v3323 = vunpack.c.l.b16 %v3271
        %v3324 = vunpack.c.h.b16 %v3271
        %v3325 = vunpack.c.l.b16 %v3272
        %v3326 = vunpack.c.h.b16 %v3272
        %v3327 = vunpack.c.l.b16 %v3273
        %v3328 = vunpack.c.h.b16 %v3273
        %v3329 = vunpack.c.l.b16 %v3274
        %v3330 = vunpack.c.h.b16 %v3274
        %v3331 = vunpack.c.l.b16 %v3275
        %v3332 = vunpack.c.h.b16 %v3275
        %v3333 = vunpack.c.l.b16 %v3276
        %v3334 = vunpack.c.h.b16 %v3276
        %v3335 = vunpack.c.l.b16 %v3277
        %v3336 = vunpack.c.h.b16 %v3277
        %v3337 = vunpack.c.l.b16 %v3278
        %v3338 = vunpack.c.h.b16 %v3278
        %v3339 = vpack.c.b16 %v3309, %v3307
        %v3340 = vpack.c.b16 %v3310, %v3308
        %v3341 = vpack.c.b16 %v3313, %v3311
        %v3342 = vpack.c.b16 %v3314, %v3312
        %v3343 = vpack.c.b16 %v3317, %v3315
        %v3344 = vpack.c.b16 %v3318, %v3316
        %v3345 = vpack.c.b16 %v3321, %v3319
        %v3346 = vpack.c.b16 %v3322, %v3320
        %v3347 = vpack.c.b16 %v3325, %v3323
        %v3348 = vpack.c.b16 %v3326, %v3324
        %v3349 = vpack.c.b16 %v3329, %v3327
        %v3350 = vpack.c.b16 %v3330, %v3328
        %v3351 = vpack.c.b16 %v3333, %v3331
        %v3352 = vpack.c.b16 %v3334, %v3332
        %v3353 = vpack.c.b16 %v3337, %v3335
        %v3354 = vpack.c.b16 %v3338, %v3336
        %3371 = vmatprep.subr.bf16.mxu0 %v3340
        %3372 = vmatpush1.bf16.msra.mxu0 %v3339
        %3373 = vmatprep.subr.bf16.mxu0 %v3342
        %3374 = vmatpush1.bf16.msra.mxu0 %v3341
        %3375 = vmatprep.subr.bf16.mxu0 %v3344
        %3376 = vmatpush1.bf16.msra.mxu0 %v3343
        %3377 = vmatprep.subr.bf16.mxu0 %v3346
        %3378 = vmatpush1.bf16.msra.mxu0 %v3345
        %3379 = vmatprep.subr.bf16.mxu0 %v3348
        %3380 = vmatpush1.bf16.msra.mxu0 %v3347
        %3381 = vmatprep.subr.bf16.mxu0 %v3350
        %3382 = vmatpush1.bf16.msra.mxu0 %v3349
        %3383 = vmatprep.subr.bf16.mxu0 %v3352
        %3384 = vmatpush1.bf16.msra.mxu0 %v3351
        %3385 = vmatprep.subr.bf16.mxu0 %v3354
        %3386 = vmatpush1.bf16.msra.mxu0 %v3353
        %3387 = vmatprep.subr.bf16.mxu0 0
        %3388 = vmatpush1.bf16.msra.mxu0 0
        %3389 = vmatprep.subr.bf16.mxu0 0
        %3390 = vmatpush1.bf16.msra.mxu0 0
        %3391 = vmatprep.subr.bf16.mxu0 0
        %3392 = vmatpush1.bf16.msra.mxu0 0
        %3393 = vmatprep.subr.bf16.mxu0 0
        %3394 = vmatpush1.bf16.msra.mxu0 0
        %3395 = vmatprep.subr.bf16.mxu0 0
        %3396 = vmatpush1.bf16.msra.mxu0 0
        %3397 = vmatprep.subr.bf16.mxu0 0
        %3398 = vmatpush1.bf16.msra.mxu0 0
        %3399 = vmatprep.subr.bf16.mxu0 0
        %3400 = vmatpush1.bf16.msra.mxu0 0
        %3401 = vmatprep.subr.bf16.mxu0 0
        %3402 = vmatpush1.bf16.msra.mxu0 0
        %3403 = vmatprep.mubr.bf16.mxu0 0
        %3404 = vmatmul.mubr.bf16.gmra.mrb[0].mxu0 %v3255
        %v3405 = vpop.f32.mrb[0].mxu0
        %v3406 = vadd.f32 %v3284, %v3405
        %v3407 = vpop.f32.mrb[0].mxu0
        %v3408 = vadd.f32 %v3288, %v3407
        %v3409 = vpop.f32.mrb[0].mxu0
        %v3410 = vadd.f32 %v3284, %v3409
        %v3411 = vpop.f32.mrb[0].mxu0
        %v3412 = vadd.f32 %v3288, %v3411
        %3413 = vmatprep.mubr.bf16.mxu0 0
        %3414 = vmatmul.mubr.bf16.gmra.mrb[0].mxu0 %v3256
        %v3415 = vpop.f32.mrb[0].mxu0
        %v3416 = vadd.f32 %v3284, %v3415
        %v3417 = vpop.f32.mrb[0].mxu0
        %v3418 = vadd.f32 %v3288, %v3417
        %v3419 = vpop.f32.mrb[0].mxu0
        %v3420 = vadd.f32 %v3284, %v3419
        %v3421 = vpop.f32.mrb[0].mxu0
        %v3422 = vadd.f32 %v3288, %v3421
        %3423 = vmatprep.mubr.bf16.mxu0 0
        %3424 = vmatmul.mubr.bf16.gmra.mrb[0].mxu0 %v3257
        %v3425 = vpop.f32.mrb[0].mxu0
        %v3426 = vadd.f32 %v3284, %v3425
        %v3427 = vpop.f32.mrb[0].mxu0
        %v3428 = vadd.f32 %v3288, %v3427
        %v3429 = vpop.f32.mrb[0].mxu0
        %v3430 = vadd.f32 %v3284, %v3429
        %v3431 = vpop.f32.mrb[0].mxu0
        %v3432 = vadd.f32 %v3288, %v3431
        %3433 = vmatprep.mubr.bf16.mxu0 0
        %3434 = vmatmul.mubr.bf16.gmra.mrb[0].mxu0 %v3258
        %v3435 = vpop.f32.mrb[0].mxu0
        %v3436 = vadd.f32 %v3284, %v3435
        %v3437 = vpop.f32.mrb[0].mxu0
        %v3438 = vadd.f32 %v3288, %v3437
        %v3439 = vpop.f32.mrb[0].mxu0
        %v3440 = vadd.f32 %v3284, %v3439
        %v3441 = vpop.f32.mrb[0].mxu0
        %v3442 = vadd.f32 %v3288, %v3441
        %3443 = vmatprep.mubr.bf16.mxu0 0
        %3444 = vmatmul.mubr.bf16.gmra.mrb[0].mxu0 %v3259
        %v3445 = vpop.f32.mrb[0].mxu0
        %v3446 = vadd.f32 %v3284, %v3445
        %v3447 = vpop.f32.mrb[0].mxu0
        %v3448 = vadd.f32 %v3288, %v3447
        %v3449 = vpop.f32.mrb[0].mxu0
        %v3450 = vadd.f32 %v3284, %v3449
        %v3451 = vpop.f32.mrb[0].mxu0
        %v3452 = vadd.f32 %v3288, %v3451
        %3453 = vmatprep.mubr.bf16.mxu0 0
        %3454 = vmatmul.mubr.bf16.gmra.mrb[0].mxu0 %v3260
        %v3455 = vpop.f32.mrb[0].mxu0
        %v3456 = vadd.f32 %v3284, %v3455
        %v3457 = vpop.f32.mrb[0].mxu0
        %v3458 = vadd.f32 %v3288, %v3457
        %v3459 = vpop.f32.mrb[0].mxu0
        %v3460 = vadd.f32 %v3284, %v3459
        %v3461 = vpop.f32.mrb[0].mxu0
        %v3462 = vadd.f32 %v3288, %v3461
        %3463 = vmatprep.mubr.bf16.mxu0 0
        %3464 = vmatmul.mubr.bf16.gmra.mrb[0].mxu0 %v3261
        %v3465 = vpop.f32.mrb[0].mxu0
        %v3466 = vadd.f32 %v3284, %v3465
        %v3467 = vpop.f32.mrb[0].mxu0
        %v3468 = vadd.f32 %v3288, %v3467
        %v3469 = vpop.f32.mrb[0].mxu0
        %v3470 = vadd.f32 %v3284, %v3469
        %v3471 = vpop.f32.mrb[0].mxu0
        %v3472 = vadd.f32 %v3288, %v3471
        %3473 = vmatprep.mubr.bf16.mxu0 0
        %3474 = vmatmul.mubr.bf16.gmra.mrb[0].mxu0 %v3262
        %v3475 = vpop.f32.mrb[0].mxu0
        %v3476 = vadd.f32 %v3284, %v3475
        %v3477 = vpop.f32.mrb[0].mxu0
        %v3478 = vadd.f32 %v3288, %v3477
        %v3479 = vpop.f32.mrb[0].mxu0
        %v3480 = vadd.f32 %v3284, %v3479
        %v3481 = vpop.f32.mrb[0].mxu0
        %v3482 = vadd.f32 %v3288, %v3481
        %3483 = vdwg.mxu0
        // Predicated region
        $region57: #{tpu_custom_call.1} parent=43 // pred_check
          %p3484 = pneg %p341
        $region58: #{tpu_custom_call.1} parent=43 // pred_check_branch
          %3486 = sbr.rel (%p3484) target = $region60
        $region59: #{tpu_custom_call.1} parent=43 // pred_region
          %3487 = vst [vmem:[%s326] sm:$0xff] %v3406
          %3488 = vst [vmem:[%s326 + $0x8] sm:$0xff] %v3408
          %3489 = vst [vmem:[%s326 + $0x40] sm:$0xff] %v3410
          %3490 = vst [vmem:[%s326 + $0x48] sm:$0xff] %v3412
          %3491 = vst [vmem:[%s326 + $0x80] sm:$0xff] %v3416
          %3492 = vst [vmem:[%s326 + $0x88] sm:$0xff] %v3418
          %3493 = vst [vmem:[%s326 + $0xc0] sm:$0xff] %v3420
          %3494 = vst [vmem:[%s326 + $0xc8] sm:$0xff] %v3422
          %3495 = vst [vmem:[%s326 + $0x100] sm:$0xff] %v3426
          %3496 = vst [vmem:[%s326 + $0x108] sm:$0xff] %v3428
          %3497 = vst [vmem:[%s326 + $0x140] sm:$0xff] %v3430
          %3498 = vst [vmem:[%s326 + $0x148] sm:$0xff] %v3432
          %3499 = vst [vmem:[%s326 + $0x180] sm:$0xff] %v3436
          %3500 = vst [vmem:[%s326 + $0x188] sm:$0xff] %v3438
          %3501 = vst [vmem:[%s326 + $0x1c0] sm:$0xff] %v3440
          %3502 = vst [vmem:[%s326 + $0x1c8] sm:$0xff] %v3442
          %3503 = vst [vmem:[%s326 + $0x200] sm:$0xff] %v3446
          %3504 = vst [vmem:[%s326 + $0x208] sm:$0xff] %v3448
          %3505 = vst [vmem:[%s326 + $0x240] sm:$0xff] %v3450
          %3506 = vst [vmem:[%s326 + $0x248] sm:$0xff] %v3452
          %3507 = vst [vmem:[%s326 + $0x280] sm:$0xff] %v3456
          %3508 = vst [vmem:[%s326 + $0x288] sm:$0xff] %v3458
          %3509 = vst [vmem:[%s326 + $0x2c0] sm:$0xff] %v3460
          %3510 = vst [vmem:[%s326 + $0x2c8] sm:$0xff] %v3462
          %3511 = vst [vmem:[%s326 + $0x300] sm:$0xff] %v3466
          %3512 = vst [vmem:[%s326 + $0x308] sm:$0xff] %v3468
          %3513 = vst [vmem:[%s326 + $0x340] sm:$0xff] %v3470
          %3514 = vst [vmem:[%s326 + $0x348] sm:$0xff] %v3472
          %3515 = vst [vmem:[%s326 + $0x380] sm:$0xff] %v3476
          %3516 = vst [vmem:[%s326 + $0x388] sm:$0xff] %v3478
          %3517 = vst [vmem:[%s326 + $0x3c0] sm:$0xff] %v3480
          %3518 = vst [vmem:[%s326 + $0x3c8] sm:$0xff] %v3482
        $region60: #{tpu_custom_call.1} parent=43 // pred_fallthru
          _
        %p3519 = scmp.eq.s32.totalorder %s29, 1
        // Predicated region
        $region61: #{tpu_custom_call.1} parent=43 // pred_check
          %p3520 = pneg %p3519
        $region62: #{tpu_custom_call.1} parent=43 // pred_check_branch
          %3522 = sbr.rel (%p3520) target = $region64
        $region63: #{tpu_custom_call.1} parent=43 // pred_region
          %3523 = vst [vmem:[%s326 + $0x10] sm:$0xff] %v3406
          %3524 = vst [vmem:[%s326 + $0x18] sm:$0xff] %v3408
          %3525 = vst [vmem:[%s326 + $0x50] sm:$0xff] %v3410
          %3526 = vst [vmem:[%s326 + $0x58] sm:$0xff] %v3412
          %3527 = vst [vmem:[%s326 + $0x90] sm:$0xff] %v3416
          %3528 = vst [vmem:[%s326 + $0x98] sm:$0xff] %v3418
          %3529 = vst [vmem:[%s326 + $0xd0] sm:$0xff] %v3420
          %3530 = vst [vmem:[%s326 + $0xd8] sm:$0xff] %v3422
          %3531 = vst [vmem:[%s326 + $0x110] sm:$0xff] %v3426
          %3532 = vst [vmem:[%s326 + $0x118] sm:$0xff] %v3428
          %3533 = vst [vmem:[%s326 + $0x150] sm:$0xff] %v3430
          %3534 = vst [vmem:[%s326 + $0x158] sm:$0xff] %v3432
          %3535 = vst [vmem:[%s326 + $0x190] sm:$0xff] %v3436
          %3536 = vst [vmem:[%s326 + $0x198] sm:$0xff] %v3438
          %3537 = vst [vmem:[%s326 + $0x1d0] sm:$0xff] %v3440
          %3538 = vst [vmem:[%s326 + $0x1d8] sm:$0xff] %v3442
          %3539 = vst [vmem:[%s326 + $0x210] sm:$0xff] %v3446
          %3540 = vst [vmem:[%s326 + $0x218] sm:$0xff] %v3448
          %3541 = vst [vmem:[%s326 + $0x250] sm:$0xff] %v3450
          %3542 = vst [vmem:[%s326 + $0x258] sm:$0xff] %v3452
          %3543 = vst [vmem:[%s326 + $0x290] sm:$0xff] %v3456
          %3544 = vst [vmem:[%s326 + $0x298] sm:$0xff] %v3458
          %3545 = vst [vmem:[%s326 + $0x2d0] sm:$0xff] %v3460
          %3546 = vst [vmem:[%s326 + $0x2d8] sm:$0xff] %v3462
          %3547 = vst [vmem:[%s326 + $0x310] sm:$0xff] %v3466
          %3548 = vst [vmem:[%s326 + $0x318] sm:$0xff] %v3468
          %3549 = vst [vmem:[%s326 + $0x350] sm:$0xff] %v3470
          %3550 = vst [vmem:[%s326 + $0x358] sm:$0xff] %v3472
          %3551 = vst [vmem:[%s326 + $0x390] sm:$0xff] %v3476
          %3552 = vst [vmem:[%s326 + $0x398] sm:$0xff] %v3478
          %3553 = vst [vmem:[%s326 + $0x3d0] sm:$0xff] %v3480
          %3554 = vst [vmem:[%s326 + $0x3d8] sm:$0xff] %v3482
        $region64: #{tpu_custom_call.1} parent=43 // pred_fallthru
          _
        %p3555 = scmp.eq.s32.totalorder %s29, 2
        // Predicated region
        $region65: #{tpu_custom_call.1} parent=43 // pred_check
          %p3556 = pneg %p3555
        $region66: #{tpu_custom_call.1} parent=43 // pred_check_branch
          %3558 = sbr.rel (%p3556) target = $region68
        $region67: #{tpu_custom_call.1} parent=43 // pred_region
          %3559 = vst [vmem:[%s326 + $0x20] sm:$0xff] %v3406
          %3560 = vst [vmem:[%s326 + $0x28] sm:$0xff] %v3408
          %3561 = vst [vmem:[%s326 + $0x60] sm:$0xff] %v3410
          %3562 = vst [vmem:[%s326 + $0x68] sm:$0xff] %v3412
          %3563 = vst [vmem:[%s326 + $0xa0] sm:$0xff] %v3416
          %3564 = vst [vmem:[%s326 + $0xa8] sm:$0xff] %v3418
          %3565 = vst [vmem:[%s326 + $0xe0] sm:$0xff] %v3420
          %3566 = vst [vmem:[%s326 + $0xe8] sm:$0xff] %v3422
          %3567 = vst [vmem:[%s326 + $0x120] sm:$0xff] %v3426
          %3568 = vst [vmem:[%s326 + $0x128] sm:$0xff] %v3428
          %3569 = vst [vmem:[%s326 + $0x160] sm:$0xff] %v3430
          %3570 = vst [vmem:[%s326 + $0x168] sm:$0xff] %v3432
          %3571 = vst [vmem:[%s326 + $0x1a0] sm:$0xff] %v3436
          %3572 = vst [vmem:[%s326 + $0x1a8] sm:$0xff] %v3438
          %3573 = vst [vmem:[%s326 + $0x1e0] sm:$0xff] %v3440
          %3574 = vst [vmem:[%s326 + $0x1e8] sm:$0xff] %v3442
          %3575 = vst [vmem:[%s326 + $0x220] sm:$0xff] %v3446
          %3576 = vst [vmem:[%s326 + $0x228] sm:$0xff] %v3448
          %3577 = vst [vmem:[%s326 + $0x260] sm:$0xff] %v3450
          %3578 = vst [vmem:[%s326 + $0x268] sm:$0xff] %v3452
          %3579 = vst [vmem:[%s326 + $0x2a0] sm:$0xff] %v3456
          %3580 = vst [vmem:[%s326 + $0x2a8] sm:$0xff] %v3458
          %3581 = vst [vmem:[%s326 + $0x2e0] sm:$0xff] %v3460
          %3582 = vst [vmem:[%s326 + $0x2e8] sm:$0xff] %v3462
          %3583 = vst [vmem:[%s326 + $0x320] sm:$0xff] %v3466
          %3584 = vst [vmem:[%s326 + $0x328] sm:$0xff] %v3468
          %3585 = vst [vmem:[%s326 + $0x360] sm:$0xff] %v3470
          %3586 = vst [vmem:[%s326 + $0x368] sm:$0xff] %v3472
          %3587 = vst [vmem:[%s326 + $0x3a0] sm:$0xff] %v3476
          %3588 = vst [vmem:[%s326 + $0x3a8] sm:$0xff] %v3478
          %3589 = vst [vmem:[%s326 + $0x3e0] sm:$0xff] %v3480
          %3590 = vst [vmem:[%s326 + $0x3e8] sm:$0xff] %v3482
        $region68: #{tpu_custom_call.1} parent=43 // pred_fallthru
          _
        %p3591 = scmp.eq.s32.totalorder %s29, 3
        // Predicated region
        $region69: #{tpu_custom_call.1} parent=43 // pred_check
          %p3592 = pneg %p3591
        $region70: #{tpu_custom_call.1} parent=43 // pred_check_branch
          %3594 = sbr.rel (%p3592) target = $region72
        $region71: #{tpu_custom_call.1} parent=43 // pred_region
          %3595 = vst [vmem:[%s326 + $0x30] sm:$0xff] %v3406
          %3596 = vst [vmem:[%s326 + $0x38] sm:$0xff] %v3408
          %3597 = vst [vmem:[%s326 + $0x70] sm:$0xff] %v3410
          %3598 = vst [vmem:[%s326 + $0x78] sm:$0xff] %v3412
          %3599 = vst [vmem:[%s326 + $0xb0] sm:$0xff] %v3416
          %3600 = vst [vmem:[%s326 + $0xb8] sm:$0xff] %v3418
          %3601 = vst [vmem:[%s326 + $0xf0] sm:$0xff] %v3420
          %3602 = vst [vmem:[%s326 + $0xf8] sm:$0xff] %v3422
          %3603 = vst [vmem:[%s326 + $0x130] sm:$0xff] %v3426
          %3604 = vst [vmem:[%s326 + $0x138] sm:$0xff] %v3428
          %3605 = vst [vmem:[%s326 + $0x170] sm:$0xff] %v3430
          %3606 = vst [vmem:[%s326 + $0x178] sm:$0xff] %v3432
          %3607 = vst [vmem:[%s326 + $0x1b0] sm:$0xff] %v3436
          %3608 = vst [vmem:[%s326 + $0x1b8] sm:$0xff] %v3438
          %3609 = vst [vmem:[%s326 + $0x1f0] sm:$0xff] %v3440
          %3610 = vst [vmem:[%s326 + $0x1f8] sm:$0xff] %v3442
          %3611 = vst [vmem:[%s326 + $0x230] sm:$0xff] %v3446
          %3612 = vst [vmem:[%s326 + $0x238] sm:$0xff] %v3448
          %3613 = vst [vmem:[%s326 + $0x270] sm:$0xff] %v3450
          %3614 = vst [vmem:[%s326 + $0x278] sm:$0xff] %v3452
          %3615 = vst [vmem:[%s326 + $0x2b0] sm:$0xff] %v3456
          %3616 = vst [vmem:[%s326 + $0x2b8] sm:$0xff] %v3458
          %3617 = vst [vmem:[%s326 + $0x2f0] sm:$0xff] %v3460
          %3618 = vst [vmem:[%s326 + $0x2f8] sm:$0xff] %v3462
          %3619 = vst [vmem:[%s326 + $0x330] sm:$0xff] %v3466
          %3620 = vst [vmem:[%s326 + $0x338] sm:$0xff] %v3468
          %3621 = vst [vmem:[%s326 + $0x370] sm:$0xff] %v3470
          %3622 = vst [vmem:[%s326 + $0x378] sm:$0xff] %v3472
          %3623 = vst [vmem:[%s326 + $0x3b0] sm:$0xff] %v3476
          %3624 = vst [vmem:[%s326 + $0x3b8] sm:$0xff] %v3478
          %3625 = vst [vmem:[%s326 + $0x3f0] sm:$0xff] %v3480
          %3626 = vst [vmem:[%s326 + $0x3f8] sm:$0xff] %v3482
        $region72: #{tpu_custom_call.1} parent=43 // pred_fallthru
          _
        %v3627 = vld [vmem:[#allocation3] sm:$0xff]
        %v3628 = vld [vmem:[#allocation3 + $0x8] sm:$0xff]
        %v3629 = vld [vmem:[#allocation3 + $0x10] sm:$0xff]
        %v3630 = vld [vmem:[#allocation3 + $0x18] sm:$0xff]
        %v3631 = vld [vmem:[#allocation3 + $0x20] sm:$0xff]
        %v3632 = vld [vmem:[#allocation3 + $0x28] sm:$0xff]
        %v3633 = vld [vmem:[#allocation3 + $0x30] sm:$0xff]
        %v3634 = vld [vmem:[#allocation3 + $0x38] sm:$0xff]
        %v3635 = vld [vmem:[#allocation3 + $0x40] sm:$0xff]
        %v3636 = vld [vmem:[#allocation3 + $0x48] sm:$0xff]
        %v3637 = vld [vmem:[#allocation3 + $0x50] sm:$0xff]
        %v3638 = vld [vmem:[#allocation3 + $0x58] sm:$0xff]
        %v3639 = vld [vmem:[#allocation3 + $0x60] sm:$0xff]
        %v3640 = vld [vmem:[#allocation3 + $0x68] sm:$0xff]
        %v3641 = vld [vmem:[#allocation3 + $0x70] sm:$0xff]
        %v3642 = vld [vmem:[#allocation3 + $0x78] sm:$0xff]
        %v3643 = vmax.f32 %v3406, %v3408
        %3644 = vmax.xlane.f32.xlu0 %v3643
        %v3645 = vpop.xlane.xlu0 %3644
        %v3646 = vmax.f32 %v3410, %v3412
        %3647 = vmax.xlane.f32.xlu0 %v3646
        %v3648 = vpop.xlane.xlu0 %3647
        %v3649 = vmax.f32 %v3416, %v3418
        %3650 = vmax.xlane.f32.xlu0 %v3649
        %v3651 = vpop.xlane.xlu0 %3650
        %v3652 = vmax.f32 %v3420, %v3422
        %3653 = vmax.xlane.f32.xlu0 %v3652
        %v3654 = vpop.xlane.xlu0 %3653
        %v3655 = vmax.f32 %v3426, %v3428
        %3656 = vmax.xlane.f32.xlu0 %v3655
        %v3657 = vpop.xlane.xlu0 %3656
        %v3658 = vmax.f32 %v3430, %v3432
        %3659 = vmax.xlane.f32.xlu0 %v3658
        %v3660 = vpop.xlane.xlu0 %3659
        %v3661 = vmax.f32 %v3436, %v3438
        %3662 = vmax.xlane.f32.xlu0 %v3661
        %v3663 = vpop.xlane.xlu0 %3662
        %v3664 = vmax.f32 %v3440, %v3442
        %3665 = vmax.xlane.f32.xlu0 %v3664
        %v3666 = vpop.xlane.xlu0 %3665
        %v3667 = vmax.f32 %v3446, %v3448
        %3668 = vmax.xlane.f32.xlu0 %v3667
        %v3669 = vpop.xlane.xlu0 %3668
        %v3670 = vmax.f32 %v3450, %v3452
        %3671 = vmax.xlane.f32.xlu0 %v3670
        %v3672 = vpop.xlane.xlu0 %3671
        %v3673 = vmax.f32 %v3456, %v3458
        %3674 = vmax.xlane.f32.xlu0 %v3673
        %v3675 = vpop.xlane.xlu0 %3674
        %v3676 = vmax.f32 %v3460, %v3462
        %3677 = vmax.xlane.f32.xlu0 %v3676
        %v3678 = vpop.xlane.xlu0 %3677
        %v3679 = vmax.f32 %v3466, %v3468
        %3680 = vmax.xlane.f32.xlu0 %v3679
        %v3681 = vpop.xlane.xlu0 %3680
        %v3682 = vmax.f32 %v3470, %v3472
        %3683 = vmax.xlane.f32.xlu0 %v3682
        %v3684 = vpop.xlane.xlu0 %3683
        %v3685 = vmax.f32 %v3476, %v3478
        %3686 = vmax.xlane.f32.xlu0 %v3685
        %v3687 = vpop.xlane.xlu0 %3686
        %v3688 = vmax.f32 %v3480, %v3482
        %3689 = vmax.xlane.f32.xlu0 %v3688
        %v3690 = vpop.xlane.xlu0 %3689
        %v3691 = vmax.f32 %v3627, %v3645
        %v3692 = vmax.f32 %v3628, %v3648
        %v3693 = vmax.f32 %v3629, %v3651
        %v3694 = vmax.f32 %v3630, %v3654
        %v3695 = vmax.f32 %v3631, %v3657
        %v3696 = vmax.f32 %v3632, %v3660
        %v3697 = vmax.f32 %v3633, %v3663
        %v3698 = vmax.f32 %v3634, %v3666
        %v3699 = vmax.f32 %v3635, %v3669
        %v3700 = vmax.f32 %v3636, %v3672
        %v3701 = vmax.f32 %v3637, %v3675
        %v3702 = vmax.f32 %v3638, %v3678
        %v3703 = vmax.f32 %v3639, %v3681
        %v3704 = vmax.f32 %v3640, %v3684
        %v3705 = vmax.f32 %v3641, %v3687
        %v3706 = vmax.f32 %v3642, %v3690
        %v3707 = vld [vmem:[#allocation4] sm:$0xff]
        %v3708 = vld [vmem:[#allocation4 + $0x8] sm:$0xff]
        %v3709 = vld [vmem:[#allocation4 + $0x10] sm:$0xff]
        %v3710 = vld [vmem:[#allocation4 + $0x18] sm:$0xff]
        %v3711 = vld [vmem:[#allocation4 + $0x20] sm:$0xff]
        %v3712 = vld [vmem:[#allocation4 + $0x28] sm:$0xff]
        %v3713 = vld [vmem:[#allocation4 + $0x30] sm:$0xff]
        %v3714 = vld [vmem:[#allocation4 + $0x38] sm:$0xff]
        %v3715 = vld [vmem:[#allocation4 + $0x40] sm:$0xff]
        %v3716 = vld [vmem:[#allocation4 + $0x48] sm:$0xff]
        %v3717 = vld [vmem:[#allocation4 + $0x50] sm:$0xff]
        %v3718 = vld [vmem:[#allocation4 + $0x58] sm:$0xff]
        %v3719 = vld [vmem:[#allocation4 + $0x60] sm:$0xff]
        %v3720 = vld [vmem:[#allocation4 + $0x68] sm:$0xff]
        %v3721 = vld [vmem:[#allocation4 + $0x70] sm:$0xff]
        %v3722 = vld [vmem:[#allocation4 + $0x78] sm:$0xff]
        %v3723 = vsub.f32 %v3627, %v3691
        %v3724 = vsub.f32 %v3628, %v3692
        %v3725 = vsub.f32 %v3629, %v3693
        %v3726 = vsub.f32 %v3630, %v3694
        %v3727 = vsub.f32 %v3631, %v3695
        %v3728 = vsub.f32 %v3632, %v3696
        %v3729 = vsub.f32 %v3633, %v3697
        %v3730 = vsub.f32 %v3634, %v3698
        %v3731 = vsub.f32 %v3635, %v3699
        %v3732 = vsub.f32 %v3636, %v3700
        %v3733 = vsub.f32 %v3637, %v3701
        %v3734 = vsub.f32 %v3638, %v3702
        %v3735 = vsub.f32 %v3639, %v3703
        %v3736 = vsub.f32 %v3640, %v3704
        %v3737 = vsub.f32 %v3641, %v3705
        %v3738 = vsub.f32 %v3642, %v3706
        %v3739 = vmul.f32 %v3723, 1.442695
        %v3740 = vpow.pop %v3739
        %v3741 = vmul.f32 %v3724, 1.442695
        %v3742 = vpow.pop %v3741
        %v3743 = vmul.f32 %v3725, 1.442695
        %v3744 = vpow.pop %v3743
        %v3745 = vmul.f32 %v3726, 1.442695
        %v3746 = vpow.pop %v3745
        %v3747 = vmul.f32 %v3727, 1.442695
        %v3748 = vpow.pop %v3747
        %v3749 = vmul.f32 %v3728, 1.442695
        %v3750 = vpow.pop %v3749
        %v3751 = vmul.f32 %v3729, 1.442695
        %v3752 = vpow.pop %v3751
        %v3753 = vmul.f32 %v3730, 1.442695
        %v3754 = vpow.pop %v3753
        %v3755 = vmul.f32 %v3731, 1.442695
        %v3756 = vpow.pop %v3755
        %v3757 = vmul.f32 %v3732, 1.442695
        %v3758 = vpow.pop %v3757
        %v3759 = vmul.f32 %v3733, 1.442695
        %v3760 = vpow.pop %v3759
        %v3761 = vmul.f32 %v3734, 1.442695
        %v3762 = vpow.pop %v3761
        %v3763 = vmul.f32 %v3735, 1.442695
        %v3764 = vpow.pop %v3763
        %v3765 = vmul.f32 %v3736, 1.442695
        %v3766 = vpow.pop %v3765
        %v3767 = vmul.f32 %v3737, 1.442695
        %v3768 = vpow.pop %v3767
        %v3769 = vmul.f32 %v3738, 1.442695
        %v3770 = vpow.pop %v3769
        %v3771 = vmul.f32 %v3707, %v3740
        %v3772 = vmul.f32 %v3708, %v3742
        %v3773 = vmul.f32 %v3709, %v3744
        %v3774 = vmul.f32 %v3710, %v3746
        %v3775 = vmul.f32 %v3711, %v3748
        %v3776 = vmul.f32 %v3712, %v3750
        %v3777 = vmul.f32 %v3713, %v3752
        %v3778 = vmul.f32 %v3714, %v3754
        %v3779 = vmul.f32 %v3715, %v3756
        %v3780 = vmul.f32 %v3716, %v3758
        %v3781 = vmul.f32 %v3717, %v3760
        %v3782 = vmul.f32 %v3718, %v3762
        %v3783 = vmul.f32 %v3719, %v3764
        %v3784 = vmul.f32 %v3720, %v3766
        %v3785 = vmul.f32 %v3721, %v3768
        %v3786 = vmul.f32 %v3722, %v3770
        %3788 = vset.pattern.permute.xlu0 0
        %3789 = vperm.xlu0 %3788, %v3691
        %v3790 = vpop.permute.xlu0 %3789
        %3793 = vset.pattern.permute.xlu0 0
        %3794 = vperm.xlu0 %3793, %v3692
        %v3795 = vpop.permute.xlu0 %3794
        %3798 = vset.pattern.permute.xlu0 0
        %3799 = vperm.xlu0 %3798, %v3693
        %v3800 = vpop.permute.xlu0 %3799
        %3803 = vset.pattern.permute.xlu0 0
        %3804 = vperm.xlu0 %3803, %v3694
        %v3805 = vpop.permute.xlu0 %3804
        %3808 = vset.pattern.permute.xlu0 0
        %3809 = vperm.xlu0 %3808, %v3695
        %v3810 = vpop.permute.xlu0 %3809
        %3813 = vset.pattern.permute.xlu0 0
        %3814 = vperm.xlu0 %3813, %v3696
        %v3815 = vpop.permute.xlu0 %3814
        %3818 = vset.pattern.permute.xlu0 0
        %3819 = vperm.xlu0 %3818, %v3697
        %v3820 = vpop.permute.xlu0 %3819
        %3823 = vset.pattern.permute.xlu0 0
        %3824 = vperm.xlu0 %3823, %v3698
        %v3825 = vpop.permute.xlu0 %3824
        %3828 = vset.pattern.permute.xlu0 0
        %3829 = vperm.xlu0 %3828, %v3699
        %v3830 = vpop.permute.xlu0 %3829
        %3833 = vset.pattern.permute.xlu0 0
        %3834 = vperm.xlu0 %3833, %v3700
        %v3835 = vpop.permute.xlu0 %3834
        %3838 = vset.pattern.permute.xlu0 0
        %3839 = vperm.xlu0 %3838, %v3701
        %v3840 = vpop.permute.xlu0 %3839
        %3843 = vset.pattern.permute.xlu0 0
        %3844 = vperm.xlu0 %3843, %v3702
        %v3845 = vpop.permute.xlu0 %3844
        %3848 = vset.pattern.permute.xlu0 0
        %3849 = vperm.xlu0 %3848, %v3703
        %v3850 = vpop.permute.xlu0 %3849
        %3853 = vset.pattern.permute.xlu0 0
        %3854 = vperm.xlu0 %3853, %v3704
        %v3855 = vpop.permute.xlu0 %3854
        %3858 = vset.pattern.permute.xlu0 0
        %3859 = vperm.xlu0 %3858, %v3705
        %v3860 = vpop.permute.xlu0 %3859
        %3863 = vset.pattern.permute.xlu0 0
        %3864 = vperm.xlu0 %3863, %v3706
        %v3865 = vpop.permute.xlu0 %3864
        %v3867 = vsub.f32 %v3406, %v3790
        %v3868 = vsub.f32 %v3408, %v3790
        %v3869 = vsub.f32 %v3410, %v3795
        %v3870 = vsub.f32 %v3412, %v3795
        %v3871 = vsub.f32 %v3416, %v3800
        %v3872 = vsub.f32 %v3418, %v3800
        %v3873 = vsub.f32 %v3420, %v3805
        %v3874 = vsub.f32 %v3422, %v3805
        %v3875 = vsub.f32 %v3426, %v3810
        %v3876 = vsub.f32 %v3428, %v3810
        %v3877 = vsub.f32 %v3430, %v3815
        %v3878 = vsub.f32 %v3432, %v3815
        %v3879 = vsub.f32 %v3436, %v3820
        %v3880 = vsub.f32 %v3438, %v3820
        %v3881 = vsub.f32 %v3440, %v3825
        %v3882 = vsub.f32 %v3442, %v3825
        %v3883 = vsub.f32 %v3446, %v3830
        %v3884 = vsub.f32 %v3448, %v3830
        %v3885 = vsub.f32 %v3450, %v3835
        %v3886 = vsub.f32 %v3452, %v3835
        %v3887 = vsub.f32 %v3456, %v3840
        %v3888 = vsub.f32 %v3458, %v3840
        %v3889 = vsub.f32 %v3460, %v3845
        %v3890 = vsub.f32 %v3462, %v3845
        %v3891 = vsub.f32 %v3466, %v3850
        %v3892 = vsub.f32 %v3468, %v3850
        %v3893 = vsub.f32 %v3470, %v3855
        %v3894 = vsub.f32 %v3472, %v3855
        %v3895 = vsub.f32 %v3476, %v3860
        %v3896 = vsub.f32 %v3478, %v3860
        %v3897 = vsub.f32 %v3480, %v3865
        %v3898 = vsub.f32 %v3482, %v3865
        %v3899 = vmul.f32 %v3867, 1.442695
        %v3900 = vpow.pop %v3899
        %v3901 = vmul.f32 %v3868, 1.442695
        %v3902 = vpow.pop %v3901
        %v3903 = vmul.f32 %v3869, 1.442695
        %v3904 = vpow.pop %v3903
        %v3905 = vmul.f32 %v3870, 1.442695
        %v3906 = vpow.pop %v3905
        %v3907 = vmul.f32 %v3871, 1.442695
        %v3908 = vpow.pop %v3907
        %v3909 = vmul.f32 %v3872, 1.442695
        %v3910 = vpow.pop %v3909
        %v3911 = vmul.f32 %v3873, 1.442695
        %v3912 = vpow.pop %v3911
        %v3913 = vmul.f32 %v3874, 1.442695
        %v3914 = vpow.pop %v3913
        %v3915 = vmul.f32 %v3875, 1.442695
        %v3916 = vpow.pop %v3915
        %v3917 = vmul.f32 %v3876, 1.442695
        %v3918 = vpow.pop %v3917
        %v3919 = vmul.f32 %v3877, 1.442695
        %v3920 = vpow.pop %v3919
        %v3921 = vmul.f32 %v3878, 1.442695
        %v3922 = vpow.pop %v3921
        %v3923 = vmul.f32 %v3879, 1.442695
        %v3924 = vpow.pop %v3923
        %v3925 = vmul.f32 %v3880, 1.442695
        %v3926 = vpow.pop %v3925
        %v3927 = vmul.f32 %v3881, 1.442695
        %v3928 = vpow.pop %v3927
        %v3929 = vmul.f32 %v3882, 1.442695
        %v3930 = vpow.pop %v3929
        %v3931 = vmul.f32 %v3883, 1.442695
        %v3932 = vpow.pop %v3931
        %v3933 = vmul.f32 %v3884, 1.442695
        %v3934 = vpow.pop %v3933
        %v3935 = vmul.f32 %v3885, 1.442695
        %v3936 = vpow.pop %v3935
        %v3937 = vmul.f32 %v3886, 1.442695
        %v3938 = vpow.pop %v3937
        %v3939 = vmul.f32 %v3887, 1.442695
        %v3940 = vpow.pop %v3939
        %v3941 = vmul.f32 %v3888, 1.442695
        %v3942 = vpow.pop %v3941
        %v3943 = vmul.f32 %v3889, 1.442695
        %v3944 = vpow.pop %v3943
        %v3945 = vmul.f32 %v3890, 1.442695
        %v3946 = vpow.pop %v3945
        %v3947 = vmul.f32 %v3891, 1.442695
        %v3948 = vpow.pop %v3947
        %v3949 = vmul.f32 %v3892, 1.442695
        %v3950 = vpow.pop %v3949
        %v3951 = vmul.f32 %v3893, 1.442695
        %v3952 = vpow.pop %v3951
        %v3953 = vmul.f32 %v3894, 1.442695
        %v3954 = vpow.pop %v3953
        %v3955 = vmul.f32 %v3895, 1.442695
        %v3956 = vpow.pop %v3955
        %v3957 = vmul.f32 %v3896, 1.442695
        %v3958 = vpow.pop %v3957
        %v3959 = vmul.f32 %v3897, 1.442695
        %v3960 = vpow.pop %v3959
        %v3961 = vmul.f32 %v3898, 1.442695
        %v3962 = vpow.pop %v3961
        %v3963 = vadd.f32 %v3900, %v3902
        %3964 = vadd.xlane.f32.xlu0 %v3963
        %v3965 = vpop.xlane.xlu0 %3964
        %v3966 = vadd.f32 %v3904, %v3906
        %3967 = vadd.xlane.f32.xlu0 %v3966
        %v3968 = vpop.xlane.xlu0 %3967
        %v3969 = vadd.f32 %v3908, %v3910
        %3970 = vadd.xlane.f32.xlu0 %v3969
        %v3971 = vpop.xlane.xlu0 %3970
        %v3972 = vadd.f32 %v3912, %v3914
        %3973 = vadd.xlane.f32.xlu0 %v3972
        %v3974 = vpop.xlane.xlu0 %3973
        %v3975 = vadd.f32 %v3916, %v3918
        %3976 = vadd.xlane.f32.xlu0 %v3975
        %v3977 = vpop.xlane.xlu0 %3976
        %v3978 = vadd.f32 %v3920, %v3922
        %3979 = vadd.xlane.f32.xlu0 %v3978
        %v3980 = vpop.xlane.xlu0 %3979
        %v3981 = vadd.f32 %v3924, %v3926
        %3982 = vadd.xlane.f32.xlu0 %v3981
        %v3983 = vpop.xlane.xlu0 %3982
        %v3984 = vadd.f32 %v3928, %v3930
        %3985 = vadd.xlane.f32.xlu0 %v3984
        %v3986 = vpop.xlane.xlu0 %3985
        %v3987 = vadd.f32 %v3932, %v3934
        %3988 = vadd.xlane.f32.xlu0 %v3987
        %v3989 = vpop.xlane.xlu0 %3988
        %v3990 = vadd.f32 %v3936, %v3938
        %3991 = vadd.xlane.f32.xlu0 %v3990
        %v3992 = vpop.xlane.xlu0 %3991
        %v3993 = vadd.f32 %v3940, %v3942
        %3994 = vadd.xlane.f32.xlu0 %v3993
        %v3995 = vpop.xlane.xlu0 %3994
        %v3996 = vadd.f32 %v3944, %v3946
        %3997 = vadd.xlane.f32.xlu0 %v3996
        %v3998 = vpop.xlane.xlu0 %3997
        %v3999 = vadd.f32 %v3948, %v3950
        %4000 = vadd.xlane.f32.xlu0 %v3999
        %v4001 = vpop.xlane.xlu0 %4000
        %v4002 = vadd.f32 %v3952, %v3954
        %4003 = vadd.xlane.f32.xlu0 %v4002
        %v4004 = vpop.xlane.xlu0 %4003
        %v4005 = vadd.f32 %v3956, %v3958
        %4006 = vadd.xlane.f32.xlu0 %v4005
        %v4007 = vpop.xlane.xlu0 %4006
        %v4008 = vadd.f32 %v3960, %v3962
        %4009 = vadd.xlane.f32.xlu0 %v4008
        %v4010 = vpop.xlane.xlu0 %4009
        %v4011 = vadd.f32 %v3771, %v3965
        %v4012 = vadd.f32 %v3772, %v3968
        %v4013 = vadd.f32 %v3773, %v3971
        %v4014 = vadd.f32 %v3774, %v3974
        %v4015 = vadd.f32 %v3775, %v3977
        %v4016 = vadd.f32 %v3776, %v3980
        %v4017 = vadd.f32 %v3777, %v3983
        %v4018 = vadd.f32 %v3778, %v3986
        %v4019 = vadd.f32 %v3779, %v3989
        %v4020 = vadd.f32 %v3780, %v3992
        %v4021 = vadd.f32 %v3781, %v3995
        %v4022 = vadd.f32 %v3782, %v3998
        %v4023 = vadd.f32 %v3783, %v4001
        %v4024 = vadd.f32 %v3784, %v4004
        %v4025 = vadd.f32 %v3785, %v4007
        %v4026 = vadd.f32 %v3786, %v4010
        %vm4027 = vcmask 7168
        %4028 = vst.msk [vmem:[#allocation4] sm:$0xff] %vm4027, %v4011
        %4029 = vst.msk [vmem:[#allocation4 + $0x8] sm:$0xff] %vm4027, %v4012
        %4030 = vst.msk [vmem:[#allocation4 + $0x10] sm:$0xff] %vm4027, %v4013
        %4031 = vst.msk [vmem:[#allocation4 + $0x18] sm:$0xff] %vm4027, %v4014
        %4032 = vst.msk [vmem:[#allocation4 + $0x20] sm:$0xff] %vm4027, %v4015
        %4033 = vst.msk [vmem:[#allocation4 + $0x28] sm:$0xff] %vm4027, %v4016
        %4034 = vst.msk [vmem:[#allocation4 + $0x30] sm:$0xff] %vm4027, %v4017
        %4035 = vst.msk [vmem:[#allocation4 + $0x38] sm:$0xff] %vm4027, %v4018
        %4036 = vst.msk [vmem:[#allocation4 + $0x40] sm:$0xff] %vm4027, %v4019
        %4037 = vst.msk [vmem:[#allocation4 + $0x48] sm:$0xff] %vm4027, %v4020
        %4038 = vst.msk [vmem:[#allocation4 + $0x50] sm:$0xff] %vm4027, %v4021
        %4039 = vst.msk [vmem:[#allocation4 + $0x58] sm:$0xff] %vm4027, %v4022
        %4040 = vst.msk [vmem:[#allocation4 + $0x60] sm:$0xff] %vm4027, %v4023
        %4041 = vst.msk [vmem:[#allocation4 + $0x68] sm:$0xff] %vm4027, %v4024
        %4042 = vst.msk [vmem:[#allocation4 + $0x70] sm:$0xff] %vm4027, %v4025
        %4043 = vst.msk [vmem:[#allocation4 + $0x78] sm:$0xff] %vm4027, %v4026
        %4044 = vst.msk [vmem:[#allocation3] sm:$0xff] %vm4027, %v3691
        %4045 = vst.msk [vmem:[#allocation3 + $0x8] sm:$0xff] %vm4027, %v3692
        %4046 = vst.msk [vmem:[#allocation3 + $0x10] sm:$0xff] %vm4027, %v3693
        %4047 = vst.msk [vmem:[#allocation3 + $0x18] sm:$0xff] %vm4027, %v3694
        %4048 = vst.msk [vmem:[#allocation3 + $0x20] sm:$0xff] %vm4027, %v3695
        %4049 = vst.msk [vmem:[#allocation3 + $0x28] sm:$0xff] %vm4027, %v3696
        %4050 = vst.msk [vmem:[#allocation3 + $0x30] sm:$0xff] %vm4027, %v3697
        %4051 = vst.msk [vmem:[#allocation3 + $0x38] sm:$0xff] %vm4027, %v3698
        %4052 = vst.msk [vmem:[#allocation3 + $0x40] sm:$0xff] %vm4027, %v3699
        %4053 = vst.msk [vmem:[#allocation3 + $0x48] sm:$0xff] %vm4027, %v3700
        %4054 = vst.msk [vmem:[#allocation3 + $0x50] sm:$0xff] %vm4027, %v3701
        %4055 = vst.msk [vmem:[#allocation3 + $0x58] sm:$0xff] %vm4027, %v3702
        %4056 = vst.msk [vmem:[#allocation3 + $0x60] sm:$0xff] %vm4027, %v3703
        %4057 = vst.msk [vmem:[#allocation3 + $0x68] sm:$0xff] %vm4027, %v3704
        %4058 = vst.msk [vmem:[#allocation3 + $0x70] sm:$0xff] %vm4027, %v3705
        %4059 = vst.msk [vmem:[#allocation3 + $0x78] sm:$0xff] %vm4027, %v3706
        // Predicated region
        $region73: #{tpu_custom_call.1} parent=43 // pred_check
          %p4060 = pneg %p3591
        $region74: #{tpu_custom_call.1} parent=43 // pred_check_branch
          %4062 = sbr.rel (%p4060) target = $region76
        $region75: #{tpu_custom_call.1} parent=43 // pred_region
          %v4063 = vld [vmem:[#allocation3] sm:$0xff]
          %v4064 = vld [vmem:[#allocation3 + $0x8] sm:$0xff]
          %v4065 = vld [vmem:[#allocation3 + $0x10] sm:$0xff]
          %v4066 = vld [vmem:[#allocation3 + $0x18] sm:$0xff]
          %v4067 = vld [vmem:[#allocation3 + $0x20] sm:$0xff]
          %v4068 = vld [vmem:[#allocation3 + $0x28] sm:$0xff]
          %v4069 = vld [vmem:[#allocation3 + $0x30] sm:$0xff]
          %v4070 = vld [vmem:[#allocation3 + $0x38] sm:$0xff]
          %v4071 = vld [vmem:[#allocation3 + $0x40] sm:$0xff]
          %v4072 = vld [vmem:[#allocation3 + $0x48] sm:$0xff]
          %v4073 = vld [vmem:[#allocation3 + $0x50] sm:$0xff]
          %v4074 = vld [vmem:[#allocation3 + $0x58] sm:$0xff]
          %v4075 = vld [vmem:[#allocation3 + $0x60] sm:$0xff]
          %v4076 = vld [vmem:[#allocation3 + $0x68] sm:$0xff]
          %v4077 = vld [vmem:[#allocation3 + $0x70] sm:$0xff]
          %v4078 = vld [vmem:[#allocation3 + $0x78] sm:$0xff]
          %v4079 = vld [vmem:[#allocation4] sm:$0xff]
          %v4080 = vld [vmem:[#allocation4 + $0x8] sm:$0xff]
          %v4081 = vld [vmem:[#allocation4 + $0x10] sm:$0xff]
          %v4082 = vld [vmem:[#allocation4 + $0x18] sm:$0xff]
          %v4083 = vld [vmem:[#allocation4 + $0x20] sm:$0xff]
          %v4084 = vld [vmem:[#allocation4 + $0x28] sm:$0xff]
          %v4085 = vld [vmem:[#allocation4 + $0x30] sm:$0xff]
          %v4086 = vld [vmem:[#allocation4 + $0x38] sm:$0xff]
          %v4087 = vld [vmem:[#allocation4 + $0x40] sm:$0xff]
          %v4088 = vld [vmem:[#allocation4 + $0x48] sm:$0xff]
          %v4089 = vld [vmem:[#allocation4 + $0x50] sm:$0xff]
          %v4090 = vld [vmem:[#allocation4 + $0x58] sm:$0xff]
          %v4091 = vld [vmem:[#allocation4 + $0x60] sm:$0xff]
          %v4092 = vld [vmem:[#allocation4 + $0x68] sm:$0xff]
          %v4093 = vld [vmem:[#allocation4 + $0x70] sm:$0xff]
          %v4094 = vld [vmem:[#allocation4 + $0x78] sm:$0xff]
          %v4095 = vlog2.pop %v4079
          %v4096 = vmul.f32 %v4095, 0.6931472
          %v4097 = vlog2.pop %v4080
          %v4098 = vmul.f32 %v4097, 0.6931472
          %v4099 = vlog2.pop %v4081
          %v4100 = vmul.f32 %v4099, 0.6931472
          %v4101 = vlog2.pop %v4082
          %v4102 = vmul.f32 %v4101, 0.6931472
          %v4103 = vlog2.pop %v4083
          %v4104 = vmul.f32 %v4103, 0.6931472
          %v4105 = vlog2.pop %v4084
          %v4106 = vmul.f32 %v4105, 0.6931472
          %v4107 = vlog2.pop %v4085
          %v4108 = vmul.f32 %v4107, 0.6931472
          %v4109 = vlog2.pop %v4086
          %v4110 = vmul.f32 %v4109, 0.6931472
          %v4111 = vlog2.pop %v4087
          %v4112 = vmul.f32 %v4111, 0.6931472
          %v4113 = vlog2.pop %v4088
          %v4114 = vmul.f32 %v4113, 0.6931472
          %v4115 = vlog2.pop %v4089
          %v4116 = vmul.f32 %v4115, 0.6931472
          %v4117 = vlog2.pop %v4090
          %v4118 = vmul.f32 %v4117, 0.6931472
          %v4119 = vlog2.pop %v4091
          %v4120 = vmul.f32 %v4119, 0.6931472
          %v4121 = vlog2.pop %v4092
          %v4122 = vmul.f32 %v4121, 0.6931472
          %v4123 = vlog2.pop %v4093
          %v4124 = vmul.f32 %v4123, 0.6931472
          %v4125 = vlog2.pop %v4094
          %v4126 = vmul.f32 %v4125, 0.6931472
          %v4127 = vadd.f32 %v4063, %v4096
          %v4128 = vadd.f32 %v4064, %v4098
          %v4129 = vadd.f32 %v4065, %v4100
          %v4130 = vadd.f32 %v4066, %v4102
          %v4131 = vadd.f32 %v4067, %v4104
          %v4132 = vadd.f32 %v4068, %v4106
          %v4133 = vadd.f32 %v4069, %v4108
          %v4134 = vadd.f32 %v4070, %v4110
          %v4135 = vadd.f32 %v4071, %v4112
          %v4136 = vadd.f32 %v4072, %v4114
          %v4137 = vadd.f32 %v4073, %v4116
          %v4138 = vadd.f32 %v4074, %v4118
          %v4139 = vadd.f32 %v4075, %v4120
          %v4140 = vadd.f32 %v4076, %v4122
          %v4141 = vadd.f32 %v4077, %v4124
          %v4142 = vadd.f32 %v4078, %v4126
          %v4143 = vld [vmem:[%s326] sm:$0xff]
          %v4144 = vld [vmem:[%s326 + $0x8] sm:$0xff]
          %v4145 = vld [vmem:[%s326 + $0x40] sm:$0xff]
          %v4146 = vld [vmem:[%s326 + $0x48] sm:$0xff]
          %v4147 = vld [vmem:[%s326 + $0x80] sm:$0xff]
          %v4148 = vld [vmem:[%s326 + $0x88] sm:$0xff]
          %v4149 = vld [vmem:[%s326 + $0xc0] sm:$0xff]
          %v4150 = vld [vmem:[%s326 + $0xc8] sm:$0xff]
          %v4151 = vld [vmem:[%s326 + $0x100] sm:$0xff]
          %v4152 = vld [vmem:[%s326 + $0x108] sm:$0xff]
          %v4153 = vld [vmem:[%s326 + $0x140] sm:$0xff]
          %v4154 = vld [vmem:[%s326 + $0x148] sm:$0xff]
          %v4155 = vld [vmem:[%s326 + $0x180] sm:$0xff]
          %v4156 = vld [vmem:[%s326 + $0x188] sm:$0xff]
          %v4157 = vld [vmem:[%s326 + $0x1c0] sm:$0xff]
          %v4158 = vld [vmem:[%s326 + $0x1c8] sm:$0xff]
          %v4159 = vld [vmem:[%s326 + $0x200] sm:$0xff]
          %v4160 = vld [vmem:[%s326 + $0x208] sm:$0xff]
          %v4161 = vld [vmem:[%s326 + $0x240] sm:$0xff]
          %v4162 = vld [vmem:[%s326 + $0x248] sm:$0xff]
          %v4163 = vld [vmem:[%s326 + $0x280] sm:$0xff]
          %v4164 = vld [vmem:[%s326 + $0x288] sm:$0xff]
          %v4165 = vld [vmem:[%s326 + $0x2c0] sm:$0xff]
          %v4166 = vld [vmem:[%s326 + $0x2c8] sm:$0xff]
          %v4167 = vld [vmem:[%s326 + $0x300] sm:$0xff]
          %v4168 = vld [vmem:[%s326 + $0x308] sm:$0xff]
          %v4169 = vld [vmem:[%s326 + $0x340] sm:$0xff]
          %v4170 = vld [vmem:[%s326 + $0x348] sm:$0xff]
          %v4171 = vld [vmem:[%s326 + $0x380] sm:$0xff]
          %v4172 = vld [vmem:[%s326 + $0x388] sm:$0xff]
          %v4173 = vld [vmem:[%s326 + $0x3c0] sm:$0xff]
          %v4174 = vld [vmem:[%s326 + $0x3c8] sm:$0xff]
          %4176 = vset.pattern.permute.xlu0 0
          %4177 = vperm.xlu0 %4176, %v4127
          %v4178 = vpop.permute.xlu0 %4177
          %4181 = vset.pattern.permute.xlu0 0
          %4182 = vperm.xlu0 %4181, %v4128
          %v4183 = vpop.permute.xlu0 %4182
          %4186 = vset.pattern.permute.xlu0 0
          %4187 = vperm.xlu0 %4186, %v4129
          %v4188 = vpop.permute.xlu0 %4187
          %4191 = vset.pattern.permute.xlu0 0
          %4192 = vperm.xlu0 %4191, %v4130
          %v4193 = vpop.permute.xlu0 %4192
          %4196 = vset.pattern.permute.xlu0 0
          %4197 = vperm.xlu0 %4196, %v4131
          %v4198 = vpop.permute.xlu0 %4197
          %4201 = vset.pattern.permute.xlu0 0
          %4202 = vperm.xlu0 %4201, %v4132
          %v4203 = vpop.permute.xlu0 %4202
          %4206 = vset.pattern.permute.xlu0 0
          %4207 = vperm.xlu0 %4206, %v4133
          %v4208 = vpop.permute.xlu0 %4207
          %4211 = vset.pattern.permute.xlu0 0
          %4212 = vperm.xlu0 %4211, %v4134
          %v4213 = vpop.permute.xlu0 %4212
          %4216 = vset.pattern.permute.xlu0 0
          %4217 = vperm.xlu0 %4216, %v4135
          %v4218 = vpop.permute.xlu0 %4217
          %4221 = vset.pattern.permute.xlu0 0
          %4222 = vperm.xlu0 %4221, %v4136
          %v4223 = vpop.permute.xlu0 %4222
          %4226 = vset.pattern.permute.xlu0 0
          %4227 = vperm.xlu0 %4226, %v4137
          %v4228 = vpop.permute.xlu0 %4227
          %4231 = vset.pattern.permute.xlu0 0
          %4232 = vperm.xlu0 %4231, %v4138
          %v4233 = vpop.permute.xlu0 %4232
          %4236 = vset.pattern.permute.xlu0 0
          %4237 = vperm.xlu0 %4236, %v4139
          %v4238 = vpop.permute.xlu0 %4237
          %4241 = vset.pattern.permute.xlu0 0
          %4242 = vperm.xlu0 %4241, %v4140
          %v4243 = vpop.permute.xlu0 %4242
          %4246 = vset.pattern.permute.xlu0 0
          %4247 = vperm.xlu0 %4246, %v4141
          %v4248 = vpop.permute.xlu0 %4247
          %4251 = vset.pattern.permute.xlu0 0
          %4252 = vperm.xlu0 %4251, %v4142
          %v4253 = vpop.permute.xlu0 %4252
          %v4255 = vsub.f32 %v4143, %v4178
          %v4256 = vsub.f32 %v4144, %v4178
          %v4257 = vsub.f32 %v4145, %v4183
          %v4258 = vsub.f32 %v4146, %v4183
          %v4259 = vsub.f32 %v4147, %v4188
          %v4260 = vsub.f32 %v4148, %v4188
          %v4261 = vsub.f32 %v4149, %v4193
          %v4262 = vsub.f32 %v4150, %v4193
          %v4263 = vsub.f32 %v4151, %v4198
          %v4264 = vsub.f32 %v4152, %v4198
          %v4265 = vsub.f32 %v4153, %v4203
          %v4266 = vsub.f32 %v4154, %v4203
          %v4267 = vsub.f32 %v4155, %v4208
          %v4268 = vsub.f32 %v4156, %v4208
          %v4269 = vsub.f32 %v4157, %v4213
          %v4270 = vsub.f32 %v4158, %v4213
          %v4271 = vsub.f32 %v4159, %v4218
          %v4272 = vsub.f32 %v4160, %v4218
          %v4273 = vsub.f32 %v4161, %v4223
          %v4274 = vsub.f32 %v4162, %v4223
          %v4275 = vsub.f32 %v4163, %v4228
          %v4276 = vsub.f32 %v4164, %v4228
          %v4277 = vsub.f32 %v4165, %v4233
          %v4278 = vsub.f32 %v4166, %v4233
          %v4279 = vsub.f32 %v4167, %v4238
          %v4280 = vsub.f32 %v4168, %v4238
          %v4281 = vsub.f32 %v4169, %v4243
          %v4282 = vsub.f32 %v4170, %v4243
          %v4283 = vsub.f32 %v4171, %v4248
          %v4284 = vsub.f32 %v4172, %v4248
          %v4285 = vsub.f32 %v4173, %v4253
          %v4286 = vsub.f32 %v4174, %v4253
          %4287 = vst [vmem:[%s326] sm:$0xff] %v4255
          %4288 = vst [vmem:[%s326 + $0x8] sm:$0xff] %v4256
          %4289 = vst [vmem:[%s326 + $0x40] sm:$0xff] %v4257
          %4290 = vst [vmem:[%s326 + $0x48] sm:$0xff] %v4258
          %4291 = vst [vmem:[%s326 + $0x80] sm:$0xff] %v4259
          %4292 = vst [vmem:[%s326 + $0x88] sm:$0xff] %v4260
          %4293 = vst [vmem:[%s326 + $0xc0] sm:$0xff] %v4261
          %4294 = vst [vmem:[%s326 + $0xc8] sm:$0xff] %v4262
          %4295 = vst [vmem:[%s326 + $0x100] sm:$0xff] %v4263
          %4296 = vst [vmem:[%s326 + $0x108] sm:$0xff] %v4264
          %4297 = vst [vmem:[%s326 + $0x140] sm:$0xff] %v4265
          %4298 = vst [vmem:[%s326 + $0x148] sm:$0xff] %v4266
          %4299 = vst [vmem:[%s326 + $0x180] sm:$0xff] %v4267
          %4300 = vst [vmem:[%s326 + $0x188] sm:$0xff] %v4268
          %4301 = vst [vmem:[%s326 + $0x1c0] sm:$0xff] %v4269
          %4302 = vst [vmem:[%s326 + $0x1c8] sm:$0xff] %v4270
          %4303 = vst [vmem:[%s326 + $0x200] sm:$0xff] %v4271
          %4304 = vst [vmem:[%s326 + $0x208] sm:$0xff] %v4272
          %4305 = vst [vmem:[%s326 + $0x240] sm:$0xff] %v4273
          %4306 = vst [vmem:[%s326 + $0x248] sm:$0xff] %v4274
          %4307 = vst [vmem:[%s326 + $0x280] sm:$0xff] %v4275
          %4308 = vst [vmem:[%s326 + $0x288] sm:$0xff] %v4276
          %4309 = vst [vmem:[%s326 + $0x2c0] sm:$0xff] %v4277
          %4310 = vst [vmem:[%s326 + $0x2c8] sm:$0xff] %v4278
          %4311 = vst [vmem:[%s326 + $0x300] sm:$0xff] %v4279
          %4312 = vst [vmem:[%s326 + $0x308] sm:$0xff] %v4280
          %4313 = vst [vmem:[%s326 + $0x340] sm:$0xff] %v4281
          %4314 = vst [vmem:[%s326 + $0x348] sm:$0xff] %v4282
          %4315 = vst [vmem:[%s326 + $0x380] sm:$0xff] %v4283
          %4316 = vst [vmem:[%s326 + $0x388] sm:$0xff] %v4284
          %4317 = vst [vmem:[%s326 + $0x3c0] sm:$0xff] %v4285
          %4318 = vst [vmem:[%s326 + $0x3c8] sm:$0xff] %v4286
          %v4319 = vld [vmem:[%s326 + $0x10] sm:$0xff]
          %v4320 = vld [vmem:[%s326 + $0x18] sm:$0xff]
          %v4321 = vld [vmem:[%s326 + $0x50] sm:$0xff]
          %v4322 = vld [vmem:[%s326 + $0x58] sm:$0xff]
          %v4323 = vld [vmem:[%s326 + $0x90] sm:$0xff]
          %v4324 = vld [vmem:[%s326 + $0x98] sm:$0xff]
          %v4325 = vld [vmem:[%s326 + $0xd0] sm:$0xff]
          %v4326 = vld [vmem:[%s326 + $0xd8] sm:$0xff]
          %v4327 = vld [vmem:[%s326 + $0x110] sm:$0xff]
          %v4328 = vld [vmem:[%s326 + $0x118] sm:$0xff]
          %v4329 = vld [vmem:[%s326 + $0x150] sm:$0xff]
          %v4330 = vld [vmem:[%s326 + $0x158] sm:$0xff]
          %v4331 = vld [vmem:[%s326 + $0x190] sm:$0xff]
          %v4332 = vld [vmem:[%s326 + $0x198] sm:$0xff]
          %v4333 = vld [vmem:[%s326 + $0x1d0] sm:$0xff]
          %v4334 = vld [vmem:[%s326 + $0x1d8] sm:$0xff]
          %v4335 = vld [vmem:[%s326 + $0x210] sm:$0xff]
          %v4336 = vld [vmem:[%s326 + $0x218] sm:$0xff]
          %v4337 = vld [vmem:[%s326 + $0x250] sm:$0xff]
          %v4338 = vld [vmem:[%s326 + $0x258] sm:$0xff]
          %v4339 = vld [vmem:[%s326 + $0x290] sm:$0xff]
          %v4340 = vld [vmem:[%s326 + $0x298] sm:$0xff]
          %v4341 = vld [vmem:[%s326 + $0x2d0] sm:$0xff]
          %v4342 = vld [vmem:[%s326 + $0x2d8] sm:$0xff]
          %v4343 = vld [vmem:[%s326 + $0x310] sm:$0xff]
          %v4344 = vld [vmem:[%s326 + $0x318] sm:$0xff]
          %v4345 = vld [vmem:[%s326 + $0x350] sm:$0xff]
          %v4346 = vld [vmem:[%s326 + $0x358] sm:$0xff]
          %v4347 = vld [vmem:[%s326 + $0x390] sm:$0xff]
          %v4348 = vld [vmem:[%s326 + $0x398] sm:$0xff]
          %v4349 = vld [vmem:[%s326 + $0x3d0] sm:$0xff]
          %v4350 = vld [vmem:[%s326 + $0x3d8] sm:$0xff]
          %v4351 = vsub.f32 %v4319, %v4178
          %v4352 = vsub.f32 %v4320, %v4178
          %v4353 = vsub.f32 %v4321, %v4183
          %v4354 = vsub.f32 %v4322, %v4183
          %v4355 = vsub.f32 %v4323, %v4188
          %v4356 = vsub.f32 %v4324, %v4188
          %v4357 = vsub.f32 %v4325, %v4193
          %v4358 = vsub.f32 %v4326, %v4193
          %v4359 = vsub.f32 %v4327, %v4198
          %v4360 = vsub.f32 %v4328, %v4198
          %v4361 = vsub.f32 %v4329, %v4203
          %v4362 = vsub.f32 %v4330, %v4203
          %v4363 = vsub.f32 %v4331, %v4208
          %v4364 = vsub.f32 %v4332, %v4208
          %v4365 = vsub.f32 %v4333, %v4213
          %v4366 = vsub.f32 %v4334, %v4213
          %v4367 = vsub.f32 %v4335, %v4218
          %v4368 = vsub.f32 %v4336, %v4218
          %v4369 = vsub.f32 %v4337, %v4223
          %v4370 = vsub.f32 %v4338, %v4223
          %v4371 = vsub.f32 %v4339, %v4228
          %v4372 = vsub.f32 %v4340, %v4228
          %v4373 = vsub.f32 %v4341, %v4233
          %v4374 = vsub.f32 %v4342, %v4233
          %v4375 = vsub.f32 %v4343, %v4238
          %v4376 = vsub.f32 %v4344, %v4238
          %v4377 = vsub.f32 %v4345, %v4243
          %v4378 = vsub.f32 %v4346, %v4243
          %v4379 = vsub.f32 %v4347, %v4248
          %v4380 = vsub.f32 %v4348, %v4248
          %v4381 = vsub.f32 %v4349, %v4253
          %v4382 = vsub.f32 %v4350, %v4253
          %4383 = vst [vmem:[%s326 + $0x10] sm:$0xff] %v4351
          %4384 = vst [vmem:[%s326 + $0x18] sm:$0xff] %v4352
          %4385 = vst [vmem:[%s326 + $0x50] sm:$0xff] %v4353
          %4386 = vst [vmem:[%s326 + $0x58] sm:$0xff] %v4354
          %4387 = vst [vmem:[%s326 + $0x90] sm:$0xff] %v4355
          %4388 = vst [vmem:[%s326 + $0x98] sm:$0xff] %v4356
          %4389 = vst [vmem:[%s326 + $0xd0] sm:$0xff] %v4357
          %4390 = vst [vmem:[%s326 + $0xd8] sm:$0xff] %v4358
          %4391 = vst [vmem:[%s326 + $0x110] sm:$0xff] %v4359
          %4392 = vst [vmem:[%s326 + $0x118] sm:$0xff] %v4360
          %4393 = vst [vmem:[%s326 + $0x150] sm:$0xff] %v4361
          %4394 = vst [vmem:[%s326 + $0x158] sm:$0xff] %v4362
          %4395 = vst [vmem:[%s326 + $0x190] sm:$0xff] %v4363
          %4396 = vst [vmem:[%s326 + $0x198] sm:$0xff] %v4364
          %4397 = vst [vmem:[%s326 + $0x1d0] sm:$0xff] %v4365
          %4398 = vst [vmem:[%s326 + $0x1d8] sm:$0xff] %v4366
          %4399 = vst [vmem:[%s326 + $0x210] sm:$0xff] %v4367
          %4400 = vst [vmem:[%s326 + $0x218] sm:$0xff] %v4368
          %4401 = vst [vmem:[%s326 + $0x250] sm:$0xff] %v4369
          %4402 = vst [vmem:[%s326 + $0x258] sm:$0xff] %v4370
          %4403 = vst [vmem:[%s326 + $0x290] sm:$0xff] %v4371
          %4404 = vst [vmem:[%s326 + $0x298] sm:$0xff] %v4372
          %4405 = vst [vmem:[%s326 + $0x2d0] sm:$0xff] %v4373
          %4406 = vst [vmem:[%s326 + $0x2d8] sm:$0xff] %v4374
          %4407 = vst [vmem:[%s326 + $0x310] sm:$0xff] %v4375
          %4408 = vst [vmem:[%s326 + $0x318] sm:$0xff] %v4376
          %4409 = vst [vmem:[%s326 + $0x350] sm:$0xff] %v4377
          %4410 = vst [vmem:[%s326 + $0x358] sm:$0xff] %v4378
          %4411 = vst [vmem:[%s326 + $0x390] sm:$0xff] %v4379
          %4412 = vst [vmem:[%s326 + $0x398] sm:$0xff] %v4380
          %4413 = vst [vmem:[%s326 + $0x3d0] sm:$0xff] %v4381
          %4414 = vst [vmem:[%s326 + $0x3d8] sm:$0xff] %v4382
          %v4415 = vld [vmem:[%s326 + $0x20] sm:$0xff]
          %v4416 = vld [vmem:[%s326 + $0x28] sm:$0xff]
          %v4417 = vld [vmem:[%s326 + $0x60] sm:$0xff]
          %v4418 = vld [vmem:[%s326 + $0x68] sm:$0xff]
          %v4419 = vld [vmem:[%s326 + $0xa0] sm:$0xff]
          %v4420 = vld [vmem:[%s326 + $0xa8] sm:$0xff]
          %v4421 = vld [vmem:[%s326 + $0xe0] sm:$0xff]
          %v4422 = vld [vmem:[%s326 + $0xe8] sm:$0xff]
          %v4423 = vld [vmem:[%s326 + $0x120] sm:$0xff]
          %v4424 = vld [vmem:[%s326 + $0x128] sm:$0xff]
          %v4425 = vld [vmem:[%s326 + $0x160] sm:$0xff]
          %v4426 = vld [vmem:[%s326 + $0x168] sm:$0xff]
          %v4427 = vld [vmem:[%s326 + $0x1a0] sm:$0xff]
          %v4428 = vld [vmem:[%s326 + $0x1a8] sm:$0xff]
          %v4429 = vld [vmem:[%s326 + $0x1e0] sm:$0xff]
          %v4430 = vld [vmem:[%s326 + $0x1e8] sm:$0xff]
          %v4431 = vld [vmem:[%s326 + $0x220] sm:$0xff]
          %v4432 = vld [vmem:[%s326 + $0x228] sm:$0xff]
          %v4433 = vld [vmem:[%s326 + $0x260] sm:$0xff]
          %v4434 = vld [vmem:[%s326 + $0x268] sm:$0xff]
          %v4435 = vld [vmem:[%s326 + $0x2a0] sm:$0xff]
          %v4436 = vld [vmem:[%s326 + $0x2a8] sm:$0xff]
          %v4437 = vld [vmem:[%s326 + $0x2e0] sm:$0xff]
          %v4438 = vld [vmem:[%s326 + $0x2e8] sm:$0xff]
          %v4439 = vld [vmem:[%s326 + $0x320] sm:$0xff]
          %v4440 = vld [vmem:[%s326 + $0x328] sm:$0xff]
          %v4441 = vld [vmem:[%s326 + $0x360] sm:$0xff]
          %v4442 = vld [vmem:[%s326 + $0x368] sm:$0xff]
          %v4443 = vld [vmem:[%s326 + $0x3a0] sm:$0xff]
          %v4444 = vld [vmem:[%s326 + $0x3a8] sm:$0xff]
          %v4445 = vld [vmem:[%s326 + $0x3e0] sm:$0xff]
          %v4446 = vld [vmem:[%s326 + $0x3e8] sm:$0xff]
          %v4447 = vsub.f32 %v4415, %v4178
          %v4448 = vsub.f32 %v4416, %v4178
          %v4449 = vsub.f32 %v4417, %v4183
          %v4450 = vsub.f32 %v4418, %v4183
          %v4451 = vsub.f32 %v4419, %v4188
          %v4452 = vsub.f32 %v4420, %v4188
          %v4453 = vsub.f32 %v4421, %v4193
          %v4454 = vsub.f32 %v4422, %v4193
          %v4455 = vsub.f32 %v4423, %v4198
          %v4456 = vsub.f32 %v4424, %v4198
          %v4457 = vsub.f32 %v4425, %v4203
          %v4458 = vsub.f32 %v4426, %v4203
          %v4459 = vsub.f32 %v4427, %v4208
          %v4460 = vsub.f32 %v4428, %v4208
          %v4461 = vsub.f32 %v4429, %v4213
          %v4462 = vsub.f32 %v4430, %v4213
          %v4463 = vsub.f32 %v4431, %v4218
          %v4464 = vsub.f32 %v4432, %v4218
          %v4465 = vsub.f32 %v4433, %v4223
          %v4466 = vsub.f32 %v4434, %v4223
          %v4467 = vsub.f32 %v4435, %v4228
          %v4468 = vsub.f32 %v4436, %v4228
          %v4469 = vsub.f32 %v4437, %v4233
          %v4470 = vsub.f32 %v4438, %v4233
          %v4471 = vsub.f32 %v4439, %v4238
          %v4472 = vsub.f32 %v4440, %v4238
          %v4473 = vsub.f32 %v4441, %v4243
          %v4474 = vsub.f32 %v4442, %v4243
          %v4475 = vsub.f32 %v4443, %v4248
          %v4476 = vsub.f32 %v4444, %v4248
          %v4477 = vsub.f32 %v4445, %v4253
          %v4478 = vsub.f32 %v4446, %v4253
          %4479 = vst [vmem:[%s326 + $0x20] sm:$0xff] %v4447
          %4480 = vst [vmem:[%s326 + $0x28] sm:$0xff] %v4448
          %4481 = vst [vmem:[%s326 + $0x60] sm:$0xff] %v4449
          %4482 = vst [vmem:[%s326 + $0x68] sm:$0xff] %v4450
          %4483 = vst [vmem:[%s326 + $0xa0] sm:$0xff] %v4451
          %4484 = vst [vmem:[%s326 + $0xa8] sm:$0xff] %v4452
          %4485 = vst [vmem:[%s326 + $0xe0] sm:$0xff] %v4453
          %4486 = vst [vmem:[%s326 + $0xe8] sm:$0xff] %v4454
          %4487 = vst [vmem:[%s326 + $0x120] sm:$0xff] %v4455
          %4488 = vst [vmem:[%s326 + $0x128] sm:$0xff] %v4456
          %4489 = vst [vmem:[%s326 + $0x160] sm:$0xff] %v4457
          %4490 = vst [vmem:[%s326 + $0x168] sm:$0xff] %v4458
          %4491 = vst [vmem:[%s326 + $0x1a0] sm:$0xff] %v4459
          %4492 = vst [vmem:[%s326 + $0x1a8] sm:$0xff] %v4460
          %4493 = vst [vmem:[%s326 + $0x1e0] sm:$0xff] %v4461
          %4494 = vst [vmem:[%s326 + $0x1e8] sm:$0xff] %v4462
          %4495 = vst [vmem:[%s326 + $0x220] sm:$0xff] %v4463
          %4496 = vst [vmem:[%s326 + $0x228] sm:$0xff] %v4464
          %4497 = vst [vmem:[%s326 + $0x260] sm:$0xff] %v4465
          %4498 = vst [vmem:[%s326 + $0x268] sm:$0xff] %v4466
          %4499 = vst [vmem:[%s326 + $0x2a0] sm:$0xff] %v4467
          %4500 = vst [vmem:[%s326 + $0x2a8] sm:$0xff] %v4468
          %4501 = vst [vmem:[%s326 + $0x2e0] sm:$0xff] %v4469
          %4502 = vst [vmem:[%s326 + $0x2e8] sm:$0xff] %v4470
          %4503 = vst [vmem:[%s326 + $0x320] sm:$0xff] %v4471
          %4504 = vst [vmem:[%s326 + $0x328] sm:$0xff] %v4472
          %4505 = vst [vmem:[%s326 + $0x360] sm:$0xff] %v4473
          %4506 = vst [vmem:[%s326 + $0x368] sm:$0xff] %v4474
          %4507 = vst [vmem:[%s326 + $0x3a0] sm:$0xff] %v4475
          %4508 = vst [vmem:[%s326 + $0x3a8] sm:$0xff] %v4476
          %4509 = vst [vmem:[%s326 + $0x3e0] sm:$0xff] %v4477
          %4510 = vst [vmem:[%s326 + $0x3e8] sm:$0xff] %v4478
          %v4511 = vld [vmem:[%s326 + $0x30] sm:$0xff]
          %v4512 = vld [vmem:[%s326 + $0x38] sm:$0xff]
          %v4513 = vld [vmem:[%s326 + $0x70] sm:$0xff]
          %v4514 = vld [vmem:[%s326 + $0x78] sm:$0xff]
          %v4515 = vld [vmem:[%s326 + $0xb0] sm:$0xff]
          %v4516 = vld [vmem:[%s326 + $0xb8] sm:$0xff]
          %v4517 = vld [vmem:[%s326 + $0xf0] sm:$0xff]
          %v4518 = vld [vmem:[%s326 + $0xf8] sm:$0xff]
          %v4519 = vld [vmem:[%s326 + $0x130] sm:$0xff]
          %v4520 = vld [vmem:[%s326 + $0x138] sm:$0xff]
          %v4521 = vld [vmem:[%s326 + $0x170] sm:$0xff]
          %v4522 = vld [vmem:[%s326 + $0x178] sm:$0xff]
          %v4523 = vld [vmem:[%s326 + $0x1b0] sm:$0xff]
          %v4524 = vld [vmem:[%s326 + $0x1b8] sm:$0xff]
          %v4525 = vld [vmem:[%s326 + $0x1f0] sm:$0xff]
          %v4526 = vld [vmem:[%s326 + $0x1f8] sm:$0xff]
          %v4527 = vld [vmem:[%s326 + $0x230] sm:$0xff]
          %v4528 = vld [vmem:[%s326 + $0x238] sm:$0xff]
          %v4529 = vld [vmem:[%s326 + $0x270] sm:$0xff]
          %v4530 = vld [vmem:[%s326 + $0x278] sm:$0xff]
          %v4531 = vld [vmem:[%s326 + $0x2b0] sm:$0xff]
          %v4532 = vld [vmem:[%s326 + $0x2b8] sm:$0xff]
          %v4533 = vld [vmem:[%s326 + $0x2f0] sm:$0xff]
          %v4534 = vld [vmem:[%s326 + $0x2f8] sm:$0xff]
          %v4535 = vld [vmem:[%s326 + $0x330] sm:$0xff]
          %v4536 = vld [vmem:[%s326 + $0x338] sm:$0xff]
          %v4537 = vld [vmem:[%s326 + $0x370] sm:$0xff]
          %v4538 = vld [vmem:[%s326 + $0x378] sm:$0xff]
          %v4539 = vld [vmem:[%s326 + $0x3b0] sm:$0xff]
          %v4540 = vld [vmem:[%s326 + $0x3b8] sm:$0xff]
          %v4541 = vld [vmem:[%s326 + $0x3f0] sm:$0xff]
          %v4542 = vld [vmem:[%s326 + $0x3f8] sm:$0xff]
          %v4543 = vsub.f32 %v4511, %v4178
          %v4544 = vsub.f32 %v4512, %v4178
          %v4545 = vsub.f32 %v4513, %v4183
          %v4546 = vsub.f32 %v4514, %v4183
          %v4547 = vsub.f32 %v4515, %v4188
          %v4548 = vsub.f32 %v4516, %v4188
          %v4549 = vsub.f32 %v4517, %v4193
          %v4550 = vsub.f32 %v4518, %v4193
          %v4551 = vsub.f32 %v4519, %v4198
          %v4552 = vsub.f32 %v4520, %v4198
          %v4553 = vsub.f32 %v4521, %v4203
          %v4554 = vsub.f32 %v4522, %v4203
          %v4555 = vsub.f32 %v4523, %v4208
          %v4556 = vsub.f32 %v4524, %v4208
          %v4557 = vsub.f32 %v4525, %v4213
          %v4558 = vsub.f32 %v4526, %v4213
          %v4559 = vsub.f32 %v4527, %v4218
          %v4560 = vsub.f32 %v4528, %v4218
          %v4561 = vsub.f32 %v4529, %v4223
          %v4562 = vsub.f32 %v4530, %v4223
          %v4563 = vsub.f32 %v4531, %v4228
          %v4564 = vsub.f32 %v4532, %v4228
          %v4565 = vsub.f32 %v4533, %v4233
          %v4566 = vsub.f32 %v4534, %v4233
          %v4567 = vsub.f32 %v4535, %v4238
          %v4568 = vsub.f32 %v4536, %v4238
          %v4569 = vsub.f32 %v4537, %v4243
          %v4570 = vsub.f32 %v4538, %v4243
          %v4571 = vsub.f32 %v4539, %v4248
          %v4572 = vsub.f32 %v4540, %v4248
          %v4573 = vsub.f32 %v4541, %v4253
          %v4574 = vsub.f32 %v4542, %v4253
          %4575 = vst [vmem:[%s326 + $0x30] sm:$0xff] %v4543
          %4576 = vst [vmem:[%s326 + $0x38] sm:$0xff] %v4544
          %4577 = vst [vmem:[%s326 + $0x70] sm:$0xff] %v4545
          %4578 = vst [vmem:[%s326 + $0x78] sm:$0xff] %v4546
          %4579 = vst [vmem:[%s326 + $0xb0] sm:$0xff] %v4547
          %4580 = vst [vmem:[%s326 + $0xb8] sm:$0xff] %v4548
          %4581 = vst [vmem:[%s326 + $0xf0] sm:$0xff] %v4549
          %4582 = vst [vmem:[%s326 + $0xf8] sm:$0xff] %v4550
          %4583 = vst [vmem:[%s326 + $0x130] sm:$0xff] %v4551
          %4584 = vst [vmem:[%s326 + $0x138] sm:$0xff] %v4552
          %4585 = vst [vmem:[%s326 + $0x170] sm:$0xff] %v4553
          %4586 = vst [vmem:[%s326 + $0x178] sm:$0xff] %v4554
          %4587 = vst [vmem:[%s326 + $0x1b0] sm:$0xff] %v4555
          %4588 = vst [vmem:[%s326 + $0x1b8] sm:$0xff] %v4556
          %4589 = vst [vmem:[%s326 + $0x1f0] sm:$0xff] %v4557
          %4590 = vst [vmem:[%s326 + $0x1f8] sm:$0xff] %v4558
          %4591 = vst [vmem:[%s326 + $0x230] sm:$0xff] %v4559
          %4592 = vst [vmem:[%s326 + $0x238] sm:$0xff] %v4560
          %4593 = vst [vmem:[%s326 + $0x270] sm:$0xff] %v4561
          %4594 = vst [vmem:[%s326 + $0x278] sm:$0xff] %v4562
          %4595 = vst [vmem:[%s326 + $0x2b0] sm:$0xff] %v4563
          %4596 = vst [vmem:[%s326 + $0x2b8] sm:$0xff] %v4564
          %4597 = vst [vmem:[%s326 + $0x2f0] sm:$0xff] %v4565
          %4598 = vst [vmem:[%s326 + $0x2f8] sm:$0xff] %v4566
          %4599 = vst [vmem:[%s326 + $0x330] sm:$0xff] %v4567
          %4600 = vst [vmem:[%s326 + $0x338] sm:$0xff] %v4568
          %4601 = vst [vmem:[%s326 + $0x370] sm:$0xff] %v4569
          %4602 = vst [vmem:[%s326 + $0x378] sm:$0xff] %v4570
          %4603 = vst [vmem:[%s326 + $0x3b0] sm:$0xff] %v4571
          %4604 = vst [vmem:[%s326 + $0x3b8] sm:$0xff] %v4572
          %4605 = vst [vmem:[%s326 + $0x3f0] sm:$0xff] %v4573
          %4606 = vst [vmem:[%s326 + $0x3f8] sm:$0xff] %v4574
        $region76: #{tpu_custom_call.1} parent=43 // pred_fallthru
          _
        %s4607 = sand.u32 %s185, 1
        %s4608 = scalar_lea.sflag [#allocation7], %s4607
        %s4609 = sand.u32 %s185, 1
        %s4610 = smul.addr %s4609, 1024
        %s4611 = scalar_lea.vmem [#allocation10], %s4610
        // Predicated region
        $region77: #{tpu_custom_call.1} parent=43 // pred_check
          %p4612 = pneg %p195
        $region78: #{tpu_custom_call.1} parent=43 // pred_check_branch
          %4614 = sbr.rel (%p4612) target = $region80
        $region79: #{tpu_custom_call.1} parent=43 // pred_region
          %s4615 = smul.u32 16, %s28
          %s4617 = ssub.s32 16384, 16384
          %4618 = vsyncadd %s4608, %s4617
          %s4619 = smul.addr %s4615, 8
          %s4620 = smul.addr %s4619, 128
          %s4621 = scalar_lea.hbm %s6, %s4620
          %s4622 = sshll.u32 %s4611, 4
          %s4623 = int_to_ptr.vmem [resolvable:$true] %s4622
          %4628 = dma.vmem_to_hbm [thread:$0]  %s4623, 16384, %s4621, %s4608, 1024, 1024, 64
        $region80: #{tpu_custom_call.1} parent=43 // pred_fallthru
          _
      $region44: #{tpu_custom_call.1} parent=5 // pred_fallthru
        _
      %p4629 = scmp.le.s32.totalorder 2, %s19
      // Predicated region
      $region81: #{tpu_custom_call.1} parent=5 // pred_check
        %p4630 = pneg %p4629
      $region82: #{tpu_custom_call.1} parent=5 // pred_check_branch
        %4632 = sbr.rel (%p4630) target = $region84
      $region83: #{tpu_custom_call.1} parent=5 // pred_region
        %s4633 = ssub.s32 %s19, 2
        // Predicated region
        $region85: #{tpu_custom_call.1} parent=83 // pred_check
          %p4634 = pneg %p201
        $region86: #{tpu_custom_call.1} parent=83 // pred_check_branch
          %4636 = sbr.rel (%p4634) target = $region88
        $region87: #{tpu_custom_call.1} parent=83 // pred_region
          %s4637 = sand.u32 %s186, 1
          %s4638 = scalar_lea.sflag [#allocation7], %s4637
          %s4639 = sand.u32 %s186, 1
          %s4640 = smul.addr %s4639, 1024
          %s4641 = scalar_lea.vmem [#allocation10], %s4640
          %4642 = dma.done %s4638, 16384
        $region88: #{tpu_custom_call.1} parent=83 // pred_fallthru
          _
      $region84: #{tpu_custom_call.1} parent=5 // pred_fallthru
        _
    $region6: #{tpu_custom_call.1} parent=1 // loop_footer
      %s23 = sadd.s32 1, %s19
    $region7: #{tpu_custom_call.1} parent=1 // loop_footer_branch
      %18 = sbr.rel target = $region3
    $region8: #{tpu_custom_call.1} parent=1 // loop_exit
      _
    %4643 = vsyncpa [#allocation6], 1
    %s4644 = scalar_lea.sflag [#allocation6], 1
    %4645 = vsyncpa %s4644, 1
    %4646 = vsyncpa [#allocation9], 1
    %s4647 = scalar_lea.sflag [#allocation9], 1
    %4648 = vsyncpa %s4647, 1
    %4649 = vsyncpa [#allocation7], 1
    %s4650 = scalar_lea.sflag [#allocation7], 1
    %4651 = vsyncpa %s4650, 1

</llo_original>
